<compile_context>
chip_gen: v7x
topology: tpu7x:2x2x1
jax: 0.10.0
libtpu: 0.0.40
codegen_flags: <defaults>
</compile_context>

<pallas_src>
import jax
import jax.numpy as jnp
from jax import lax
from jax.experimental import pallas as pl
from jax.experimental.pallas import tpu as pltpu

B = 32             # batch (hardcoded in the PyTorch module)
N = 30             # sequence length n
K = 9              # conv kernel size
C = 20             # hidden channels
CP = 24            # channels padded to a sublane multiple (8)
LEAD = K           # leading zero positions per example (>= K for causal rolls)
TP = LEAD + N + 1  # padded per-example length = 40 (so B*TP is lane aligned)
LP = B * TP        # 1280 lanes = 10 full lane tiles
HALF = LP // 2     # 640 lanes per grid step = 16 whole examples, 5 lane tiles

NEG_SLOPE = 0.01
BN_EPS = 1e-5


# ---------------------------------------------------------------------------
# Kernel
# ---------------------------------------------------------------------------
def cnn_kernel(x_ref, w1_ref, w_ref, pv_ref, mask_ref, out_ref):
    # Hoist the sublane broadcast of the (1, HALF) validity row once.
    mask = jnp.broadcast_to(mask_ref[...], (CP, HALF))

    def im2col(hm):
        # tap j uses input shifted right by (K - j); leading pads supply the
        # causal zeros, wrap-around only lands in masked pad positions.
        parts = [pltpu.roll(hm, shift=K - j, axis=1) for j in range(K)]
        return jnp.concatenate(parts, axis=0)            # (K*rows, HALF)

    def conv(h, wi, bi):
        """Causal conv (conv2..conv5) as a single im2col MXU matmul."""
        o = jnp.dot(w_ref[wi], im2col(h * mask),
                    preferred_element_type=jnp.float32)  # (CP, HALF)
        return o + pv_ref[bi]                            # bias along lanes

    def leaky(v):
        return jnp.where(v >= 0, v, NEG_SLOPE * v)

    # conv1: 1 real input channel -> small (24,72)@(72,HALF) matmul; x pad
    # lanes are already zero by construction so no mask multiply is needed.
    h = jnp.dot(w1_ref[...], im2col(x_ref[...]),
                preferred_element_type=jnp.float32) + pv_ref[0]

    # residual block 1: h + conv3(leaky(conv2(bn1(h))))
    t = conv(h * pv_ref[6] + pv_ref[7], 0, 1)
    h = h + conv(leaky(t), 1, 2)
    # residual block 2: h + conv5(leaky(conv4(bn2(h))))
    t = conv(h * pv_ref[8] + pv_ref[9], 2, 3)
    h = h + conv(leaky(t), 3, 4)

    # conv6: only output rows 0 (mean) and 1 (logvar) are real -> 8-row slab.
    o = jnp.dot(w_ref[4][:8, :], im2col(h * mask),
                preferred_element_type=jnp.float32) + pv_ref[5][:8, :]
    row = lax.broadcasted_iota(jnp.int32, o.shape, 0)
    out_ref[...] = jnp.where(row == 0, o, jnp.clip(o, -10.0, 10.0))


# ---------------------------------------------------------------------------
# Wrapper
# ---------------------------------------------------------------------------
@jax.jit
def cnn_forward(x, w1_slab, w_slab, pvec, mask_row):
    """x: (B, N, 1) f32 -> (B, N, 2) f32."""
    xc = x.reshape(B, N)
    xp = jnp.zeros((B, TP), jnp.float32).at[:, LEAD:LEAD + N].set(xc)
    x_slab = jnp.zeros((8, LP), jnp.float32).at[0, :].set(xp.reshape(LP))

    out_slab = pl.pallas_call(
        cnn_kernel,
        out_shape=jax.ShapeDtypeStruct((8, LP), jnp.float32),
        grid=(2,),
        in_specs=[
            pl.BlockSpec((8, HALF), lambda i: (0, i)),            # activations
            pl.BlockSpec((CP, K * 8), lambda i: (0, 0)),          # conv1 W
            pl.BlockSpec((5, CP, K * CP), lambda i: (0, 0, 0)),   # conv2..6 W
            pl.BlockSpec((10, CP, 1), lambda i: (0, 0, 0)),       # per-channel
            pl.BlockSpec((1, HALF), lambda i: (0, i)),            # valid mask
        ],
        out_specs=pl.BlockSpec((8, HALF), lambda i: (0, i)),
        compiler_params=pltpu.CompilerParams(
            dimension_semantics=("parallel",)),
    )(x_slab, w1_slab, w_slab, pvec, mask_row)

    out = out_slab.reshape(8, B, TP)[:2, :, LEAD:LEAD + N]        # (2, B, N)
    return jnp.transpose(out, (1, 2, 0))                          # (B, N, 2)


# ---------------------------------------------------------------------------
# Parameter packing (PyTorch layout -> kernel slabs)
# ---------------------------------------------------------------------------
def pack_params(conv_ws, conv_bs, bn_scales, bn_shifts):
    # conv1 weight: w1_slab[o, j*8 + c] = W1[o, c, j] (only c=0 is real).
    w1f = jnp.zeros((CP, K, 8), jnp.float32)
    w1f = w1f.at[:C, :, :1].set(jnp.transpose(conv_ws[0], (0, 2, 1)))
    w1_slab = w1f.reshape(CP, K * 8)

    # conv2..conv6 weights: w_slab[i, o, j*CP + c] = W_{i+2}[o, c, j].
    w_slab = jnp.zeros((5, CP, K * CP), jnp.float32)
    for i, w in enumerate(conv_ws[1:]):
        co, ci, _ = w.shape
        wf = jnp.zeros((CP, K, CP), jnp.float32)
        wf = wf.at[:co, :, :ci].set(jnp.transpose(w, (0, 2, 1)))  # (co, K, ci)
        w_slab = w_slab.at[i].set(wf.reshape(CP, K * CP))

    # per-channel vectors: 0..5 conv biases, 6/7 bn1 scale/shift, 8/9 bn2.
    pvec = jnp.zeros((10, CP, 1), jnp.float32)
    for i, b in enumerate(conv_bs):
        pvec = pvec.at[i, :b.shape[0], 0].set(b)
    pvec = pvec.at[6, :C, 0].set(bn_scales[0])
    pvec = pvec.at[7, :C, 0].set(bn_shifts[0])
    pvec = pvec.at[8, :C, 0].set(bn_scales[1])
    pvec = pvec.at[9, :C, 0].set(bn_shifts[1])

    pos = jnp.arange(LP) % TP
    valid = ((pos >= LEAD) & (pos < LEAD + N)).astype(jnp.float32)
    mask_row = valid[None, :]                                     # (1, LP)
    return w1_slab, w_slab, pvec, mask_row


# ---------------------------------------------------------------------------
# Parameter init (PyTorch-default-style) and pure-JAX reference
# ---------------------------------------------------------------------------
def _conv_init(key, c_out, c_in, k):
    kw, kb = jax.random.split(key)
    bound = 1.0 / float(c_in * k) ** 0.5
    w = jax.random.uniform(kw, (c_out, c_in, k), jnp.float32, -bound, bound)
    b = jax.random.uniform(kb, (c_out,), jnp.float32, -bound, bound)
    return w, b


def _bn_init(key, c):
    k1, k2, k3, k4 = jax.random.split(key, 4)
    gamma = 1.0 + 0.1 * jax.random.normal(k1, (c,), jnp.float32)
    beta = 0.1 * jax.random.normal(k2, (c,), jnp.float32)
    rmean = 0.1 * jax.random.normal(k3, (c,), jnp.float32)
    rvar = jax.random.uniform(k4, (c,), jnp.float32, 0.5, 1.5)
    scale = gamma / jnp.sqrt(rvar + BN_EPS)
    shift = beta - rmean * scale
    return scale, shift


def _ref_conv_masked(x_bcl, w, b):
    """Reference causal conv, mirrors torch cat([zeros,x])[:-1] + Conv1d."""
    bb, cc, ll = x_bcl.shape
    xp = jnp.concatenate(
        [jnp.zeros((bb, cc, K), x_bcl.dtype), x_bcl], axis=2)[:, :, :-1]
    acc = jnp.zeros((bb, w.shape[0], ll), jnp.float32)
    for j in range(K):
        acc = acc + jnp.einsum("oc,bcl->bol", w[:, :, j], xp[:, :, j:j + ll],
                               precision=lax.Precision.HIGHEST)
    return acc + b[None, :, None]


def ref_forward(x, conv_ws, conv_bs, bn_scales, bn_shifts):
    lr = lambda v: jnp.where(v >= 0, v, NEG_SLOPE * v)
    h = jnp.transpose(x, (0, 2, 1))                       # (B, 1, N)
    h = _ref_conv_masked(h, conv_ws[0], conv_bs[0])
    t = h * bn_scales[0][None, :, None] + bn_shifts[0][None, :, None]
    t = _ref_conv_masked(t, conv_ws[1], conv_bs[1])
    t = _ref_conv_masked(lr(t), conv_ws[2], conv_bs[2])
    h = h + t
    t = h * bn_scales[1][None, :, None] + bn_shifts[1][None, :, None]
    t = _ref_conv_masked(t, conv_ws[3], conv_bs[3])
    t = _ref_conv_masked(lr(t), conv_ws[4], conv_bs[4])
    h = h + t
    o = _ref_conv_masked(h, conv_ws[5], conv_bs[5])       # (B, 2, N)
    mean = o[:, 0]
    logvar = jnp.clip(o[:, 1], -10.0, 10.0)
    return jnp.stack([mean, logvar], axis=-1)             # (B, N, 2)


# ---------------------------------------------------------------------------
if __name__ == "__main__":
    key = jax.random.PRNGKey(0)
    ks = jax.random.split(key, 9)

    conv_shapes = [(C, 1), (C, C), (C, C), (C, C), (C, C), (2, C)]
    conv_ws, conv_bs = [], []
    for i, (co, ci) in enumerate(conv_shapes):
        w, b = _conv_init(ks[i], co, ci, K)
        conv_ws.append(w)
        conv_bs.append(b)
    bn1s, bn1b = _bn_init(ks[6], C)
    bn2s, bn2b = _bn_init(ks[7], C)
    bn_scales = (bn1s, bn2s)
    bn_shifts = (bn1b, bn2b)

    w1_slab, w_slab, pvec, mask_row = pack_params(
        conv_ws, conv_bs, bn_scales, bn_shifts)
    x = jax.random.normal(ks[8], (B, N, 1), dtype=jnp.float32)

    out = jax.block_until_ready(cnn_forward(x, w1_slab, w_slab, pvec, mask_row))
    assert out.shape == (B, N, 2), out.shape
    assert bool(jnp.all(jnp.isfinite(out)))

    # Pure-JAX reference check (loose tolerance covers MXU precision).
    ref = ref_forward(x, conv_ws, conv_bs, bn_scales, bn_shifts)
    err = float(jnp.max(jnp.abs(out - ref)))
    assert err < 5e-2, f"max abs error vs reference: {err}"

    print("KERNEL_OK")
</pallas_src>

<mosaic_0001>
module attributes {stable_mosaic.version = 11 : i64} {
  func.func @cnn_kernel(%arg0: i32, %arg1: memref<8x640xf32, #tpu.memory_space<vmem>>, %arg2: memref<24x72xf32, #tpu.memory_space<vmem>>, %arg3: memref<5x24x216xf32, #tpu.memory_space<vmem>>, %arg4: memref<10x24x1xf32, #tpu.memory_space<vmem>>, %arg5: memref<1x640xf32, #tpu.memory_space<vmem>>, %arg6: memref<8x640xf32, #tpu.memory_space<vmem>>) attributes {dimension_semantics = [#tpu.dimension_semantics<parallel>], iteration_bounds = array<i64: 2>, scalar_prefetch = 0 : i64, scratch_operands = 0 : i64, tpu.core_type = #tpu.core_type<tc>, window_params = [{transform_indices = @transform_0, window_bounds = array<i64: 8, 640>}, {pipeline_mode = #tpu.pipeline_mode<synchronous>, transform_indices = @transform_1, window_bounds = array<i64: 24, 72>}, {pipeline_mode = #tpu.pipeline_mode<synchronous>, transform_indices = @transform_2, window_bounds = array<i64: 5, 24, 216>}, {pipeline_mode = #tpu.pipeline_mode<synchronous>, transform_indices = @transform_3, window_bounds = array<i64: 10, 24, 1>}, {transform_indices = @transform_4, window_bounds = array<i64: 1, 640>}, {transform_indices = @transform_5, window_bounds = array<i64: 8, 640>}]} {
    %c0 = arith.constant 0 : index
    %c0_0 = arith.constant 0 : index
    %0 = vector.load %arg5[%c0, %c0_0] : memref<1x640xf32, #tpu.memory_space<vmem>>, vector<1x640xf32>
    %1 = vector.shape_cast %0 : vector<1x640xf32> to vector<1x640xf32>
    %2 = vector.broadcast %1 : vector<1x640xf32> to vector<24x640xf32>
    %c0_1 = arith.constant 0 : index
    %c0_2 = arith.constant 0 : index
    %3 = vector.load %arg2[%c0_1, %c0_2] : memref<24x72xf32, #tpu.memory_space<vmem>>, vector<24x72xf32>
    %c0_3 = arith.constant 0 : index
    %c0_4 = arith.constant 0 : index
    %4 = vector.load %arg1[%c0_3, %c0_4] : memref<8x640xf32, #tpu.memory_space<vmem>>, vector<8x640xf32>
    %c9_i32 = arith.constant 9 : i32
    %5 = tpu.dynamic_rotate %4 by %c9_i32 dim 1 : vector<8x640xf32>, i32 -> vector<8x640xf32>
    %c8_i32 = arith.constant 8 : i32
    %6 = tpu.dynamic_rotate %4 by %c8_i32 dim 1 : vector<8x640xf32>, i32 -> vector<8x640xf32>
    %c7_i32 = arith.constant 7 : i32
    %7 = tpu.dynamic_rotate %4 by %c7_i32 dim 1 : vector<8x640xf32>, i32 -> vector<8x640xf32>
    %c6_i32 = arith.constant 6 : i32
    %8 = tpu.dynamic_rotate %4 by %c6_i32 dim 1 : vector<8x640xf32>, i32 -> vector<8x640xf32>
    %c5_i32 = arith.constant 5 : i32
    %9 = tpu.dynamic_rotate %4 by %c5_i32 dim 1 : vector<8x640xf32>, i32 -> vector<8x640xf32>
    %c4_i32 = arith.constant 4 : i32
    %10 = tpu.dynamic_rotate %4 by %c4_i32 dim 1 : vector<8x640xf32>, i32 -> vector<8x640xf32>
    %c3_i32 = arith.constant 3 : i32
    %11 = tpu.dynamic_rotate %4 by %c3_i32 dim 1 : vector<8x640xf32>, i32 -> vector<8x640xf32>
    %c2_i32 = arith.constant 2 : i32
    %12 = tpu.dynamic_rotate %4 by %c2_i32 dim 1 : vector<8x640xf32>, i32 -> vector<8x640xf32>
    %c1_i32 = arith.constant 1 : i32
    %13 = tpu.dynamic_rotate %4 by %c1_i32 dim 1 : vector<8x640xf32>, i32 -> vector<8x640xf32>
    %14 = tpu.concatenate %5, %6, %7, %8, %9, %10, %11, %12, %13 in 0 : vector<8x640xf32>, vector<8x640xf32>, vector<8x640xf32>, vector<8x640xf32>, vector<8x640xf32>, vector<8x640xf32>, vector<8x640xf32>, vector<8x640xf32>, vector<8x640xf32> -> vector<72x640xf32>
    %cst = arith.constant dense<0.000000e+00> : vector<24x640xf32>
    %15 = tpu.matmul %3, %14, %cst {dimension_numbers = #tpu.dot_dimension_numbers<[1], [0], [0], [1], [0, 0, 1, 1], [], []>} : vector<24x72xf32>, vector<72x640xf32>, vector<24x640xf32> -> vector<24x640xf32>
    %c0_5 = arith.constant 0 : index
    %c0_6 = arith.constant 0 : index
    %c0_7 = arith.constant 0 : index
    %16 = vector.load %arg4[%c0_5, %c0_6, %c0_7] : memref<10x24x1xf32, #tpu.memory_space<vmem>>, vector<1x24x1xf32>
    %17 = vector.shape_cast %16 : vector<1x24x1xf32> to vector<24x1xf32>
    %18 = vector.broadcast %17 : vector<24x1xf32> to vector<24x640xf32>
    %19 = arith.addf %15, %18 : vector<24x640xf32>
    %c6 = arith.constant 6 : index
    %c0_8 = arith.constant 0 : index
    %c0_9 = arith.constant 0 : index
    %20 = vector.load %arg4[%c6, %c0_8, %c0_9] : memref<10x24x1xf32, #tpu.memory_space<vmem>>, vector<1x24x1xf32>
    %21 = vector.shape_cast %20 : vector<1x24x1xf32> to vector<24x1xf32>
    %22 = vector.broadcast %21 : vector<24x1xf32> to vector<24x640xf32>
    %23 = arith.mulf %19, %22 : vector<24x640xf32>
    %c7 = arith.constant 7 : index
    %c0_10 = arith.constant 0 : index
    %c0_11 = arith.constant 0 : index
    %24 = vector.load %arg4[%c7, %c0_10, %c0_11] : memref<10x24x1xf32, #tpu.memory_space<vmem>>, vector<1x24x1xf32>
    %25 = vector.shape_cast %24 : vector<1x24x1xf32> to vector<24x1xf32>
    %26 = vector.broadcast %25 : vector<24x1xf32> to vector<24x640xf32>
    %27 = arith.addf %23, %26 : vector<24x640xf32>
    %c0_12 = arith.constant 0 : index
    %c0_13 = arith.constant 0 : index
    %c0_14 = arith.constant 0 : index
    %28 = vector.load %arg3[%c0_12, %c0_13, %c0_14] : memref<5x24x216xf32, #tpu.memory_space<vmem>>, vector<1x24x216xf32>
    %29 = vector.shape_cast %28 : vector<1x24x216xf32> to vector<24x216xf32>
    %30 = arith.mulf %27, %2 : vector<24x640xf32>
    %c9_i32_15 = arith.constant 9 : i32
    %31 = tpu.dynamic_rotate %30 by %c9_i32_15 dim 1 : vector<24x640xf32>, i32 -> vector<24x640xf32>
    %c8_i32_16 = arith.constant 8 : i32
    %32 = tpu.dynamic_rotate %30 by %c8_i32_16 dim 1 : vector<24x640xf32>, i32 -> vector<24x640xf32>
    %c7_i32_17 = arith.constant 7 : i32
    %33 = tpu.dynamic_rotate %30 by %c7_i32_17 dim 1 : vector<24x640xf32>, i32 -> vector<24x640xf32>
    %c6_i32_18 = arith.constant 6 : i32
    %34 = tpu.dynamic_rotate %30 by %c6_i32_18 dim 1 : vector<24x640xf32>, i32 -> vector<24x640xf32>
    %c5_i32_19 = arith.constant 5 : i32
    %35 = tpu.dynamic_rotate %30 by %c5_i32_19 dim 1 : vector<24x640xf32>, i32 -> vector<24x640xf32>
    %c4_i32_20 = arith.constant 4 : i32
    %36 = tpu.dynamic_rotate %30 by %c4_i32_20 dim 1 : vector<24x640xf32>, i32 -> vector<24x640xf32>
    %c3_i32_21 = arith.constant 3 : i32
    %37 = tpu.dynamic_rotate %30 by %c3_i32_21 dim 1 : vector<24x640xf32>, i32 -> vector<24x640xf32>
    %c2_i32_22 = arith.constant 2 : i32
    %38 = tpu.dynamic_rotate %30 by %c2_i32_22 dim 1 : vector<24x640xf32>, i32 -> vector<24x640xf32>
    %c1_i32_23 = arith.constant 1 : i32
    %39 = tpu.dynamic_rotate %30 by %c1_i32_23 dim 1 : vector<24x640xf32>, i32 -> vector<24x640xf32>
    %40 = tpu.concatenate %31, %32, %33, %34, %35, %36, %37, %38, %39 in 0 : vector<24x640xf32>, vector<24x640xf32>, vector<24x640xf32>, vector<24x640xf32>, vector<24x640xf32>, vector<24x640xf32>, vector<24x640xf32>, vector<24x640xf32>, vector<24x640xf32> -> vector<216x640xf32>
    %cst_24 = arith.constant dense<0.000000e+00> : vector<24x640xf32>
    %41 = tpu.matmul %29, %40, %cst_24 {dimension_numbers = #tpu.dot_dimension_numbers<[1], [0], [0], [1], [0, 0, 1, 1], [], []>} : vector<24x216xf32>, vector<216x640xf32>, vector<24x640xf32> -> vector<24x640xf32>
    %c1 = arith.constant 1 : index
    %c0_25 = arith.constant 0 : index
    %c0_26 = arith.constant 0 : index
    %42 = vector.load %arg4[%c1, %c0_25, %c0_26] : memref<10x24x1xf32, #tpu.memory_space<vmem>>, vector<1x24x1xf32>
    %43 = vector.shape_cast %42 : vector<1x24x1xf32> to vector<24x1xf32>
    %44 = vector.broadcast %43 : vector<24x1xf32> to vector<24x640xf32>
    %45 = arith.addf %41, %44 : vector<24x640xf32>
    %cst_27 = arith.constant 0.000000e+00 : f32
    %46 = vector.broadcast %cst_27 : f32 to vector<24x640xf32>
    %47 = arith.cmpf oge, %45, %46 : vector<24x640xf32>
    %cst_28 = arith.constant 0.00999999977 : f32
    %48 = vector.broadcast %cst_28 : f32 to vector<24x640xf32>
    %49 = arith.mulf %48, %45 : vector<24x640xf32>
    %50 = arith.select %47, %45, %49 : vector<24x640xi1>, vector<24x640xf32>
    %c1_29 = arith.constant 1 : index
    %c0_30 = arith.constant 0 : index
    %c0_31 = arith.constant 0 : index
    %51 = vector.load %arg3[%c1_29, %c0_30, %c0_31] : memref<5x24x216xf32, #tpu.memory_space<vmem>>, vector<1x24x216xf32>
    %52 = vector.shape_cast %51 : vector<1x24x216xf32> to vector<24x216xf32>
    %53 = arith.mulf %50, %2 : vector<24x640xf32>
    %c9_i32_32 = arith.constant 9 : i32
    %54 = tpu.dynamic_rotate %53 by %c9_i32_32 dim 1 : vector<24x640xf32>, i32 -> vector<24x640xf32>
    %c8_i32_33 = arith.constant 8 : i32
    %55 = tpu.dynamic_rotate %53 by %c8_i32_33 dim 1 : vector<24x640xf32>, i32 -> vector<24x640xf32>
    %c7_i32_34 = arith.constant 7 : i32
    %56 = tpu.dynamic_rotate %53 by %c7_i32_34 dim 1 : vector<24x640xf32>, i32 -> vector<24x640xf32>
    %c6_i32_35 = arith.constant 6 : i32
    %57 = tpu.dynamic_rotate %53 by %c6_i32_35 dim 1 : vector<24x640xf32>, i32 -> vector<24x640xf32>
    %c5_i32_36 = arith.constant 5 : i32
    %58 = tpu.dynamic_rotate %53 by %c5_i32_36 dim 1 : vector<24x640xf32>, i32 -> vector<24x640xf32>
    %c4_i32_37 = arith.constant 4 : i32
    %59 = tpu.dynamic_rotate %53 by %c4_i32_37 dim 1 : vector<24x640xf32>, i32 -> vector<24x640xf32>
    %c3_i32_38 = arith.constant 3 : i32
    %60 = tpu.dynamic_rotate %53 by %c3_i32_38 dim 1 : vector<24x640xf32>, i32 -> vector<24x640xf32>
    %c2_i32_39 = arith.constant 2 : i32
    %61 = tpu.dynamic_rotate %53 by %c2_i32_39 dim 1 : vector<24x640xf32>, i32 -> vector<24x640xf32>
    %c1_i32_40 = arith.constant 1 : i32
    %62 = tpu.dynamic_rotate %53 by %c1_i32_40 dim 1 : vector<24x640xf32>, i32 -> vector<24x640xf32>
    %63 = tpu.concatenate %54, %55, %56, %57, %58, %59, %60, %61, %62 in 0 : vector<24x640xf32>, vector<24x640xf32>, vector<24x640xf32>, vector<24x640xf32>, vector<24x640xf32>, vector<24x640xf32>, vector<24x640xf32>, vector<24x640xf32>, vector<24x640xf32> -> vector<216x640xf32>
    %cst_41 = arith.constant dense<0.000000e+00> : vector<24x640xf32>
    %64 = tpu.matmul %52, %63, %cst_41 {dimension_numbers = #tpu.dot_dimension_numbers<[1], [0], [0], [1], [0, 0, 1, 1], [], []>} : vector<24x216xf32>, vector<216x640xf32>, vector<24x640xf32> -> vector<24x640xf32>
    %c2 = arith.constant 2 : index
    %c0_42 = arith.constant 0 : index
    %c0_43 = arith.constant 0 : index
    %65 = vector.load %arg4[%c2, %c0_42, %c0_43] : memref<10x24x1xf32, #tpu.memory_space<vmem>>, vector<1x24x1xf32>
    %66 = vector.shape_cast %65 : vector<1x24x1xf32> to vector<24x1xf32>
    %67 = vector.broadcast %66 : vector<24x1xf32> to vector<24x640xf32>
    %68 = arith.addf %64, %67 : vector<24x640xf32>
    %69 = arith.addf %19, %68 : vector<24x640xf32>
    %c8 = arith.constant 8 : index
    %c0_44 = arith.constant 0 : index
    %c0_45 = arith.constant 0 : index
    %70 = vector.load %arg4[%c8, %c0_44, %c0_45] : memref<10x24x1xf32, #tpu.memory_space<vmem>>, vector<1x24x1xf32>
    %71 = vector.shape_cast %70 : vector<1x24x1xf32> to vector<24x1xf32>
    %72 = vector.broadcast %71 : vector<24x1xf32> to vector<24x640xf32>
    %73 = arith.mulf %69, %72 : vector<24x640xf32>
    %c9 = arith.constant 9 : index
    %c0_46 = arith.constant 0 : index
    %c0_47 = arith.constant 0 : index
    %74 = vector.load %arg4[%c9, %c0_46, %c0_47] : memref<10x24x1xf32, #tpu.memory_space<vmem>>, vector<1x24x1xf32>
    %75 = vector.shape_cast %74 : vector<1x24x1xf32> to vector<24x1xf32>
    %76 = vector.broadcast %75 : vector<24x1xf32> to vector<24x640xf32>
    %77 = arith.addf %73, %76 : vector<24x640xf32>
    %c2_48 = arith.constant 2 : index
    %c0_49 = arith.constant 0 : index
    %c0_50 = arith.constant 0 : index
    %78 = vector.load %arg3[%c2_48, %c0_49, %c0_50] : memref<5x24x216xf32, #tpu.memory_space<vmem>>, vector<1x24x216xf32>
    %79 = vector.shape_cast %78 : vector<1x24x216xf32> to vector<24x216xf32>
    %80 = arith.mulf %77, %2 : vector<24x640xf32>
    %c9_i32_51 = arith.constant 9 : i32
    %81 = tpu.dynamic_rotate %80 by %c9_i32_51 dim 1 : vector<24x640xf32>, i32 -> vector<24x640xf32>
    %c8_i32_52 = arith.constant 8 : i32
    %82 = tpu.dynamic_rotate %80 by %c8_i32_52 dim 1 : vector<24x640xf32>, i32 -> vector<24x640xf32>
    %c7_i32_53 = arith.constant 7 : i32
    %83 = tpu.dynamic_rotate %80 by %c7_i32_53 dim 1 : vector<24x640xf32>, i32 -> vector<24x640xf32>
    %c6_i32_54 = arith.constant 6 : i32
    %84 = tpu.dynamic_rotate %80 by %c6_i32_54 dim 1 : vector<24x640xf32>, i32 -> vector<24x640xf32>
    %c5_i32_55 = arith.constant 5 : i32
    %85 = tpu.dynamic_rotate %80 by %c5_i32_55 dim 1 : vector<24x640xf32>, i32 -> vector<24x640xf32>
    %c4_i32_56 = arith.constant 4 : i32
    %86 = tpu.dynamic_rotate %80 by %c4_i32_56 dim 1 : vector<24x640xf32>, i32 -> vector<24x640xf32>
    %c3_i32_57 = arith.constant 3 : i32
    %87 = tpu.dynamic_rotate %80 by %c3_i32_57 dim 1 : vector<24x640xf32>, i32 -> vector<24x640xf32>
    %c2_i32_58 = arith.constant 2 : i32
    %88 = tpu.dynamic_rotate %80 by %c2_i32_58 dim 1 : vector<24x640xf32>, i32 -> vector<24x640xf32>
    %c1_i32_59 = arith.constant 1 : i32
    %89 = tpu.dynamic_rotate %80 by %c1_i32_59 dim 1 : vector<24x640xf32>, i32 -> vector<24x640xf32>
    %90 = tpu.concatenate %81, %82, %83, %84, %85, %86, %87, %88, %89 in 0 : vector<24x640xf32>, vector<24x640xf32>, vector<24x640xf32>, vector<24x640xf32>, vector<24x640xf32>, vector<24x640xf32>, vector<24x640xf32>, vector<24x640xf32>, vector<24x640xf32> -> vector<216x640xf32>
    %cst_60 = arith.constant dense<0.000000e+00> : vector<24x640xf32>
    %91 = tpu.matmul %79, %90, %cst_60 {dimension_numbers = #tpu.dot_dimension_numbers<[1], [0], [0], [1], [0, 0, 1, 1], [], []>} : vector<24x216xf32>, vector<216x640xf32>, vector<24x640xf32> -> vector<24x640xf32>
    %c3 = arith.constant 3 : index
    %c0_61 = arith.constant 0 : index
    %c0_62 = arith.constant 0 : index
    %92 = vector.load %arg4[%c3, %c0_61, %c0_62] : memref<10x24x1xf32, #tpu.memory_space<vmem>>, vector<1x24x1xf32>
    %93 = vector.shape_cast %92 : vector<1x24x1xf32> to vector<24x1xf32>
    %94 = vector.broadcast %93 : vector<24x1xf32> to vector<24x640xf32>
    %95 = arith.addf %91, %94 : vector<24x640xf32>
    %cst_63 = arith.constant 0.000000e+00 : f32
    %96 = vector.broadcast %cst_63 : f32 to vector<24x640xf32>
    %97 = arith.cmpf oge, %95, %96 : vector<24x640xf32>
    %cst_64 = arith.constant 0.00999999977 : f32
    %98 = vector.broadcast %cst_64 : f32 to vector<24x640xf32>
    %99 = arith.mulf %98, %95 : vector<24x640xf32>
    %100 = arith.select %97, %95, %99 : vector<24x640xi1>, vector<24x640xf32>
    %c3_65 = arith.constant 3 : index
    %c0_66 = arith.constant 0 : index
    %c0_67 = arith.constant 0 : index
    %101 = vector.load %arg3[%c3_65, %c0_66, %c0_67] : memref<5x24x216xf32, #tpu.memory_space<vmem>>, vector<1x24x216xf32>
    %102 = vector.shape_cast %101 : vector<1x24x216xf32> to vector<24x216xf32>
    %103 = arith.mulf %100, %2 : vector<24x640xf32>
    %c9_i32_68 = arith.constant 9 : i32
    %104 = tpu.dynamic_rotate %103 by %c9_i32_68 dim 1 : vector<24x640xf32>, i32 -> vector<24x640xf32>
    %c8_i32_69 = arith.constant 8 : i32
    %105 = tpu.dynamic_rotate %103 by %c8_i32_69 dim 1 : vector<24x640xf32>, i32 -> vector<24x640xf32>
    %c7_i32_70 = arith.constant 7 : i32
    %106 = tpu.dynamic_rotate %103 by %c7_i32_70 dim 1 : vector<24x640xf32>, i32 -> vector<24x640xf32>
    %c6_i32_71 = arith.constant 6 : i32
    %107 = tpu.dynamic_rotate %103 by %c6_i32_71 dim 1 : vector<24x640xf32>, i32 -> vector<24x640xf32>
    %c5_i32_72 = arith.constant 5 : i32
    %108 = tpu.dynamic_rotate %103 by %c5_i32_72 dim 1 : vector<24x640xf32>, i32 -> vector<24x640xf32>
    %c4_i32_73 = arith.constant 4 : i32
    %109 = tpu.dynamic_rotate %103 by %c4_i32_73 dim 1 : vector<24x640xf32>, i32 -> vector<24x640xf32>
    %c3_i32_74 = arith.constant 3 : i32
    %110 = tpu.dynamic_rotate %103 by %c3_i32_74 dim 1 : vector<24x640xf32>, i32 -> vector<24x640xf32>
    %c2_i32_75 = arith.constant 2 : i32
    %111 = tpu.dynamic_rotate %103 by %c2_i32_75 dim 1 : vector<24x640xf32>, i32 -> vector<24x640xf32>
    %c1_i32_76 = arith.constant 1 : i32
    %112 = tpu.dynamic_rotate %103 by %c1_i32_76 dim 1 : vector<24x640xf32>, i32 -> vector<24x640xf32>
    %113 = tpu.concatenate %104, %105, %106, %107, %108, %109, %110, %111, %112 in 0 : vector<24x640xf32>, vector<24x640xf32>, vector<24x640xf32>, vector<24x640xf32>, vector<24x640xf32>, vector<24x640xf32>, vector<24x640xf32>, vector<24x640xf32>, vector<24x640xf32> -> vector<216x640xf32>
    %cst_77 = arith.constant dense<0.000000e+00> : vector<24x640xf32>
    %114 = tpu.matmul %102, %113, %cst_77 {dimension_numbers = #tpu.dot_dimension_numbers<[1], [0], [0], [1], [0, 0, 1, 1], [], []>} : vector<24x216xf32>, vector<216x640xf32>, vector<24x640xf32> -> vector<24x640xf32>
    %c4 = arith.constant 4 : index
    %c0_78 = arith.constant 0 : index
    %c0_79 = arith.constant 0 : index
    %115 = vector.load %arg4[%c4, %c0_78, %c0_79] : memref<10x24x1xf32, #tpu.memory_space<vmem>>, vector<1x24x1xf32>
    %116 = vector.shape_cast %115 : vector<1x24x1xf32> to vector<24x1xf32>
    %117 = vector.broadcast %116 : vector<24x1xf32> to vector<24x640xf32>
    %118 = arith.addf %114, %117 : vector<24x640xf32>
    %119 = arith.addf %69, %118 : vector<24x640xf32>
    %c4_80 = arith.constant 4 : index
    %c0_81 = arith.constant 0 : index
    %c0_82 = arith.constant 0 : index
    %120 = vector.load %arg3[%c4_80, %c0_81, %c0_82] : memref<5x24x216xf32, #tpu.memory_space<vmem>>, vector<1x24x216xf32>
    %121 = vector.shape_cast %120 : vector<1x24x216xf32> to vector<24x216xf32>
    %122 = vector.extract_strided_slice %121 {offsets = [0, 0], sizes = [8, 216], strides = [1, 1]} : vector<24x216xf32> to vector<8x216xf32>
    %123 = arith.mulf %119, %2 : vector<24x640xf32>
    %c9_i32_83 = arith.constant 9 : i32
    %124 = tpu.dynamic_rotate %123 by %c9_i32_83 dim 1 : vector<24x640xf32>, i32 -> vector<24x640xf32>
    %c8_i32_84 = arith.constant 8 : i32
    %125 = tpu.dynamic_rotate %123 by %c8_i32_84 dim 1 : vector<24x640xf32>, i32 -> vector<24x640xf32>
    %c7_i32_85 = arith.constant 7 : i32
    %126 = tpu.dynamic_rotate %123 by %c7_i32_85 dim 1 : vector<24x640xf32>, i32 -> vector<24x640xf32>
    %c6_i32_86 = arith.constant 6 : i32
    %127 = tpu.dynamic_rotate %123 by %c6_i32_86 dim 1 : vector<24x640xf32>, i32 -> vector<24x640xf32>
    %c5_i32_87 = arith.constant 5 : i32
    %128 = tpu.dynamic_rotate %123 by %c5_i32_87 dim 1 : vector<24x640xf32>, i32 -> vector<24x640xf32>
    %c4_i32_88 = arith.constant 4 : i32
    %129 = tpu.dynamic_rotate %123 by %c4_i32_88 dim 1 : vector<24x640xf32>, i32 -> vector<24x640xf32>
    %c3_i32_89 = arith.constant 3 : i32
    %130 = tpu.dynamic_rotate %123 by %c3_i32_89 dim 1 : vector<24x640xf32>, i32 -> vector<24x640xf32>
    %c2_i32_90 = arith.constant 2 : i32
    %131 = tpu.dynamic_rotate %123 by %c2_i32_90 dim 1 : vector<24x640xf32>, i32 -> vector<24x640xf32>
    %c1_i32_91 = arith.constant 1 : i32
    %132 = tpu.dynamic_rotate %123 by %c1_i32_91 dim 1 : vector<24x640xf32>, i32 -> vector<24x640xf32>
    %133 = tpu.concatenate %124, %125, %126, %127, %128, %129, %130, %131, %132 in 0 : vector<24x640xf32>, vector<24x640xf32>, vector<24x640xf32>, vector<24x640xf32>, vector<24x640xf32>, vector<24x640xf32>, vector<24x640xf32>, vector<24x640xf32>, vector<24x640xf32> -> vector<216x640xf32>
    %cst_92 = arith.constant dense<0.000000e+00> : vector<8x640xf32>
    %134 = tpu.matmul %122, %133, %cst_92 {dimension_numbers = #tpu.dot_dimension_numbers<[1], [0], [0], [1], [0, 0, 1, 1], [], []>} : vector<8x216xf32>, vector<216x640xf32>, vector<8x640xf32> -> vector<8x640xf32>
    %c5 = arith.constant 5 : index
    %c0_93 = arith.constant 0 : index
    %c0_94 = arith.constant 0 : index
    %135 = vector.load %arg4[%c5, %c0_93, %c0_94] : memref<10x24x1xf32, #tpu.memory_space<vmem>>, vector<1x24x1xf32>
    %136 = vector.shape_cast %135 : vector<1x24x1xf32> to vector<24x1xf32>
    %137 = vector.extract_strided_slice %136 {offsets = [0, 0], sizes = [8, 1], strides = [1, 1]} : vector<24x1xf32> to vector<8x1xf32>
    %138 = vector.broadcast %137 : vector<8x1xf32> to vector<8x640xf32>
    %139 = arith.addf %134, %138 : vector<8x640xf32>
    %140 = tpu.iota {dimensions = array<i32: 0>} : vector<8x640xi32>
    %c0_i32 = arith.constant 0 : i32
    %141 = vector.broadcast %c0_i32 : i32 to vector<8x640xi32>
    %142 = arith.cmpi eq, %140, %141 : vector<8x640xi32>
    %cst_95 = arith.constant -1.000000e+01 : f32
    %cst_96 = arith.constant 1.000000e+01 : f32
    %143 = vector.broadcast %cst_95 : f32 to vector<8x640xf32>
    %144 = arith.maximumf %143, %139 : vector<8x640xf32>
    %145 = vector.broadcast %cst_96 : f32 to vector<8x640xf32>
    %146 = arith.minimumf %145, %144 : vector<8x640xf32>
    %147 = arith.select %142, %139, %146 : vector<8x640xi1>, vector<8x640xf32>
    %c0_97 = arith.constant 0 : index
    %c0_98 = arith.constant 0 : index
    %148 = vector.load %arg6[%c0_97, %c0_98] : memref<8x640xf32, #tpu.memory_space<vmem>>, vector<8x640xf32>
    tpu.vector_store %arg6[%c0_97, %c0_98], %147 {strides = array<i32>} : memref<8x640xf32, #tpu.memory_space<vmem>>, vector<8x640xf32>,
    return
  }
  func.func @transform_0(%arg0: i32) -> (i32, i32) {
    %c0_i32 = arith.constant 0 : i32
    %c0_i32_0 = arith.constant 0 : i32
    return %c0_i32, %arg0 : i32, i32
  }
  func.func @transform_1(%arg0: i32) -> (i32, i32) {
    %c0_i32 = arith.constant 0 : i32
    %c0_i32_0 = arith.constant 0 : i32
    %c0_i32_1 = arith.constant 0 : i32
    return %c0_i32, %c0_i32_0 : i32, i32
  }
  func.func @transform_2(%arg0: i32) -> (i32, i32, i32) {
    %c0_i32 = arith.constant 0 : i32
    %c0_i32_0 = arith.constant 0 : i32
    %c0_i32_1 = arith.constant 0 : i32
    %c0_i32_2 = arith.constant 0 : i32
    return %c0_i32, %c0_i32_0, %c0_i32_1 : i32, i32, i32
  }
  func.func @transform_3(%arg0: i32) -> (i32, i32, i32) {
    %c0_i32 = arith.constant 0 : i32
    %c0_i32_0 = arith.constant 0 : i32
    %c0_i32_1 = arith.constant 0 : i32
    %c0_i32_2 = arith.constant 0 : i32
    return %c0_i32, %c0_i32_0, %c0_i32_1 : i32, i32, i32
  }
  func.func @transform_4(%arg0: i32) -> (i32, i32) {
    %c0_i32 = arith.constant 0 : i32
    %c0_i32_0 = arith.constant 0 : i32
    return %c0_i32, %arg0 : i32, i32
  }
  func.func @transform_5(%arg0: i32) -> (i32, i32) {
    %c0_i32 = arith.constant 0 : i32
    %c0_i32_0 = arith.constant 0 : i32
    return %c0_i32, %arg0 : i32, i32
  }
}

</mosaic_0001>

<llo_original>
// kernel: cnn_forward.1
$region0: #{cnn_forward.1}
  #allocation0 [shape = 'u32[]', space=smem, size = 0x4, offset = 0x4, fixed_abs, tag = 'smem constant byte address 0x4 - core index']
  #allocation1 [shape = 'u32[144,128]{1,0:T(1,128)}', space=vmem, size = 0x12000, scoped, tag = 'internal scratch']
  %s0 = inlined_call_operand.vmem [shape: f32[8,1280], index: 0, kind: input, shape index: {}]
  %s1 = inlined_call_operand.vmem [shape: f32[24,72], index: 1, kind: input, shape index: {}]
  %s2 = inlined_call_operand.vmem [shape: f32[5,24,216], index: 2, kind: input, shape index: {}]
  %s3 = inlined_call_operand.vmem [shape: f32[10,24,1], index: 3, kind: input, shape index: {}]
  %s4 = inlined_call_operand.vmem [shape: f32[1,1280], index: 4, kind: input, shape index: {}]
  %s5 = inlined_call_operand.vmem [shape: f32[8,1280], index: 5, kind: output, shape index: {}]
  %s6 = sld [smem:[#allocation0]]
  $region53: #{cnn_forward.1} parent=0
    _
  %s8 = ssub.s32 1, %s6
  %s9 = scalar_select 0, %s8, %s6
  loop: start=0, step=1, limit=4
  $region2: #{cnn_forward.1} parent=0 // loop_pre_header
    _
  $region3: #{cnn_forward.1} parent=0 // loop_header
    %s11 = sphi 0, %s15
    %p12 = scmp.ge.s32.totalorder %s11, 4
    %s21 = sphi 0, %s23
    %s24 = sphi 0, %s21
    %s25 = sphi 0, %s24
    %s41 = sphi 0, %s25
    %s45 = sphi 0, %s45
    %s47 = sphi 0, %s45
    %s48 = sphi 0, %s47
    %s62 = sphi 0, %s48
    %s66 = sphi 0, %s66
    %s68 = sphi 0, %s66
    %s69 = sphi 0, %s68
    %s83 = sphi 0, %s69
    %s87 = sphi 0, %s87
    %s89 = sphi 0, %s87
    %s90 = sphi 0, %s89
    %s104 = sphi 0, %s90
    %s110 = sphi 0, %s112
    %s113 = sphi 0, %s110
    %s114 = sphi 0, %s113
    %s130 = sphi 0, %s114
    %s136 = sphi 0, %s138
    %s139 = sphi 0, %s136
    %s140 = sphi 0, %s139
    %s156 = sphi 0, %s140
  $region4: #{cnn_forward.1} parent=0 // loop_header_branch
    %14 = sbr.rel (%p12) target = $region8
  $region5: #{cnn_forward.1} parent=0 // loop_body
    %s16 = ssub.s32 %s11, 1
    %s17 = ssub.s32 %s11, 2
    %s18 = sadd.s32 %s11, 1
    %s19 = ssub.s32 %s11, %s18
    %p20 = scmp.eq.s32.totalorder %s19, 0
    %s22 = sadd.s32 %s21, 1
    %s23 = scalar_select %p20, %s21, %s22
    %p26 = pneg %p20
    %p27 = scmp.eq.s32.totalorder %s11, 1
    %p28 = por %p26, %p27
    %p29 = scmp.ne.s32.totalorder %s21, %s24
    %p30 = scmp.eq.s32.totalorder %s11, 0
    %p31 = por %p29, %p30
    %p32 = scmp.ne.s32.totalorder %s21, %s24
    %p33 = scmp.eq.s32.totalorder %s16, 1
    %p34 = por %p32, %p33
    %p35 = scmp.ne.s32.totalorder %s24, %s25
    %p36 = scmp.eq.s32.totalorder %s16, 0
    %p37 = por %p35, %p36
    %p38 = scmp.ne.s32.totalorder %s24, %s25
    %p39 = scmp.eq.s32.totalorder %s17, 1
    %p40 = por %p38, %p39
    %p42 = scmp.ne.s32.totalorder %s25, %s41
    %p43 = scmp.eq.s32.totalorder %s17, 0
    %p44 = por %p42, %p43
    %s46 = sadd.s32 %s45, 1
    %p49 = scmp.eq.s32.totalorder %s11, 1
    %p50 = scmp.ne.s32.totalorder %s45, %s47
    %p51 = scmp.eq.s32.totalorder %s11, 0
    %p52 = por %p50, %p51
    %p53 = scmp.ne.s32.totalorder %s45, %s47
    %p54 = scmp.eq.s32.totalorder %s16, 1
    %p55 = por %p53, %p54
    %p56 = scmp.ne.s32.totalorder %s47, %s48
    %p57 = scmp.eq.s32.totalorder %s16, 0
    %p58 = por %p56, %p57
    %p59 = scmp.ne.s32.totalorder %s47, %s48
    %p60 = scmp.eq.s32.totalorder %s17, 1
    %p61 = por %p59, %p60
    %p63 = scmp.ne.s32.totalorder %s48, %s62
    %p64 = scmp.eq.s32.totalorder %s17, 0
    %p65 = por %p63, %p64
    %s67 = sadd.s32 %s66, 1
    %p70 = scmp.eq.s32.totalorder %s11, 1
    %p71 = scmp.ne.s32.totalorder %s66, %s68
    %p72 = scmp.eq.s32.totalorder %s11, 0
    %p73 = por %p71, %p72
    %p74 = scmp.ne.s32.totalorder %s66, %s68
    %p75 = scmp.eq.s32.totalorder %s16, 1
    %p76 = por %p74, %p75
    %p77 = scmp.ne.s32.totalorder %s68, %s69
    %p78 = scmp.eq.s32.totalorder %s16, 0
    %p79 = por %p77, %p78
    %p80 = scmp.ne.s32.totalorder %s68, %s69
    %p81 = scmp.eq.s32.totalorder %s17, 1
    %p82 = por %p80, %p81
    %p84 = scmp.ne.s32.totalorder %s69, %s83
    %p85 = scmp.eq.s32.totalorder %s17, 0
    %p86 = por %p84, %p85
    %s88 = sadd.s32 %s87, 1
    %p91 = scmp.eq.s32.totalorder %s11, 1
    %p92 = scmp.ne.s32.totalorder %s87, %s89
    %p93 = scmp.eq.s32.totalorder %s11, 0
    %p94 = por %p92, %p93
    %p95 = scmp.ne.s32.totalorder %s87, %s89
    %p96 = scmp.eq.s32.totalorder %s16, 1
    %p97 = por %p95, %p96
    %p98 = scmp.ne.s32.totalorder %s89, %s90
    %p99 = scmp.eq.s32.totalorder %s16, 0
    %p100 = por %p98, %p99
    %p101 = scmp.ne.s32.totalorder %s89, %s90
    %p102 = scmp.eq.s32.totalorder %s17, 1
    %p103 = por %p101, %p102
    %p105 = scmp.ne.s32.totalorder %s90, %s104
    %p106 = scmp.eq.s32.totalorder %s17, 0
    %p107 = por %p105, %p106
    %s108 = ssub.s32 %s11, %s18
    %p109 = scmp.eq.s32.totalorder %s108, 0
    %s111 = sadd.s32 %s110, 1
    %s112 = scalar_select %p109, %s110, %s111
    %p115 = pneg %p109
    %p116 = scmp.eq.s32.totalorder %s11, 1
    %p117 = por %p115, %p116
    %p118 = scmp.ne.s32.totalorder %s110, %s113
    %p119 = scmp.eq.s32.totalorder %s11, 0
    %p120 = por %p118, %p119
    %p121 = scmp.ne.s32.totalorder %s110, %s113
    %p122 = scmp.eq.s32.totalorder %s16, 1
    %p123 = por %p121, %p122
    %p124 = scmp.ne.s32.totalorder %s113, %s114
    %p125 = scmp.eq.s32.totalorder %s16, 0
    %p126 = por %p124, %p125
    %p127 = scmp.ne.s32.totalorder %s113, %s114
    %p128 = scmp.eq.s32.totalorder %s17, 1
    %p129 = por %p127, %p128
    %p131 = scmp.ne.s32.totalorder %s114, %s130
    %p132 = scmp.eq.s32.totalorder %s17, 0
    %p133 = por %p131, %p132
    %s134 = ssub.s32 %s11, %s18
    %p135 = scmp.eq.s32.totalorder %s134, 0
    %s137 = sadd.s32 %s136, 1
    %s138 = scalar_select %p135, %s136, %s137
    %p141 = pneg %p135
    %p142 = scmp.eq.s32.totalorder %s11, 1
    %p143 = por %p141, %p142
    %p144 = scmp.ne.s32.totalorder %s136, %s139
    %p145 = scmp.eq.s32.totalorder %s11, 0
    %p146 = por %p144, %p145
    %p147 = scmp.ne.s32.totalorder %s136, %s139
    %p148 = scmp.eq.s32.totalorder %s16, 1
    %p149 = por %p147, %p148
    %p150 = scmp.ne.s32.totalorder %s139, %s140
    %p151 = scmp.eq.s32.totalorder %s16, 0
    %p152 = por %p150, %p151
    %p153 = scmp.ne.s32.totalorder %s139, %s140
    %p154 = scmp.eq.s32.totalorder %s17, 1
    %p155 = por %p153, %p154
    %p157 = scmp.ne.s32.totalorder %s140, %s156
    %p158 = scmp.eq.s32.totalorder %s17, 0
    %p159 = por %p157, %p158
    %p160 = scmp.le.s32.totalorder 1, %s11
    %p161 = scmp.lt.s32.totalorder %s11, 3
    %p162 = pnand %p160, %p161
    %p163 = pneg %p162
    // Predicated region
    $region9: #{cnn_forward.1} parent=5 // pred_check
      _
    $region10: #{cnn_forward.1} parent=5 // pred_check_branch
      %165 = sbr.rel (%p162) target = $region12
    $region11: #{cnn_forward.1} parent=5 // pred_region
      %s166 = ssub.s32 %s11, 1
      // Predicated region
      $region13: #{cnn_forward.1} parent=11 // pred_check
        %p167 = pneg %p58
      $region14: #{cnn_forward.1} parent=11 // pred_check_branch
        %169 = sbr.rel (%p167) target = $region16
      $region15: #{cnn_forward.1} parent=11 // pred_region
        _
      $region16: #{cnn_forward.1} parent=11 // pred_fallthru
        _
      // Predicated region
      $region17: #{cnn_forward.1} parent=11 // pred_check
        %p170 = pneg %p79
      $region18: #{cnn_forward.1} parent=11 // pred_check_branch
        %172 = sbr.rel (%p170) target = $region20
      $region19: #{cnn_forward.1} parent=11 // pred_region
        _
      $region20: #{cnn_forward.1} parent=11 // pred_fallthru
        _
      // Predicated region
      $region21: #{cnn_forward.1} parent=11 // pred_check
        %p173 = pneg %p100
      $region22: #{cnn_forward.1} parent=11 // pred_check_branch
        %175 = sbr.rel (%p173) target = $region24
      $region23: #{cnn_forward.1} parent=11 // pred_region
        _
      $region24: #{cnn_forward.1} parent=11 // pred_fallthru
        _
    $region12: #{cnn_forward.1} parent=5 // pred_fallthru
      _
    %p176 = scmp.lt.s32.totalorder %s11, 2
    // Predicated region
    $region25: #{cnn_forward.1} parent=5 // pred_check
      %p177 = pneg %p176
    $region26: #{cnn_forward.1} parent=5 // pred_check_branch
      %179 = sbr.rel (%p177) target = $region28
    $region27: #{cnn_forward.1} parent=5 // pred_region
      // Predicated region
      $region29: #{cnn_forward.1} parent=27 // pred_check
        %p180 = pneg %p31
      $region30: #{cnn_forward.1} parent=27 // pred_check_branch
        %182 = sbr.rel (%p180) target = $region32
      $region31: #{cnn_forward.1} parent=27 // pred_region
        %s183 = smul.u32 5, %s11
        %p184 = scmp.lt.s32.totalorder %s183, 9
        %s185 = scalar_select %p184, %s183, 9
        %s186 = smul.addr %s185, 8
        %s187 = scalar_lea.vmem %s0, %s186
        %s188 = smul.u32 5, %s11
      $region32: #{cnn_forward.1} parent=27 // pred_fallthru
        _
      // Predicated region
      $region33: #{cnn_forward.1} parent=27 // pred_check
        %p189 = pneg %p120
      $region34: #{cnn_forward.1} parent=27 // pred_check_branch
        %191 = sbr.rel (%p189) target = $region36
      $region35: #{cnn_forward.1} parent=27 // pred_region
        %s192 = smul.u32 5, %s11
        %p193 = scmp.lt.s32.totalorder %s192, 9
        %s194 = scalar_select %p193, %s192, 9
        %s195 = scalar_lea.vmem %s4, %s194
        %s196 = smul.u32 5, %s11
      $region36: #{cnn_forward.1} parent=27 // pred_fallthru
        _
    $region28: #{cnn_forward.1} parent=5 // pred_fallthru
      _
    %p197 = scmp.le.s32.totalorder 1, %s11
    %p198 = scmp.lt.s32.totalorder %s11, 3
    %p199 = pnand %p197, %p198
    %p200 = pneg %p199
    // Predicated region
    $region37: #{cnn_forward.1} parent=5 // pred_check
      _
    $region38: #{cnn_forward.1} parent=5 // pred_check_branch
      %202 = sbr.rel (%p199) target = $region40
    $region39: #{cnn_forward.1} parent=5 // pred_region
      %s203 = ssub.s32 %s11, 1
      %s204 = smul.u32 5, %s16
      %p205 = scmp.lt.s32.totalorder %s204, 9
      %s206 = scalar_select %p205, %s204, 9
      %s207 = smul.addr %s206, 8
      %s208 = scalar_lea.vmem %s0, %s207
      %p209 = pneg %p37
      %p210 = pneg %p34
      %p211 = pneg %p58
      %p212 = pneg %p55
      %p213 = pneg %p79
      %p214 = pneg %p76
      %p215 = pneg %p100
      %p216 = pneg %p97
      %s217 = smul.u32 5, %s16
      %p218 = scmp.lt.s32.totalorder %s217, 9
      %s219 = scalar_select %p218, %s217, 9
      %s220 = scalar_lea.vmem %s4, %s219
      %p221 = pneg %p126
      %p222 = pneg %p123
      %p223 = pneg %p152
      %p224 = pneg %p149
      %s225 = smul.u32 5, %s16
      %p226 = scmp.lt.s32.totalorder %s225, 9
      %s227 = scalar_select %p226, %s225, 9
      %s228 = smul.addr %s227, 8
      %s229 = scalar_lea.vmem %s5, %s228
      %s230 = smul.u32 5, %s16
      %p231 = scmp.lt.s32.totalorder %s230, 9
      %s232 = scalar_select %p231, %s230, 9
      %s233 = smul.addr %s232, 8
      %s234 = scalar_lea.vmem %s0, %s233
      %s235 = smul.u32 5, %s16
      %s236 = smul.u32 5, %s16
      %p237 = scmp.lt.s32.totalorder %s236, 9
      %s238 = scalar_select %p237, %s236, 9
      %s239 = scalar_lea.vmem %s4, %s238
      %s240 = smul.u32 5, %s16
      %s241 = smul.u32 5, %s16
      %p242 = scmp.lt.s32.totalorder %s241, 9
      %s243 = scalar_select %p242, %s241, 9
      %s244 = smul.addr %s243, 8
      %s245 = scalar_lea.vmem %s5, %s244
      %s246 = smul.u32 5, %s16
      %v247 = vld [vmem:[%s239] sm:$0x1f]
      %v249 = vlaneseq
      %v250 = vshrl.u32 %v249, 7
      %v251 = vsub.s32 0, %v250
      %v252 = vrot.slane %v247, %v251
      %v253 = vlaneseq
      %v254 = vshrl.u32 %v253, 7
      %v255 = vsub.s32 1, %v254
      %v256 = vrot.slane %v247, %v255
      %v257 = vlaneseq
      %v258 = vshrl.u32 %v257, 7
      %v259 = vsub.s32 2, %v258
      %v260 = vrot.slane %v247, %v259
      %v261 = vlaneseq
      %v262 = vshrl.u32 %v261, 7
      %v263 = vsub.s32 3, %v262
      %v264 = vrot.slane %v247, %v263
      %v265 = vlaneseq
      %v266 = vshrl.u32 %v265, 7
      %v267 = vsub.s32 4, %v266
      %v268 = vrot.slane %v247, %v267
      %v274 = vld [vmem:[%s1] sm:$0xff]
      %v275 = vld [vmem:[%s1 + $0x8] sm:$0xff]
      %v276 = vld [vmem:[%s1 + $0x10] sm:$0xff]
      %v277 = vld [vmem:[%s234] sm:$0xff]
      %v278 = vld [vmem:[%s234 + $0x8] sm:$0xff]
      %v279 = vld [vmem:[%s234 + $0x10] sm:$0xff]
      %v280 = vld [vmem:[%s234 + $0x18] sm:$0xff]
      %v281 = vld [vmem:[%s234 + $0x20] sm:$0xff]
      %282 = vrot.lane.b32.xlu0 %v277, 9
      %v283 = vpop.permute.xlu0 %282
      %284 = vrot.lane.b32.xlu0 %v278, 9
      %v285 = vpop.permute.xlu0 %284
      %286 = vrot.lane.b32.xlu0 %v279, 9
      %v287 = vpop.permute.xlu0 %286
      %288 = vrot.lane.b32.xlu0 %v280, 9
      %v289 = vpop.permute.xlu0 %288
      %290 = vrot.lane.b32.xlu0 %v281, 9
      %v291 = vpop.permute.xlu0 %290
      %v292 = vlaneseq
      %v293 = vand.u32 %v292, 127
      %vm294 = vcmp.lt.s32.totalorder %v293, 9
      %v295 = vsel %vm294, %v289, %v291
      %v296 = vsel %vm294, %v287, %v289
      %v297 = vsel %vm294, %v285, %v287
      %v298 = vsel %vm294, %v283, %v285
      %v299 = vsel %vm294, %v291, %v283
      %300 = vrot.lane.b32.xlu0 %v277, 8
      %v301 = vpop.permute.xlu0 %300
      %302 = vrot.lane.b32.xlu0 %v278, 8
      %v303 = vpop.permute.xlu0 %302
      %304 = vrot.lane.b32.xlu0 %v279, 8
      %v305 = vpop.permute.xlu0 %304
      %306 = vrot.lane.b32.xlu0 %v280, 8
      %v307 = vpop.permute.xlu0 %306
      %308 = vrot.lane.b32.xlu0 %v281, 8
      %v309 = vpop.permute.xlu0 %308
      %vm310 = vcmp.lt.s32.totalorder %v293, 8
      %v311 = vsel %vm310, %v307, %v309
      %v312 = vsel %vm310, %v305, %v307
      %v313 = vsel %vm310, %v303, %v305
      %v314 = vsel %vm310, %v301, %v303
      %v315 = vsel %vm310, %v309, %v301
      %316 = vrot.lane.b32.xlu0 %v277, 7
      %v317 = vpop.permute.xlu0 %316
      %318 = vrot.lane.b32.xlu0 %v278, 7
      %v319 = vpop.permute.xlu0 %318
      %320 = vrot.lane.b32.xlu0 %v279, 7
      %v321 = vpop.permute.xlu0 %320
      %322 = vrot.lane.b32.xlu0 %v280, 7
      %v323 = vpop.permute.xlu0 %322
      %324 = vrot.lane.b32.xlu0 %v281, 7
      %v325 = vpop.permute.xlu0 %324
      %vm326 = vcmp.lt.s32.totalorder %v293, 7
      %v327 = vsel %vm326, %v323, %v325
      %v328 = vsel %vm326, %v321, %v323
      %v329 = vsel %vm326, %v319, %v321
      %v330 = vsel %vm326, %v317, %v319
      %v331 = vsel %vm326, %v325, %v317
      %332 = vrot.lane.b32.xlu0 %v277, 6
      %v333 = vpop.permute.xlu0 %332
      %334 = vrot.lane.b32.xlu0 %v278, 6
      %v335 = vpop.permute.xlu0 %334
      %336 = vrot.lane.b32.xlu0 %v279, 6
      %v337 = vpop.permute.xlu0 %336
      %338 = vrot.lane.b32.xlu0 %v280, 6
      %v339 = vpop.permute.xlu0 %338
      %340 = vrot.lane.b32.xlu0 %v281, 6
      %v341 = vpop.permute.xlu0 %340
      %vm342 = vcmp.lt.s32.totalorder %v293, 6
      %v343 = vsel %vm342, %v339, %v341
      %v344 = vsel %vm342, %v337, %v339
      %v345 = vsel %vm342, %v335, %v337
      %v346 = vsel %vm342, %v333, %v335
      %v347 = vsel %vm342, %v341, %v333
      %348 = vrot.lane.b32.xlu0 %v277, 5
      %v349 = vpop.permute.xlu0 %348
      %350 = vrot.lane.b32.xlu0 %v278, 5
      %v351 = vpop.permute.xlu0 %350
      %352 = vrot.lane.b32.xlu0 %v279, 5
      %v353 = vpop.permute.xlu0 %352
      %354 = vrot.lane.b32.xlu0 %v280, 5
      %v355 = vpop.permute.xlu0 %354
      %356 = vrot.lane.b32.xlu0 %v281, 5
      %v357 = vpop.permute.xlu0 %356
      %vm358 = vcmp.lt.s32.totalorder %v293, 5
      %v359 = vsel %vm358, %v355, %v357
      %v360 = vsel %vm358, %v353, %v355
      %v361 = vsel %vm358, %v351, %v353
      %v362 = vsel %vm358, %v349, %v351
      %v363 = vsel %vm358, %v357, %v349
      %364 = vrot.lane.b32.xlu0 %v277, 4
      %v365 = vpop.permute.xlu0 %364
      %366 = vrot.lane.b32.xlu0 %v278, 4
      %v367 = vpop.permute.xlu0 %366
      %368 = vrot.lane.b32.xlu0 %v279, 4
      %v369 = vpop.permute.xlu0 %368
      %370 = vrot.lane.b32.xlu0 %v280, 4
      %v371 = vpop.permute.xlu0 %370
      %372 = vrot.lane.b32.xlu0 %v281, 4
      %v373 = vpop.permute.xlu0 %372
      %vm374 = vcmp.lt.s32.totalorder %v293, 4
      %v375 = vsel %vm374, %v371, %v373
      %v376 = vsel %vm374, %v369, %v371
      %v377 = vsel %vm374, %v367, %v369
      %v378 = vsel %vm374, %v365, %v367
      %v379 = vsel %vm374, %v373, %v365
      %380 = vrot.lane.b32.xlu0 %v277, 3
      %v381 = vpop.permute.xlu0 %380
      %382 = vrot.lane.b32.xlu0 %v278, 3
      %v383 = vpop.permute.xlu0 %382
      %384 = vrot.lane.b32.xlu0 %v279, 3
      %v385 = vpop.permute.xlu0 %384
      %386 = vrot.lane.b32.xlu0 %v280, 3
      %v387 = vpop.permute.xlu0 %386
      %388 = vrot.lane.b32.xlu0 %v281, 3
      %v389 = vpop.permute.xlu0 %388
      %vm390 = vcmp.lt.s32.totalorder %v293, 3
      %v391 = vsel %vm390, %v387, %v389
      %v392 = vsel %vm390, %v385, %v387
      %v393 = vsel %vm390, %v383, %v385
      %v394 = vsel %vm390, %v381, %v383
      %v395 = vsel %vm390, %v389, %v381
      %396 = vrot.lane.b32.xlu0 %v277, 2
      %v397 = vpop.permute.xlu0 %396
      %398 = vrot.lane.b32.xlu0 %v278, 2
      %v399 = vpop.permute.xlu0 %398
      %400 = vrot.lane.b32.xlu0 %v279, 2
      %v401 = vpop.permute.xlu0 %400
      %402 = vrot.lane.b32.xlu0 %v280, 2
      %v403 = vpop.permute.xlu0 %402
      %404 = vrot.lane.b32.xlu0 %v281, 2
      %v405 = vpop.permute.xlu0 %404
      %vm406 = vcmp.lt.s32.totalorder %v293, 2
      %v407 = vsel %vm406, %v403, %v405
      %v408 = vsel %vm406, %v401, %v403
      %v409 = vsel %vm406, %v399, %v401
      %v410 = vsel %vm406, %v397, %v399
      %v411 = vsel %vm406, %v405, %v397
      %412 = vrot.lane.b32.xlu0 %v277, 1
      %v413 = vpop.permute.xlu0 %412
      %414 = vrot.lane.b32.xlu0 %v278, 1
      %v415 = vpop.permute.xlu0 %414
      %416 = vrot.lane.b32.xlu0 %v279, 1
      %v417 = vpop.permute.xlu0 %416
      %418 = vrot.lane.b32.xlu0 %v280, 1
      %v419 = vpop.permute.xlu0 %418
      %420 = vrot.lane.b32.xlu0 %v281, 1
      %v421 = vpop.permute.xlu0 %420
      %vm422 = vcmp.lt.s32.totalorder %v293, 1
      %v423 = vsel %vm422, %v419, %v421
      %v424 = vsel %vm422, %v417, %v419
      %v425 = vsel %vm422, %v415, %v417
      %v426 = vsel %vm422, %v413, %v415
      %v427 = vsel %vm422, %v421, %v413
      %v428 = vld [vmem:[%s3] sm:$0xff]
      %v429 = vld [vmem:[%s3 + $0x8] sm:$0xff]
      %v430 = vld [vmem:[%s3 + $0x10] sm:$0xff]
      %432 = vset.pattern.permute.xlu0 0
      %433 = vperm.xlu0 %432, %v428
      %v434 = vpop.permute.xlu0 %433
      %437 = vset.pattern.permute.xlu0 0
      %438 = vperm.xlu0 %437, %v429
      %v439 = vpop.permute.xlu0 %438
      %442 = vset.pattern.permute.xlu0 0
      %443 = vperm.xlu0 %442, %v430
      %v444 = vpop.permute.xlu0 %443
      %vm446 = vcmask 588800
      %v448 = vsel %vm446, %v274, 0
      %v451 = vsel %vm446, %v275, 0
      %v454 = vsel %vm446, %v276, 0
      %456 = vmatprep.subr.mxu0 %v298
      %457 = vmatpush1.msra.mxu0 %v299
      %458 = vmatprep.subr.mxu0 %v314
      %459 = vmatpush1.msra.mxu0 %v315
      %460 = vmatprep.subr.mxu0 %v330
      %461 = vmatpush1.msra.mxu0 %v331
      %462 = vmatprep.subr.mxu0 %v346
      %463 = vmatpush1.msra.mxu0 %v347
      %464 = vmatprep.subr.mxu0 %v362
      %465 = vmatpush1.msra.mxu0 %v363
      %466 = vmatprep.subr.mxu0 %v378
      %467 = vmatpush1.msra.mxu0 %v379
      %468 = vmatprep.subr.mxu0 %v394
      %469 = vmatpush1.msra.mxu0 %v395
      %470 = vmatprep.subr.mxu0 %v410
      %471 = vmatpush1.msra.mxu0 %v411
      %472 = vmatprep.subr.mxu0 %v426
      %473 = vmatpush1.msra.mxu0 %v427
      %474 = vmatprep.subr.mxu0 0.0
      %475 = vmatpush1.msra.mxu0 0.0
      %476 = vmatprep.subr.mxu0 0.0
      %477 = vmatpush1.msra.mxu0 0.0
      %478 = vmatprep.subr.mxu0 0.0
      %479 = vmatpush1.msra.mxu0 0.0
      %480 = vmatprep.subr.mxu0 0.0
      %481 = vmatpush1.msra.mxu0 0.0
      %482 = vmatprep.subr.mxu0 0.0
      %483 = vmatpush1.msra.mxu0 0.0
      %484 = vmatprep.subr.mxu0 0.0
      %485 = vmatpush1.msra.mxu0 0.0
      %486 = vmatprep.subr.mxu0 0.0
      %487 = vmatpush1.msra.mxu0 0.0
      %488 = vmatprep.subr.mxu0 0.0
      %489 = vmatpush1.msra.mxu0 0.0
      %490 = vmatprep.subr.mxu0 0.0
      %491 = vmatpush1.msra.mxu0 0.0
      %492 = vmatprep.subr.mxu0 0.0
      %493 = vmatpush1.msra.mxu0 0.0
      %494 = vmatprep.subr.mxu0 0.0
      %495 = vmatpush1.msra.mxu0 0.0
      %496 = vmatprep.subr.mxu0 0.0
      %497 = vmatpush1.msra.mxu0 0.0
      %498 = vmatprep.subr.mxu0 0.0
      %499 = vmatpush1.msra.mxu0 0.0
      %500 = vmatprep.subr.mxu0 0.0
      %501 = vmatpush1.msra.mxu0 0.0
      %502 = vmatprep.subr.mxu0 0.0
      %503 = vmatpush1.msra.mxu0 0.0
      %504 = vmatprep.subr.mxu0 0.0
      %505 = vmatpush1.msra.mxu0 0.0
      %506 = vmatprep.subr.mxu0 0.0
      %507 = vmatpush1.msra.mxu0 0.0
      %508 = vmatprep.subr.mxu0 0.0
      %509 = vmatpush1.msra.mxu0 0.0
      %510 = vmatprep.subr.mxu0 0.0
      %511 = vmatpush1.msra.mxu0 0.0
      %512 = vmatprep.subr.mxu0 0.0
      %513 = vmatpush1.msra.mxu0 0.0
      %514 = vmatprep.subr.mxu0 0.0
      %515 = vmatpush1.msra.mxu0 0.0
      %516 = vmatprep.subr.mxu0 0.0
      %517 = vmatpush1.msra.mxu0 0.0
      %518 = vmatprep.subr.mxu0 0.0
      %519 = vmatpush1.msra.mxu0 0.0
      %520 = vmatprep.mubr.f32.mxu0 0.0
      %521 = vmatmul.mubr.f32.gmra.mrb[0].mxu0 %v448
      %v522 = vpop.f32.mrb[0].mxu0
      %v523 = vadd.f32 %v434, %v522
      %v524 = vpop.f32.mrb[0].mxu0
      %v525 = vadd.f32 %v434, %v524
      %526 = vmatprep.mubr.f32.mxu0 0.0
      %527 = vmatmul.mubr.f32.gmra.mrb[0].mxu0 %v451
      %v528 = vpop.f32.mrb[0].mxu0
      %v529 = vadd.f32 %v439, %v528
      %v530 = vpop.f32.mrb[0].mxu0
      %v531 = vadd.f32 %v439, %v530
      %532 = vmatprep.mubr.f32.mxu0 0.0
      %533 = vmatmul.mubr.f32.gmra.mrb[0].mxu0 %v454
      %v534 = vpop.f32.mrb[0].mxu0
      %v535 = vadd.f32 %v444, %v534
      %v536 = vpop.f32.mrb[0].mxu0
      %v537 = vadd.f32 %v444, %v536
      %538 = vdwg.mxu0
      %539 = vmatprep.subr.mxu0 %v296
      %540 = vmatpush1.msra.mxu0 %v297
      %541 = vmatprep.subr.mxu0 %v312
      %542 = vmatpush1.msra.mxu0 %v313
      %543 = vmatprep.subr.mxu0 %v328
      %544 = vmatpush1.msra.mxu0 %v329
      %545 = vmatprep.subr.mxu0 %v344
      %546 = vmatpush1.msra.mxu0 %v345
      %547 = vmatprep.subr.mxu0 %v360
      %548 = vmatpush1.msra.mxu0 %v361
      %549 = vmatprep.subr.mxu0 %v376
      %550 = vmatpush1.msra.mxu0 %v377
      %551 = vmatprep.subr.mxu0 %v392
      %552 = vmatpush1.msra.mxu0 %v393
      %553 = vmatprep.subr.mxu0 %v408
      %554 = vmatpush1.msra.mxu0 %v409
      %555 = vmatprep.subr.mxu0 %v424
      %556 = vmatpush1.msra.mxu0 %v425
      %557 = vmatprep.subr.mxu0 0.0
      %558 = vmatpush1.msra.mxu0 0.0
      %559 = vmatprep.subr.mxu0 0.0
      %560 = vmatpush1.msra.mxu0 0.0
      %561 = vmatprep.subr.mxu0 0.0
      %562 = vmatpush1.msra.mxu0 0.0
      %563 = vmatprep.subr.mxu0 0.0
      %564 = vmatpush1.msra.mxu0 0.0
      %565 = vmatprep.subr.mxu0 0.0
      %566 = vmatpush1.msra.mxu0 0.0
      %567 = vmatprep.subr.mxu0 0.0
      %568 = vmatpush1.msra.mxu0 0.0
      %569 = vmatprep.subr.mxu0 0.0
      %570 = vmatpush1.msra.mxu0 0.0
      %571 = vmatprep.subr.mxu0 0.0
      %572 = vmatpush1.msra.mxu0 0.0
      %573 = vmatprep.subr.mxu0 0.0
      %574 = vmatpush1.msra.mxu0 0.0
      %575 = vmatprep.subr.mxu0 0.0
      %576 = vmatpush1.msra.mxu0 0.0
      %577 = vmatprep.subr.mxu0 0.0
      %578 = vmatpush1.msra.mxu0 0.0
      %579 = vmatprep.subr.mxu0 0.0
      %580 = vmatpush1.msra.mxu0 0.0
      %581 = vmatprep.subr.mxu0 0.0
      %582 = vmatpush1.msra.mxu0 0.0
      %583 = vmatprep.subr.mxu0 0.0
      %584 = vmatpush1.msra.mxu0 0.0
      %585 = vmatprep.subr.mxu0 0.0
      %586 = vmatpush1.msra.mxu0 0.0
      %587 = vmatprep.subr.mxu0 0.0
      %588 = vmatpush1.msra.mxu0 0.0
      %589 = vmatprep.subr.mxu0 0.0
      %590 = vmatpush1.msra.mxu0 0.0
      %591 = vmatprep.subr.mxu0 0.0
      %592 = vmatpush1.msra.mxu0 0.0
      %593 = vmatprep.subr.mxu0 0.0
      %594 = vmatpush1.msra.mxu0 0.0
      %595 = vmatprep.subr.mxu0 0.0
      %596 = vmatpush1.msra.mxu0 0.0
      %597 = vmatprep.subr.mxu0 0.0
      %598 = vmatpush1.msra.mxu0 0.0
      %599 = vmatprep.subr.mxu0 0.0
      %600 = vmatpush1.msra.mxu0 0.0
      %601 = vmatprep.subr.mxu0 0.0
      %602 = vmatpush1.msra.mxu0 0.0
      %603 = vmatprep.mubr.f32.mxu0 0.0
      %604 = vmatmul.mubr.f32.gmra.mrb[0].mxu0 %v448
      %v605 = vpop.f32.mrb[0].mxu0
      %v606 = vadd.f32 %v434, %v605
      %v607 = vpop.f32.mrb[0].mxu0
      %v608 = vadd.f32 %v434, %v607
      %609 = vmatprep.mubr.f32.mxu0 0.0
      %610 = vmatmul.mubr.f32.gmra.mrb[0].mxu0 %v451
      %v611 = vpop.f32.mrb[0].mxu0
      %v612 = vadd.f32 %v439, %v611
      %v613 = vpop.f32.mrb[0].mxu0
      %v614 = vadd.f32 %v439, %v613
      %615 = vmatprep.mubr.f32.mxu0 0.0
      %616 = vmatmul.mubr.f32.gmra.mrb[0].mxu0 %v454
      %v617 = vpop.f32.mrb[0].mxu0
      %v618 = vadd.f32 %v444, %v617
      %v619 = vpop.f32.mrb[0].mxu0
      %v620 = vadd.f32 %v444, %v619
      %621 = vdwg.mxu0
      %622 = vmatprep.subr.mxu0 0.0
      %623 = vmatpush1.msra.mxu0 %v295
      %624 = vmatprep.subr.mxu0 0.0
      %625 = vmatpush1.msra.mxu0 %v311
      %626 = vmatprep.subr.mxu0 0.0
      %627 = vmatpush1.msra.mxu0 %v327
      %628 = vmatprep.subr.mxu0 0.0
      %629 = vmatpush1.msra.mxu0 %v343
      %630 = vmatprep.subr.mxu0 0.0
      %631 = vmatpush1.msra.mxu0 %v359
      %632 = vmatprep.subr.mxu0 0.0
      %633 = vmatpush1.msra.mxu0 %v375
      %634 = vmatprep.subr.mxu0 0.0
      %635 = vmatpush1.msra.mxu0 %v391
      %636 = vmatprep.subr.mxu0 0.0
      %637 = vmatpush1.msra.mxu0 %v407
      %638 = vmatprep.subr.mxu0 0.0
      %639 = vmatpush1.msra.mxu0 %v423
      %640 = vmatprep.subr.mxu0 0.0
      %641 = vmatpush1.msra.mxu0 0.0
      %642 = vmatprep.subr.mxu0 0.0
      %643 = vmatpush1.msra.mxu0 0.0
      %644 = vmatprep.subr.mxu0 0.0
      %645 = vmatpush1.msra.mxu0 0.0
      %646 = vmatprep.subr.mxu0 0.0
      %647 = vmatpush1.msra.mxu0 0.0
      %648 = vmatprep.subr.mxu0 0.0
      %649 = vmatpush1.msra.mxu0 0.0
      %650 = vmatprep.subr.mxu0 0.0
      %651 = vmatpush1.msra.mxu0 0.0
      %652 = vmatprep.subr.mxu0 0.0
      %653 = vmatpush1.msra.mxu0 0.0
      %654 = vmatprep.subr.mxu0 0.0
      %655 = vmatpush1.msra.mxu0 0.0
      %656 = vmatprep.subr.mxu0 0.0
      %657 = vmatpush1.msra.mxu0 0.0
      %658 = vmatprep.subr.mxu0 0.0
      %659 = vmatpush1.msra.mxu0 0.0
      %660 = vmatprep.subr.mxu0 0.0
      %661 = vmatpush1.msra.mxu0 0.0
      %662 = vmatprep.subr.mxu0 0.0
      %663 = vmatpush1.msra.mxu0 0.0
      %664 = vmatprep.subr.mxu0 0.0
      %665 = vmatpush1.msra.mxu0 0.0
      %666 = vmatprep.subr.mxu0 0.0
      %667 = vmatpush1.msra.mxu0 0.0
      %668 = vmatprep.subr.mxu0 0.0
      %669 = vmatpush1.msra.mxu0 0.0
      %670 = vmatprep.subr.mxu0 0.0
      %671 = vmatpush1.msra.mxu0 0.0
      %672 = vmatprep.subr.mxu0 0.0
      %673 = vmatpush1.msra.mxu0 0.0
      %674 = vmatprep.subr.mxu0 0.0
      %675 = vmatpush1.msra.mxu0 0.0
      %676 = vmatprep.subr.mxu0 0.0
      %677 = vmatpush1.msra.mxu0 0.0
      %678 = vmatprep.subr.mxu0 0.0
      %679 = vmatpush1.msra.mxu0 0.0
      %680 = vmatprep.subr.mxu0 0.0
      %681 = vmatpush1.msra.mxu0 0.0
      %682 = vmatprep.subr.mxu0 0.0
      %683 = vmatpush1.msra.mxu0 0.0
      %684 = vmatprep.subr.mxu0 0.0
      %685 = vmatpush1.msra.mxu0 0.0
      %686 = vmatprep.mubr.f32.mxu0 0.0
      %687 = vmatmul.mubr.f32.gmra.mrb[0].mxu0 %v448
      %v688 = vpop.f32.mrb[0].mxu0
      %v689 = vadd.f32 %v434, %v688
      %v690 = vpop.f32.mrb[0].mxu0
      %691 = vmatprep.mubr.f32.mxu0 0.0
      %692 = vmatmul.mubr.f32.gmra.mrb[0].mxu0 %v451
      %v693 = vpop.f32.mrb[0].mxu0
      %v694 = vadd.f32 %v439, %v693
      %v695 = vpop.f32.mrb[0].mxu0
      %696 = vmatprep.mubr.f32.mxu0 0.0
      %697 = vmatmul.mubr.f32.gmra.mrb[0].mxu0 %v454
      %v698 = vpop.f32.mrb[0].mxu0
      %v699 = vadd.f32 %v444, %v698
      %v700 = vpop.f32.mrb[0].mxu0
      %701 = vdwg.mxu0
      %s702 = scalar_lea.vmem %s3, 144
      %v703 = vld [vmem:[%s702] sm:$0xff]
      %v704 = vld [vmem:[%s702 + $0x8] sm:$0xff]
      %v705 = vld [vmem:[%s702 + $0x10] sm:$0xff]
      %707 = vset.pattern.permute.xlu0 0
      %708 = vperm.xlu0 %707, %v703
      %v709 = vpop.permute.xlu0 %708
      %712 = vset.pattern.permute.xlu0 0
      %713 = vperm.xlu0 %712, %v704
      %v714 = vpop.permute.xlu0 %713
      %717 = vset.pattern.permute.xlu0 0
      %718 = vperm.xlu0 %717, %v705
      %v719 = vpop.permute.xlu0 %718
      %v721 = vmul.f32 %v523, %v709
      %v722 = vmul.f32 %v525, %v709
      %v723 = vmul.f32 %v606, %v709
      %v724 = vmul.f32 %v608, %v709
      %v725 = vmul.f32 %v689, %v709
      %v726 = vmul.f32 %v529, %v714
      %v727 = vmul.f32 %v531, %v714
      %v728 = vmul.f32 %v612, %v714
      %v729 = vmul.f32 %v614, %v714
      %v730 = vmul.f32 %v694, %v714
      %v731 = vmul.f32 %v535, %v719
      %v732 = vmul.f32 %v537, %v719
      %v733 = vmul.f32 %v618, %v719
      %v734 = vmul.f32 %v620, %v719
      %v735 = vmul.f32 %v699, %v719
      %s736 = scalar_lea.vmem %s3, 168
      %v737 = vld [vmem:[%s736] sm:$0xff]
      %v738 = vld [vmem:[%s736 + $0x8] sm:$0xff]
      %v739 = vld [vmem:[%s736 + $0x10] sm:$0xff]
      %741 = vset.pattern.permute.xlu0 0
      %742 = vperm.xlu0 %741, %v737
      %v743 = vpop.permute.xlu0 %742
      %746 = vset.pattern.permute.xlu0 0
      %747 = vperm.xlu0 %746, %v738
      %v748 = vpop.permute.xlu0 %747
      %751 = vset.pattern.permute.xlu0 0
      %752 = vperm.xlu0 %751, %v739
      %v753 = vpop.permute.xlu0 %752
      %v755 = vadd.f32 %v721, %v743
      %v756 = vadd.f32 %v722, %v743
      %v757 = vadd.f32 %v723, %v743
      %v758 = vadd.f32 %v724, %v743
      %v759 = vadd.f32 %v725, %v743
      %v760 = vadd.f32 %v726, %v748
      %v761 = vadd.f32 %v727, %v748
      %v762 = vadd.f32 %v728, %v748
      %v763 = vadd.f32 %v729, %v748
      %v764 = vadd.f32 %v730, %v748
      %v765 = vadd.f32 %v731, %v753
      %v766 = vadd.f32 %v732, %v753
      %v767 = vadd.f32 %v733, %v753
      %v768 = vadd.f32 %v734, %v753
      %v769 = vadd.f32 %v735, %v753
      %v770 = vld [vmem:[%s2] sm:$0xff]
      %v771 = vld [vmem:[%s2 + $0x8] sm:$0xff]
      %v772 = vld [vmem:[%s2 + $0x10] sm:$0xff]
      %v773 = vld [vmem:[%s2 + $0x18] sm:$0xff]
      %v774 = vld [vmem:[%s2 + $0x20] sm:$0xff]
      %v775 = vld [vmem:[%s2 + $0x28] sm:$0xff]
      %v776 = vmul.f32 %v755, %v252
      %v777 = vmul.f32 %v756, %v256
      %v778 = vmul.f32 %v757, %v260
      %v779 = vmul.f32 %v758, %v264
      %v780 = vmul.f32 %v759, %v268
      %v781 = vmul.f32 %v760, %v252
      %v782 = vmul.f32 %v761, %v256
      %v783 = vmul.f32 %v762, %v260
      %v784 = vmul.f32 %v763, %v264
      %v785 = vmul.f32 %v764, %v268
      %v786 = vmul.f32 %v765, %v252
      %v787 = vmul.f32 %v766, %v256
      %v788 = vmul.f32 %v767, %v260
      %v789 = vmul.f32 %v768, %v264
      %v790 = vmul.f32 %v769, %v268
      %791 = vrot.lane.b32.xlu0 %v776, 9
      %v792 = vpop.permute.xlu0 %791
      %793 = vrot.lane.b32.xlu0 %v781, 9
      %v794 = vpop.permute.xlu0 %793
      %795 = vrot.lane.b32.xlu0 %v786, 9
      %v796 = vpop.permute.xlu0 %795
      %797 = vrot.lane.b32.xlu0 %v777, 9
      %v798 = vpop.permute.xlu0 %797
      %799 = vrot.lane.b32.xlu0 %v782, 9
      %v800 = vpop.permute.xlu0 %799
      %801 = vrot.lane.b32.xlu0 %v787, 9
      %v802 = vpop.permute.xlu0 %801
      %803 = vrot.lane.b32.xlu0 %v778, 9
      %v804 = vpop.permute.xlu0 %803
      %805 = vrot.lane.b32.xlu0 %v783, 9
      %v806 = vpop.permute.xlu0 %805
      %807 = vrot.lane.b32.xlu0 %v788, 9
      %v808 = vpop.permute.xlu0 %807
      %809 = vrot.lane.b32.xlu0 %v779, 9
      %v810 = vpop.permute.xlu0 %809
      %811 = vrot.lane.b32.xlu0 %v784, 9
      %v812 = vpop.permute.xlu0 %811
      %813 = vrot.lane.b32.xlu0 %v789, 9
      %v814 = vpop.permute.xlu0 %813
      %815 = vrot.lane.b32.xlu0 %v780, 9
      %v816 = vpop.permute.xlu0 %815
      %817 = vrot.lane.b32.xlu0 %v785, 9
      %v818 = vpop.permute.xlu0 %817
      %819 = vrot.lane.b32.xlu0 %v790, 9
      %v820 = vpop.permute.xlu0 %819
      %v821 = vsel %vm294, %v810, %v816
      %v822 = vsel %vm294, %v812, %v818
      %v823 = vsel %vm294, %v814, %v820
      %v824 = vsel %vm294, %v804, %v810
      %v825 = vsel %vm294, %v806, %v812
      %v826 = vsel %vm294, %v808, %v814
      %v827 = vsel %vm294, %v798, %v804
      %v828 = vsel %vm294, %v800, %v806
      %v829 = vsel %vm294, %v802, %v808
      %v830 = vsel %vm294, %v792, %v798
      %v831 = vsel %vm294, %v794, %v800
      %v832 = vsel %vm294, %v796, %v802
      %v833 = vsel %vm294, %v816, %v792
      %v834 = vsel %vm294, %v818, %v794
      %v835 = vsel %vm294, %v820, %v796
      %836 = vrot.lane.b32.xlu0 %v776, 8
      %v837 = vpop.permute.xlu0 %836
      %838 = vrot.lane.b32.xlu0 %v781, 8
      %v839 = vpop.permute.xlu0 %838
      %840 = vrot.lane.b32.xlu0 %v786, 8
      %v841 = vpop.permute.xlu0 %840
      %842 = vrot.lane.b32.xlu0 %v777, 8
      %v843 = vpop.permute.xlu0 %842
      %844 = vrot.lane.b32.xlu0 %v782, 8
      %v845 = vpop.permute.xlu0 %844
      %846 = vrot.lane.b32.xlu0 %v787, 8
      %v847 = vpop.permute.xlu0 %846
      %848 = vrot.lane.b32.xlu0 %v778, 8
      %v849 = vpop.permute.xlu0 %848
      %850 = vrot.lane.b32.xlu0 %v783, 8
      %v851 = vpop.permute.xlu0 %850
      %852 = vrot.lane.b32.xlu0 %v788, 8
      %v853 = vpop.permute.xlu0 %852
      %854 = vrot.lane.b32.xlu0 %v779, 8
      %v855 = vpop.permute.xlu0 %854
      %856 = vrot.lane.b32.xlu0 %v784, 8
      %v857 = vpop.permute.xlu0 %856
      %858 = vrot.lane.b32.xlu0 %v789, 8
      %v859 = vpop.permute.xlu0 %858
      %860 = vrot.lane.b32.xlu0 %v780, 8
      %v861 = vpop.permute.xlu0 %860
      %862 = vrot.lane.b32.xlu0 %v785, 8
      %v863 = vpop.permute.xlu0 %862
      %864 = vrot.lane.b32.xlu0 %v790, 8
      %v865 = vpop.permute.xlu0 %864
      %v866 = vsel %vm310, %v855, %v861
      %v867 = vsel %vm310, %v857, %v863
      %v868 = vsel %vm310, %v859, %v865
      %v869 = vsel %vm310, %v849, %v855
      %v870 = vsel %vm310, %v851, %v857
      %v871 = vsel %vm310, %v853, %v859
      %v872 = vsel %vm310, %v843, %v849
      %v873 = vsel %vm310, %v845, %v851
      %v874 = vsel %vm310, %v847, %v853
      %v875 = vsel %vm310, %v837, %v843
      %v876 = vsel %vm310, %v839, %v845
      %v877 = vsel %vm310, %v841, %v847
      %v878 = vsel %vm310, %v861, %v837
      %v879 = vsel %vm310, %v863, %v839
      %v880 = vsel %vm310, %v865, %v841
      %881 = vrot.lane.b32.xlu0 %v776, 7
      %v882 = vpop.permute.xlu0 %881
      %883 = vrot.lane.b32.xlu0 %v781, 7
      %v884 = vpop.permute.xlu0 %883
      %885 = vrot.lane.b32.xlu0 %v786, 7
      %v886 = vpop.permute.xlu0 %885
      %887 = vrot.lane.b32.xlu0 %v777, 7
      %v888 = vpop.permute.xlu0 %887
      %889 = vrot.lane.b32.xlu0 %v782, 7
      %v890 = vpop.permute.xlu0 %889
      %891 = vrot.lane.b32.xlu0 %v787, 7
      %v892 = vpop.permute.xlu0 %891
      %893 = vrot.lane.b32.xlu0 %v778, 7
      %v894 = vpop.permute.xlu0 %893
      %895 = vrot.lane.b32.xlu0 %v783, 7
      %v896 = vpop.permute.xlu0 %895
      %897 = vrot.lane.b32.xlu0 %v788, 7
      %v898 = vpop.permute.xlu0 %897
      %899 = vrot.lane.b32.xlu0 %v779, 7
      %v900 = vpop.permute.xlu0 %899
      %901 = vrot.lane.b32.xlu0 %v784, 7
      %v902 = vpop.permute.xlu0 %901
      %903 = vrot.lane.b32.xlu0 %v789, 7
      %v904 = vpop.permute.xlu0 %903
      %905 = vrot.lane.b32.xlu0 %v780, 7
      %v906 = vpop.permute.xlu0 %905
      %907 = vrot.lane.b32.xlu0 %v785, 7
      %v908 = vpop.permute.xlu0 %907
      %909 = vrot.lane.b32.xlu0 %v790, 7
      %v910 = vpop.permute.xlu0 %909
      %v911 = vsel %vm326, %v900, %v906
      %v912 = vsel %vm326, %v902, %v908
      %v913 = vsel %vm326, %v904, %v910
      %v914 = vsel %vm326, %v894, %v900
      %v915 = vsel %vm326, %v896, %v902
      %v916 = vsel %vm326, %v898, %v904
      %v917 = vsel %vm326, %v888, %v894
      %v918 = vsel %vm326, %v890, %v896
      %v919 = vsel %vm326, %v892, %v898
      %v920 = vsel %vm326, %v882, %v888
      %v921 = vsel %vm326, %v884, %v890
      %v922 = vsel %vm326, %v886, %v892
      %v923 = vsel %vm326, %v906, %v882
      %v924 = vsel %vm326, %v908, %v884
      %v925 = vsel %vm326, %v910, %v886
      %926 = vrot.lane.b32.xlu0 %v776, 6
      %v927 = vpop.permute.xlu0 %926
      %928 = vrot.lane.b32.xlu0 %v781, 6
      %v929 = vpop.permute.xlu0 %928
      %930 = vrot.lane.b32.xlu0 %v786, 6
      %v931 = vpop.permute.xlu0 %930
      %932 = vrot.lane.b32.xlu0 %v777, 6
      %v933 = vpop.permute.xlu0 %932
      %934 = vrot.lane.b32.xlu0 %v782, 6
      %v935 = vpop.permute.xlu0 %934
      %936 = vrot.lane.b32.xlu0 %v787, 6
      %v937 = vpop.permute.xlu0 %936
      %938 = vrot.lane.b32.xlu0 %v778, 6
      %v939 = vpop.permute.xlu0 %938
      %940 = vrot.lane.b32.xlu0 %v783, 6
      %v941 = vpop.permute.xlu0 %940
      %942 = vrot.lane.b32.xlu0 %v788, 6
      %v943 = vpop.permute.xlu0 %942
      %944 = vrot.lane.b32.xlu0 %v779, 6
      %v945 = vpop.permute.xlu0 %944
      %946 = vrot.lane.b32.xlu0 %v784, 6
      %v947 = vpop.permute.xlu0 %946
      %948 = vrot.lane.b32.xlu0 %v789, 6
      %v949 = vpop.permute.xlu0 %948
      %950 = vrot.lane.b32.xlu0 %v780, 6
      %v951 = vpop.permute.xlu0 %950
      %952 = vrot.lane.b32.xlu0 %v785, 6
      %v953 = vpop.permute.xlu0 %952
      %954 = vrot.lane.b32.xlu0 %v790, 6
      %v955 = vpop.permute.xlu0 %954
      %v956 = vsel %vm342, %v945, %v951
      %v957 = vsel %vm342, %v947, %v953
      %v958 = vsel %vm342, %v949, %v955
      %v959 = vsel %vm342, %v939, %v945
      %v960 = vsel %vm342, %v941, %v947
      %v961 = vsel %vm342, %v943, %v949
      %v962 = vsel %vm342, %v933, %v939
      %v963 = vsel %vm342, %v935, %v941
      %v964 = vsel %vm342, %v937, %v943
      %v965 = vsel %vm342, %v927, %v933
      %v966 = vsel %vm342, %v929, %v935
      %v967 = vsel %vm342, %v931, %v937
      %v968 = vsel %vm342, %v951, %v927
      %v969 = vsel %vm342, %v953, %v929
      %v970 = vsel %vm342, %v955, %v931
      %971 = vrot.lane.b32.xlu0 %v776, 5
      %v972 = vpop.permute.xlu0 %971
      %973 = vrot.lane.b32.xlu0 %v781, 5
      %v974 = vpop.permute.xlu0 %973
      %975 = vrot.lane.b32.xlu0 %v786, 5
      %v976 = vpop.permute.xlu0 %975
      %977 = vrot.lane.b32.xlu0 %v777, 5
      %v978 = vpop.permute.xlu0 %977
      %979 = vrot.lane.b32.xlu0 %v782, 5
      %v980 = vpop.permute.xlu0 %979
      %981 = vrot.lane.b32.xlu0 %v787, 5
      %v982 = vpop.permute.xlu0 %981
      %983 = vrot.lane.b32.xlu0 %v778, 5
      %v984 = vpop.permute.xlu0 %983
      %985 = vrot.lane.b32.xlu0 %v783, 5
      %v986 = vpop.permute.xlu0 %985
      %987 = vrot.lane.b32.xlu0 %v788, 5
      %v988 = vpop.permute.xlu0 %987
      %989 = vrot.lane.b32.xlu0 %v779, 5
      %v990 = vpop.permute.xlu0 %989
      %991 = vrot.lane.b32.xlu0 %v784, 5
      %v992 = vpop.permute.xlu0 %991
      %993 = vrot.lane.b32.xlu0 %v789, 5
      %v994 = vpop.permute.xlu0 %993
      %995 = vrot.lane.b32.xlu0 %v780, 5
      %v996 = vpop.permute.xlu0 %995
      %997 = vrot.lane.b32.xlu0 %v785, 5
      %v998 = vpop.permute.xlu0 %997
      %999 = vrot.lane.b32.xlu0 %v790, 5
      %v1000 = vpop.permute.xlu0 %999
      %v1001 = vsel %vm358, %v990, %v996
      %v1002 = vsel %vm358, %v992, %v998
      %v1003 = vsel %vm358, %v994, %v1000
      %v1004 = vsel %vm358, %v984, %v990
      %v1005 = vsel %vm358, %v986, %v992
      %v1006 = vsel %vm358, %v988, %v994
      %v1007 = vsel %vm358, %v978, %v984
      %v1008 = vsel %vm358, %v980, %v986
      %v1009 = vsel %vm358, %v982, %v988
      %v1010 = vsel %vm358, %v972, %v978
      %v1011 = vsel %vm358, %v974, %v980
      %v1012 = vsel %vm358, %v976, %v982
      %v1013 = vsel %vm358, %v996, %v972
      %v1014 = vsel %vm358, %v998, %v974
      %v1015 = vsel %vm358, %v1000, %v976
      %1016 = vrot.lane.b32.xlu0 %v776, 4
      %v1017 = vpop.permute.xlu0 %1016
      %1018 = vrot.lane.b32.xlu0 %v781, 4
      %v1019 = vpop.permute.xlu0 %1018
      %1020 = vrot.lane.b32.xlu0 %v786, 4
      %v1021 = vpop.permute.xlu0 %1020
      %1022 = vrot.lane.b32.xlu0 %v777, 4
      %v1023 = vpop.permute.xlu0 %1022
      %1024 = vrot.lane.b32.xlu0 %v782, 4
      %v1025 = vpop.permute.xlu0 %1024
      %1026 = vrot.lane.b32.xlu0 %v787, 4
      %v1027 = vpop.permute.xlu0 %1026
      %1028 = vrot.lane.b32.xlu0 %v778, 4
      %v1029 = vpop.permute.xlu0 %1028
      %1030 = vrot.lane.b32.xlu0 %v783, 4
      %v1031 = vpop.permute.xlu0 %1030
      %1032 = vrot.lane.b32.xlu0 %v788, 4
      %v1033 = vpop.permute.xlu0 %1032
      %1034 = vrot.lane.b32.xlu0 %v779, 4
      %v1035 = vpop.permute.xlu0 %1034
      %1036 = vrot.lane.b32.xlu0 %v784, 4
      %v1037 = vpop.permute.xlu0 %1036
      %1038 = vrot.lane.b32.xlu0 %v789, 4
      %v1039 = vpop.permute.xlu0 %1038
      %1040 = vrot.lane.b32.xlu0 %v780, 4
      %v1041 = vpop.permute.xlu0 %1040
      %1042 = vrot.lane.b32.xlu0 %v785, 4
      %v1043 = vpop.permute.xlu0 %1042
      %1044 = vrot.lane.b32.xlu0 %v790, 4
      %v1045 = vpop.permute.xlu0 %1044
      %v1046 = vsel %vm374, %v1035, %v1041
      %v1047 = vsel %vm374, %v1037, %v1043
      %v1048 = vsel %vm374, %v1039, %v1045
      %v1049 = vsel %vm374, %v1029, %v1035
      %v1050 = vsel %vm374, %v1031, %v1037
      %v1051 = vsel %vm374, %v1033, %v1039
      %v1052 = vsel %vm374, %v1023, %v1029
      %v1053 = vsel %vm374, %v1025, %v1031
      %v1054 = vsel %vm374, %v1027, %v1033
      %v1055 = vsel %vm374, %v1017, %v1023
      %v1056 = vsel %vm374, %v1019, %v1025
      %v1057 = vsel %vm374, %v1021, %v1027
      %v1058 = vsel %vm374, %v1041, %v1017
      %v1059 = vsel %vm374, %v1043, %v1019
      %v1060 = vsel %vm374, %v1045, %v1021
      %1061 = vrot.lane.b32.xlu0 %v776, 3
      %v1062 = vpop.permute.xlu0 %1061
      %1063 = vrot.lane.b32.xlu0 %v781, 3
      %v1064 = vpop.permute.xlu0 %1063
      %1065 = vrot.lane.b32.xlu0 %v786, 3
      %v1066 = vpop.permute.xlu0 %1065
      %1067 = vrot.lane.b32.xlu0 %v777, 3
      %v1068 = vpop.permute.xlu0 %1067
      %1069 = vrot.lane.b32.xlu0 %v782, 3
      %v1070 = vpop.permute.xlu0 %1069
      %1071 = vrot.lane.b32.xlu0 %v787, 3
      %v1072 = vpop.permute.xlu0 %1071
      %1073 = vrot.lane.b32.xlu0 %v778, 3
      %v1074 = vpop.permute.xlu0 %1073
      %1075 = vrot.lane.b32.xlu0 %v783, 3
      %v1076 = vpop.permute.xlu0 %1075
      %1077 = vrot.lane.b32.xlu0 %v788, 3
      %v1078 = vpop.permute.xlu0 %1077
      %1079 = vrot.lane.b32.xlu0 %v779, 3
      %v1080 = vpop.permute.xlu0 %1079
      %1081 = vrot.lane.b32.xlu0 %v784, 3
      %v1082 = vpop.permute.xlu0 %1081
      %1083 = vrot.lane.b32.xlu0 %v789, 3
      %v1084 = vpop.permute.xlu0 %1083
      %1085 = vrot.lane.b32.xlu0 %v780, 3
      %v1086 = vpop.permute.xlu0 %1085
      %1087 = vrot.lane.b32.xlu0 %v785, 3
      %v1088 = vpop.permute.xlu0 %1087
      %1089 = vrot.lane.b32.xlu0 %v790, 3
      %v1090 = vpop.permute.xlu0 %1089
      %v1091 = vsel %vm390, %v1080, %v1086
      %v1092 = vsel %vm390, %v1082, %v1088
      %v1093 = vsel %vm390, %v1084, %v1090
      %v1094 = vsel %vm390, %v1074, %v1080
      %v1095 = vsel %vm390, %v1076, %v1082
      %v1096 = vsel %vm390, %v1078, %v1084
      %v1097 = vsel %vm390, %v1068, %v1074
      %v1098 = vsel %vm390, %v1070, %v1076
      %v1099 = vsel %vm390, %v1072, %v1078
      %v1100 = vsel %vm390, %v1062, %v1068
      %v1101 = vsel %vm390, %v1064, %v1070
      %v1102 = vsel %vm390, %v1066, %v1072
      %v1103 = vsel %vm390, %v1086, %v1062
      %v1104 = vsel %vm390, %v1088, %v1064
      %v1105 = vsel %vm390, %v1090, %v1066
      %1106 = vrot.lane.b32.xlu0 %v776, 2
      %v1107 = vpop.permute.xlu0 %1106
      %1108 = vrot.lane.b32.xlu0 %v781, 2
      %v1109 = vpop.permute.xlu0 %1108
      %1110 = vrot.lane.b32.xlu0 %v786, 2
      %v1111 = vpop.permute.xlu0 %1110
      %1112 = vrot.lane.b32.xlu0 %v777, 2
      %v1113 = vpop.permute.xlu0 %1112
      %1114 = vrot.lane.b32.xlu0 %v782, 2
      %v1115 = vpop.permute.xlu0 %1114
      %1116 = vrot.lane.b32.xlu0 %v787, 2
      %v1117 = vpop.permute.xlu0 %1116
      %1118 = vrot.lane.b32.xlu0 %v778, 2
      %v1119 = vpop.permute.xlu0 %1118
      %1120 = vrot.lane.b32.xlu0 %v783, 2
      %v1121 = vpop.permute.xlu0 %1120
      %1122 = vrot.lane.b32.xlu0 %v788, 2
      %v1123 = vpop.permute.xlu0 %1122
      %1124 = vrot.lane.b32.xlu0 %v779, 2
      %v1125 = vpop.permute.xlu0 %1124
      %1126 = vrot.lane.b32.xlu0 %v784, 2
      %v1127 = vpop.permute.xlu0 %1126
      %1128 = vrot.lane.b32.xlu0 %v789, 2
      %v1129 = vpop.permute.xlu0 %1128
      %1130 = vrot.lane.b32.xlu0 %v780, 2
      %v1131 = vpop.permute.xlu0 %1130
      %1132 = vrot.lane.b32.xlu0 %v785, 2
      %v1133 = vpop.permute.xlu0 %1132
      %1134 = vrot.lane.b32.xlu0 %v790, 2
      %v1135 = vpop.permute.xlu0 %1134
      %v1136 = vsel %vm406, %v1125, %v1131
      %v1137 = vsel %vm406, %v1127, %v1133
      %v1138 = vsel %vm406, %v1129, %v1135
      %v1139 = vsel %vm406, %v1119, %v1125
      %v1140 = vsel %vm406, %v1121, %v1127
      %v1141 = vsel %vm406, %v1123, %v1129
      %v1142 = vsel %vm406, %v1113, %v1119
      %v1143 = vsel %vm406, %v1115, %v1121
      %v1144 = vsel %vm406, %v1117, %v1123
      %v1145 = vsel %vm406, %v1107, %v1113
      %v1146 = vsel %vm406, %v1109, %v1115
      %v1147 = vsel %vm406, %v1111, %v1117
      %v1148 = vsel %vm406, %v1131, %v1107
      %v1149 = vsel %vm406, %v1133, %v1109
      %v1150 = vsel %vm406, %v1135, %v1111
      %1151 = vrot.lane.b32.xlu0 %v776, 1
      %v1152 = vpop.permute.xlu0 %1151
      %1153 = vrot.lane.b32.xlu0 %v781, 1
      %v1154 = vpop.permute.xlu0 %1153
      %1155 = vrot.lane.b32.xlu0 %v786, 1
      %v1156 = vpop.permute.xlu0 %1155
      %1157 = vrot.lane.b32.xlu0 %v777, 1
      %v1158 = vpop.permute.xlu0 %1157
      %1159 = vrot.lane.b32.xlu0 %v782, 1
      %v1160 = vpop.permute.xlu0 %1159
      %1161 = vrot.lane.b32.xlu0 %v787, 1
      %v1162 = vpop.permute.xlu0 %1161
      %1163 = vrot.lane.b32.xlu0 %v778, 1
      %v1164 = vpop.permute.xlu0 %1163
      %1165 = vrot.lane.b32.xlu0 %v783, 1
      %v1166 = vpop.permute.xlu0 %1165
      %1167 = vrot.lane.b32.xlu0 %v788, 1
      %v1168 = vpop.permute.xlu0 %1167
      %1169 = vrot.lane.b32.xlu0 %v779, 1
      %v1170 = vpop.permute.xlu0 %1169
      %1171 = vrot.lane.b32.xlu0 %v784, 1
      %v1172 = vpop.permute.xlu0 %1171
      %1173 = vrot.lane.b32.xlu0 %v789, 1
      %v1174 = vpop.permute.xlu0 %1173
      %1175 = vrot.lane.b32.xlu0 %v780, 1
      %v1176 = vpop.permute.xlu0 %1175
      %1177 = vrot.lane.b32.xlu0 %v785, 1
      %v1178 = vpop.permute.xlu0 %1177
      %1179 = vrot.lane.b32.xlu0 %v790, 1
      %v1180 = vpop.permute.xlu0 %1179
      %v1181 = vsel %vm422, %v1170, %v1176
      %v1182 = vsel %vm422, %v1172, %v1178
      %v1183 = vsel %vm422, %v1174, %v1180
      %v1184 = vsel %vm422, %v1164, %v1170
      %v1185 = vsel %vm422, %v1166, %v1172
      %v1186 = vsel %vm422, %v1168, %v1174
      %v1187 = vsel %vm422, %v1158, %v1164
      %v1188 = vsel %vm422, %v1160, %v1166
      %v1189 = vsel %vm422, %v1162, %v1168
      %v1190 = vsel %vm422, %v1152, %v1158
      %v1191 = vsel %vm422, %v1154, %v1160
      %v1192 = vsel %vm422, %v1156, %v1162
      %v1193 = vsel %vm422, %v1176, %v1152
      %v1194 = vsel %vm422, %v1178, %v1154
      %v1195 = vsel %vm422, %v1180, %v1156
      %s1196 = scalar_lea.vmem %s3, 24
      %v1197 = vld [vmem:[%s1196] sm:$0xff]
      %v1198 = vld [vmem:[%s1196 + $0x8] sm:$0xff]
      %v1199 = vld [vmem:[%s1196 + $0x10] sm:$0xff]
      %1201 = vset.pattern.permute.xlu0 0
      %1202 = vperm.xlu0 %1201, %v1197
      %v1203 = vpop.permute.xlu0 %1202
      %1206 = vset.pattern.permute.xlu0 0
      %1207 = vperm.xlu0 %1206, %v1198
      %v1208 = vpop.permute.xlu0 %1207
      %1211 = vset.pattern.permute.xlu0 0
      %1212 = vperm.xlu0 %1211, %v1199
      %v1213 = vpop.permute.xlu0 %1212
      %vm1215 = vcmask 719872
      %v1217 = vsel %vm1215, %v771, 0
      %v1220 = vsel %vm1215, %v773, 0
      %v1223 = vsel %vm1215, %v775, 0
      %1225 = vmatprep.subr.mxu0 %v830
      %1226 = vmatpush1.msra.mxu0 %v833
      %1227 = vmatprep.subr.mxu0 %v831
      %1228 = vmatpush1.msra.mxu0 %v834
      %1229 = vmatprep.subr.mxu0 %v832
      %1230 = vmatpush1.msra.mxu0 %v835
      %1231 = vmatprep.subr.mxu0 %v875
      %1232 = vmatpush1.msra.mxu0 %v878
      %1233 = vmatprep.subr.mxu0 %v876
      %1234 = vmatpush1.msra.mxu0 %v879
      %1235 = vmatprep.subr.mxu0 %v877
      %1236 = vmatpush1.msra.mxu0 %v880
      %1237 = vmatprep.subr.mxu0 %v920
      %1238 = vmatpush1.msra.mxu0 %v923
      %1239 = vmatprep.subr.mxu0 %v921
      %1240 = vmatpush1.msra.mxu0 %v924
      %1241 = vmatprep.subr.mxu0 %v922
      %1242 = vmatpush1.msra.mxu0 %v925
      %1243 = vmatprep.subr.mxu0 %v965
      %1244 = vmatpush1.msra.mxu0 %v968
      %1245 = vmatprep.subr.mxu0 %v966
      %1246 = vmatpush1.msra.mxu0 %v969
      %1247 = vmatprep.subr.mxu0 %v967
      %1248 = vmatpush1.msra.mxu0 %v970
      %1249 = vmatprep.subr.mxu0 %v1010
      %1250 = vmatpush1.msra.mxu0 %v1013
      %1251 = vmatprep.subr.mxu0 %v1011
      %1252 = vmatpush1.msra.mxu0 %v1014
      %1253 = vmatprep.subr.mxu0 %v1012
      %1254 = vmatpush1.msra.mxu0 %v1015
      %1255 = vmatprep.subr.mxu0 %v1055
      %1256 = vmatpush1.msra.mxu0 %v1058
      %1257 = vmatprep.subr.mxu0 %v1056
      %1258 = vmatpush1.msra.mxu0 %v1059
      %1259 = vmatprep.subr.mxu0 %v1057
      %1260 = vmatpush1.msra.mxu0 %v1060
      %1261 = vmatprep.subr.mxu0 %v1100
      %1262 = vmatpush1.msra.mxu0 %v1103
      %1263 = vmatprep.subr.mxu0 %v1101
      %1264 = vmatpush1.msra.mxu0 %v1104
      %1265 = vmatprep.subr.mxu0 %v1102
      %1266 = vmatpush1.msra.mxu0 %v1105
      %1267 = vmatprep.subr.mxu0 %v1145
      %1268 = vmatpush1.msra.mxu0 %v1148
      %1269 = vmatprep.subr.mxu0 %v1146
      %1270 = vmatpush1.msra.mxu0 %v1149
      %1271 = vmatprep.subr.mxu0 %v1147
      %1272 = vmatpush1.msra.mxu0 %v1150
      %1273 = vmatprep.subr.mxu0 %v1190
      %1274 = vmatpush1.msra.mxu0 %v1193
      %1275 = vmatprep.subr.mxu0 %v1191
      %1276 = vmatpush1.msra.mxu0 %v1194
      %1277 = vmatprep.subr.mxu0 %v1192
      %1278 = vmatpush1.msra.mxu0 %v1195
      %1279 = vmatprep.subr.mxu0 0.0
      %1280 = vmatpush1.msra.mxu0 0.0
      %1281 = vmatprep.subr.mxu0 0.0
      %1282 = vmatpush1.msra.mxu0 0.0
      %1283 = vmatprep.subr.mxu0 0.0
      %1284 = vmatpush1.msra.mxu0 0.0
      %1285 = vmatprep.subr.mxu0 0.0
      %1286 = vmatpush1.msra.mxu0 0.0
      %1287 = vmatprep.subr.mxu0 0.0
      %1288 = vmatpush1.msra.mxu0 0.0
      %1289 = vmatprep.mubr.f32.mxu0 %v1217
      %1290 = vmatmul.mubr.f32.gmra.mrb[0].mxu0 %v770
      %v1291 = vpop.f32.mrb[0].mxu0
      %v1292 = vadd.f32 %v1203, %v1291
      %v1293 = vpop.f32.mrb[0].mxu0
      %v1294 = vadd.f32 %v1203, %v1293
      %1295 = vmatprep.mubr.f32.mxu0 %v1220
      %1296 = vmatmul.mubr.f32.gmra.mrb[0].mxu0 %v772
      %v1297 = vpop.f32.mrb[0].mxu0
      %v1298 = vadd.f32 %v1208, %v1297
      %v1299 = vpop.f32.mrb[0].mxu0
      %v1300 = vadd.f32 %v1208, %v1299
      %1301 = vmatprep.mubr.f32.mxu0 %v1223
      %1302 = vmatmul.mubr.f32.gmra.mrb[0].mxu0 %v774
      %v1303 = vpop.f32.mrb[0].mxu0
      %v1304 = vadd.f32 %v1213, %v1303
      %v1305 = vpop.f32.mrb[0].mxu0
      %v1306 = vadd.f32 %v1213, %v1305
      %1307 = vdwg.mxu0
      %1308 = vmatprep.subr.mxu0 %v824
      %1309 = vmatpush1.msra.mxu0 %v827
      %1310 = vmatprep.subr.mxu0 %v825
      %1311 = vmatpush1.msra.mxu0 %v828
      %1312 = vmatprep.subr.mxu0 %v826
      %1313 = vmatpush1.msra.mxu0 %v829
      %1314 = vmatprep.subr.mxu0 %v869
      %1315 = vmatpush1.msra.mxu0 %v872
      %1316 = vmatprep.subr.mxu0 %v870
      %1317 = vmatpush1.msra.mxu0 %v873
      %1318 = vmatprep.subr.mxu0 %v871
      %1319 = vmatpush1.msra.mxu0 %v874
      %1320 = vmatprep.subr.mxu0 %v914
      %1321 = vmatpush1.msra.mxu0 %v917
      %1322 = vmatprep.subr.mxu0 %v915
      %1323 = vmatpush1.msra.mxu0 %v918
      %1324 = vmatprep.subr.mxu0 %v916
      %1325 = vmatpush1.msra.mxu0 %v919
      %1326 = vmatprep.subr.mxu0 %v959
      %1327 = vmatpush1.msra.mxu0 %v962
      %1328 = vmatprep.subr.mxu0 %v960
      %1329 = vmatpush1.msra.mxu0 %v963
      %1330 = vmatprep.subr.mxu0 %v961
      %1331 = vmatpush1.msra.mxu0 %v964
      %1332 = vmatprep.subr.mxu0 %v1004
      %1333 = vmatpush1.msra.mxu0 %v1007
      %1334 = vmatprep.subr.mxu0 %v1005
      %1335 = vmatpush1.msra.mxu0 %v1008
      %1336 = vmatprep.subr.mxu0 %v1006
      %1337 = vmatpush1.msra.mxu0 %v1009
      %1338 = vmatprep.subr.mxu0 %v1049
      %1339 = vmatpush1.msra.mxu0 %v1052
      %1340 = vmatprep.subr.mxu0 %v1050
      %1341 = vmatpush1.msra.mxu0 %v1053
      %1342 = vmatprep.subr.mxu0 %v1051
      %1343 = vmatpush1.msra.mxu0 %v1054
      %1344 = vmatprep.subr.mxu0 %v1094
      %1345 = vmatpush1.msra.mxu0 %v1097
      %1346 = vmatprep.subr.mxu0 %v1095
      %1347 = vmatpush1.msra.mxu0 %v1098
      %1348 = vmatprep.subr.mxu0 %v1096
      %1349 = vmatpush1.msra.mxu0 %v1099
      %1350 = vmatprep.subr.mxu0 %v1139
      %1351 = vmatpush1.msra.mxu0 %v1142
      %1352 = vmatprep.subr.mxu0 %v1140
      %1353 = vmatpush1.msra.mxu0 %v1143
      %1354 = vmatprep.subr.mxu0 %v1141
      %1355 = vmatpush1.msra.mxu0 %v1144
      %1356 = vmatprep.subr.mxu0 %v1184
      %1357 = vmatpush1.msra.mxu0 %v1187
      %1358 = vmatprep.subr.mxu0 %v1185
      %1359 = vmatpush1.msra.mxu0 %v1188
      %1360 = vmatprep.subr.mxu0 %v1186
      %1361 = vmatpush1.msra.mxu0 %v1189
      %1362 = vmatprep.subr.mxu0 0.0
      %1363 = vmatpush1.msra.mxu0 0.0
      %1364 = vmatprep.subr.mxu0 0.0
      %1365 = vmatpush1.msra.mxu0 0.0
      %1366 = vmatprep.subr.mxu0 0.0
      %1367 = vmatpush1.msra.mxu0 0.0
      %1368 = vmatprep.subr.mxu0 0.0
      %1369 = vmatpush1.msra.mxu0 0.0
      %1370 = vmatprep.subr.mxu0 0.0
      %1371 = vmatpush1.msra.mxu0 0.0
      %1372 = vmatprep.mubr.f32.mxu0 %v1217
      %1373 = vmatmul.mubr.f32.gmra.mrb[0].mxu0 %v770
      %v1374 = vpop.f32.mrb[0].mxu0
      %v1375 = vadd.f32 %v1203, %v1374
      %v1376 = vpop.f32.mrb[0].mxu0
      %v1377 = vadd.f32 %v1203, %v1376
      %1378 = vmatprep.mubr.f32.mxu0 %v1220
      %1379 = vmatmul.mubr.f32.gmra.mrb[0].mxu0 %v772
      %v1380 = vpop.f32.mrb[0].mxu0
      %v1381 = vadd.f32 %v1208, %v1380
      %v1382 = vpop.f32.mrb[0].mxu0
      %v1383 = vadd.f32 %v1208, %v1382
      %1384 = vmatprep.mubr.f32.mxu0 %v1223
      %1385 = vmatmul.mubr.f32.gmra.mrb[0].mxu0 %v774
      %v1386 = vpop.f32.mrb[0].mxu0
      %v1387 = vadd.f32 %v1213, %v1386
      %v1388 = vpop.f32.mrb[0].mxu0
      %v1389 = vadd.f32 %v1213, %v1388
      %1390 = vdwg.mxu0
      %1391 = vmatprep.subr.mxu0 0.0
      %1392 = vmatpush1.msra.mxu0 %v821
      %1393 = vmatprep.subr.mxu0 0.0
      %1394 = vmatpush1.msra.mxu0 %v822
      %1395 = vmatprep.subr.mxu0 0.0
      %1396 = vmatpush1.msra.mxu0 %v823
      %1397 = vmatprep.subr.mxu0 0.0
      %1398 = vmatpush1.msra.mxu0 %v866
      %1399 = vmatprep.subr.mxu0 0.0
      %1400 = vmatpush1.msra.mxu0 %v867
      %1401 = vmatprep.subr.mxu0 0.0
      %1402 = vmatpush1.msra.mxu0 %v868
      %1403 = vmatprep.subr.mxu0 0.0
      %1404 = vmatpush1.msra.mxu0 %v911
      %1405 = vmatprep.subr.mxu0 0.0
      %1406 = vmatpush1.msra.mxu0 %v912
      %1407 = vmatprep.subr.mxu0 0.0
      %1408 = vmatpush1.msra.mxu0 %v913
      %1409 = vmatprep.subr.mxu0 0.0
      %1410 = vmatpush1.msra.mxu0 %v956
      %1411 = vmatprep.subr.mxu0 0.0
      %1412 = vmatpush1.msra.mxu0 %v957
      %1413 = vmatprep.subr.mxu0 0.0
      %1414 = vmatpush1.msra.mxu0 %v958
      %1415 = vmatprep.subr.mxu0 0.0
      %1416 = vmatpush1.msra.mxu0 %v1001
      %1417 = vmatprep.subr.mxu0 0.0
      %1418 = vmatpush1.msra.mxu0 %v1002
      %1419 = vmatprep.subr.mxu0 0.0
      %1420 = vmatpush1.msra.mxu0 %v1003
      %1421 = vmatprep.subr.mxu0 0.0
      %1422 = vmatpush1.msra.mxu0 %v1046
      %1423 = vmatprep.subr.mxu0 0.0
      %1424 = vmatpush1.msra.mxu0 %v1047
      %1425 = vmatprep.subr.mxu0 0.0
      %1426 = vmatpush1.msra.mxu0 %v1048
      %1427 = vmatprep.subr.mxu0 0.0
      %1428 = vmatpush1.msra.mxu0 %v1091
      %1429 = vmatprep.subr.mxu0 0.0
      %1430 = vmatpush1.msra.mxu0 %v1092
      %1431 = vmatprep.subr.mxu0 0.0
      %1432 = vmatpush1.msra.mxu0 %v1093
      %1433 = vmatprep.subr.mxu0 0.0
      %1434 = vmatpush1.msra.mxu0 %v1136
      %1435 = vmatprep.subr.mxu0 0.0
      %1436 = vmatpush1.msra.mxu0 %v1137
      %1437 = vmatprep.subr.mxu0 0.0
      %1438 = vmatpush1.msra.mxu0 %v1138
      %1439 = vmatprep.subr.mxu0 0.0
      %1440 = vmatpush1.msra.mxu0 %v1181
      %1441 = vmatprep.subr.mxu0 0.0
      %1442 = vmatpush1.msra.mxu0 %v1182
      %1443 = vmatprep.subr.mxu0 0.0
      %1444 = vmatpush1.msra.mxu0 %v1183
      %1445 = vmatprep.subr.mxu0 0.0
      %1446 = vmatpush1.msra.mxu0 0.0
      %1447 = vmatprep.subr.mxu0 0.0
      %1448 = vmatpush1.msra.mxu0 0.0
      %1449 = vmatprep.subr.mxu0 0.0
      %1450 = vmatpush1.msra.mxu0 0.0
      %1451 = vmatprep.subr.mxu0 0.0
      %1452 = vmatpush1.msra.mxu0 0.0
      %1453 = vmatprep.subr.mxu0 0.0
      %1454 = vmatpush1.msra.mxu0 0.0
      %1455 = vmatprep.mubr.f32.mxu0 %v1217
      %1456 = vmatmul.mubr.f32.gmra.mrb[0].mxu0 %v770
      %v1457 = vpop.f32.mrb[0].mxu0
      %v1458 = vadd.f32 %v1203, %v1457
      %v1459 = vpop.f32.mrb[0].mxu0
      %1460 = vmatprep.mubr.f32.mxu0 %v1220
      %1461 = vmatmul.mubr.f32.gmra.mrb[0].mxu0 %v772
      %v1462 = vpop.f32.mrb[0].mxu0
      %v1463 = vadd.f32 %v1208, %v1462
      %v1464 = vpop.f32.mrb[0].mxu0
      %1465 = vmatprep.mubr.f32.mxu0 %v1223
      %1466 = vmatmul.mubr.f32.gmra.mrb[0].mxu0 %v774
      %v1467 = vpop.f32.mrb[0].mxu0
      %v1468 = vadd.f32 %v1213, %v1467
      %v1469 = vpop.f32.mrb[0].mxu0
      %1470 = vdwg.mxu0
      %vm1471 = vcmp.ge.f32.partialorder %v1292, 0.0
      %vm1472 = vcmp.ge.f32.partialorder %v1294, 0.0
      %vm1473 = vcmp.ge.f32.partialorder %v1375, 0.0
      %vm1474 = vcmp.ge.f32.partialorder %v1377, 0.0
      %vm1475 = vcmp.ge.f32.partialorder %v1458, 0.0
      %vm1476 = vcmp.ge.f32.partialorder %v1298, 0.0
      %vm1477 = vcmp.ge.f32.partialorder %v1300, 0.0
      %vm1478 = vcmp.ge.f32.partialorder %v1381, 0.0
      %vm1479 = vcmp.ge.f32.partialorder %v1383, 0.0
      %vm1480 = vcmp.ge.f32.partialorder %v1463, 0.0
      %vm1481 = vcmp.ge.f32.partialorder %v1304, 0.0
      %vm1482 = vcmp.ge.f32.partialorder %v1306, 0.0
      %vm1483 = vcmp.ge.f32.partialorder %v1387, 0.0
      %vm1484 = vcmp.ge.f32.partialorder %v1389, 0.0
      %vm1485 = vcmp.ge.f32.partialorder %v1468, 0.0
      %v1486 = vmul.f32 %v1292, 0.01
      %v1487 = vmul.f32 %v1294, 0.01
      %v1488 = vmul.f32 %v1375, 0.01
      %v1489 = vmul.f32 %v1377, 0.01
      %v1490 = vmul.f32 %v1458, 0.01
      %v1491 = vmul.f32 %v1298, 0.01
      %v1492 = vmul.f32 %v1300, 0.01
      %v1493 = vmul.f32 %v1381, 0.01
      %v1494 = vmul.f32 %v1383, 0.01
      %v1495 = vmul.f32 %v1463, 0.01
      %v1496 = vmul.f32 %v1304, 0.01
      %v1497 = vmul.f32 %v1306, 0.01
      %v1498 = vmul.f32 %v1387, 0.01
      %v1499 = vmul.f32 %v1389, 0.01
      %v1500 = vmul.f32 %v1468, 0.01
      %v1501 = vsel %vm1471, %v1292, %v1486
      %v1502 = vsel %vm1472, %v1294, %v1487
      %v1503 = vsel %vm1473, %v1375, %v1488
      %v1504 = vsel %vm1474, %v1377, %v1489
      %v1505 = vsel %vm1475, %v1458, %v1490
      %v1506 = vsel %vm1476, %v1298, %v1491
      %v1507 = vsel %vm1477, %v1300, %v1492
      %v1508 = vsel %vm1478, %v1381, %v1493
      %v1509 = vsel %vm1479, %v1383, %v1494
      %v1510 = vsel %vm1480, %v1463, %v1495
      %v1511 = vsel %vm1481, %v1304, %v1496
      %v1512 = vsel %vm1482, %v1306, %v1497
      %v1513 = vsel %vm1483, %v1387, %v1498
      %v1514 = vsel %vm1484, %v1389, %v1499
      %v1515 = vsel %vm1485, %v1468, %v1500
      %s1516 = scalar_lea.vmem %s2, 48
      %v1517 = vld [vmem:[%s1516] sm:$0xff]
      %v1518 = vld [vmem:[%s1516 + $0x8] sm:$0xff]
      %v1519 = vld [vmem:[%s1516 + $0x10] sm:$0xff]
      %v1520 = vld [vmem:[%s1516 + $0x18] sm:$0xff]
      %v1521 = vld [vmem:[%s1516 + $0x20] sm:$0xff]
      %v1522 = vld [vmem:[%s1516 + $0x28] sm:$0xff]
      %v1523 = vmul.f32 %v1501, %v252
      %v1524 = vmul.f32 %v1502, %v256
      %v1525 = vmul.f32 %v1503, %v260
      %v1526 = vmul.f32 %v1504, %v264
      %v1527 = vmul.f32 %v1505, %v268
      %v1528 = vmul.f32 %v1506, %v252
      %v1529 = vmul.f32 %v1507, %v256
      %v1530 = vmul.f32 %v1508, %v260
      %v1531 = vmul.f32 %v1509, %v264
      %v1532 = vmul.f32 %v1510, %v268
      %v1533 = vmul.f32 %v1511, %v252
      %v1534 = vmul.f32 %v1512, %v256
      %v1535 = vmul.f32 %v1513, %v260
      %v1536 = vmul.f32 %v1514, %v264
      %v1537 = vmul.f32 %v1515, %v268
      %1538 = vrot.lane.b32.xlu0 %v1523, 9
      %v1539 = vpop.permute.xlu0 %1538
      %1540 = vrot.lane.b32.xlu0 %v1528, 9
      %v1541 = vpop.permute.xlu0 %1540
      %1542 = vrot.lane.b32.xlu0 %v1533, 9
      %v1543 = vpop.permute.xlu0 %1542
      %1544 = vrot.lane.b32.xlu0 %v1524, 9
      %v1545 = vpop.permute.xlu0 %1544
      %1546 = vrot.lane.b32.xlu0 %v1529, 9
      %v1547 = vpop.permute.xlu0 %1546
      %1548 = vrot.lane.b32.xlu0 %v1534, 9
      %v1549 = vpop.permute.xlu0 %1548
      %1550 = vrot.lane.b32.xlu0 %v1525, 9
      %v1551 = vpop.permute.xlu0 %1550
      %1552 = vrot.lane.b32.xlu0 %v1530, 9
      %v1553 = vpop.permute.xlu0 %1552
      %1554 = vrot.lane.b32.xlu0 %v1535, 9
      %v1555 = vpop.permute.xlu0 %1554
      %1556 = vrot.lane.b32.xlu0 %v1526, 9
      %v1557 = vpop.permute.xlu0 %1556
      %1558 = vrot.lane.b32.xlu0 %v1531, 9
      %v1559 = vpop.permute.xlu0 %1558
      %1560 = vrot.lane.b32.xlu0 %v1536, 9
      %v1561 = vpop.permute.xlu0 %1560
      %1562 = vrot.lane.b32.xlu0 %v1527, 9
      %v1563 = vpop.permute.xlu0 %1562
      %1564 = vrot.lane.b32.xlu0 %v1532, 9
      %v1565 = vpop.permute.xlu0 %1564
      %1566 = vrot.lane.b32.xlu0 %v1537, 9
      %v1567 = vpop.permute.xlu0 %1566
      %v1568 = vsel %vm294, %v1557, %v1563
      %v1569 = vsel %vm294, %v1559, %v1565
      %v1570 = vsel %vm294, %v1561, %v1567
      %v1571 = vsel %vm294, %v1551, %v1557
      %v1572 = vsel %vm294, %v1553, %v1559
      %v1573 = vsel %vm294, %v1555, %v1561
      %v1574 = vsel %vm294, %v1545, %v1551
      %v1575 = vsel %vm294, %v1547, %v1553
      %v1576 = vsel %vm294, %v1549, %v1555
      %v1577 = vsel %vm294, %v1539, %v1545
      %v1578 = vsel %vm294, %v1541, %v1547
      %v1579 = vsel %vm294, %v1543, %v1549
      %v1580 = vsel %vm294, %v1563, %v1539
      %v1581 = vsel %vm294, %v1565, %v1541
      %v1582 = vsel %vm294, %v1567, %v1543
      %1583 = vrot.lane.b32.xlu0 %v1523, 8
      %v1584 = vpop.permute.xlu0 %1583
      %1585 = vrot.lane.b32.xlu0 %v1528, 8
      %v1586 = vpop.permute.xlu0 %1585
      %1587 = vrot.lane.b32.xlu0 %v1533, 8
      %v1588 = vpop.permute.xlu0 %1587
      %1589 = vrot.lane.b32.xlu0 %v1524, 8
      %v1590 = vpop.permute.xlu0 %1589
      %1591 = vrot.lane.b32.xlu0 %v1529, 8
      %v1592 = vpop.permute.xlu0 %1591
      %1593 = vrot.lane.b32.xlu0 %v1534, 8
      %v1594 = vpop.permute.xlu0 %1593
      %1595 = vrot.lane.b32.xlu0 %v1525, 8
      %v1596 = vpop.permute.xlu0 %1595
      %1597 = vrot.lane.b32.xlu0 %v1530, 8
      %v1598 = vpop.permute.xlu0 %1597
      %1599 = vrot.lane.b32.xlu0 %v1535, 8
      %v1600 = vpop.permute.xlu0 %1599
      %1601 = vrot.lane.b32.xlu0 %v1526, 8
      %v1602 = vpop.permute.xlu0 %1601
      %1603 = vrot.lane.b32.xlu0 %v1531, 8
      %v1604 = vpop.permute.xlu0 %1603
      %1605 = vrot.lane.b32.xlu0 %v1536, 8
      %v1606 = vpop.permute.xlu0 %1605
      %1607 = vrot.lane.b32.xlu0 %v1527, 8
      %v1608 = vpop.permute.xlu0 %1607
      %1609 = vrot.lane.b32.xlu0 %v1532, 8
      %v1610 = vpop.permute.xlu0 %1609
      %1611 = vrot.lane.b32.xlu0 %v1537, 8
      %v1612 = vpop.permute.xlu0 %1611
      %v1613 = vsel %vm310, %v1602, %v1608
      %v1614 = vsel %vm310, %v1604, %v1610
      %v1615 = vsel %vm310, %v1606, %v1612
      %v1616 = vsel %vm310, %v1596, %v1602
      %v1617 = vsel %vm310, %v1598, %v1604
      %v1618 = vsel %vm310, %v1600, %v1606
      %v1619 = vsel %vm310, %v1590, %v1596
      %v1620 = vsel %vm310, %v1592, %v1598
      %v1621 = vsel %vm310, %v1594, %v1600
      %v1622 = vsel %vm310, %v1584, %v1590
      %v1623 = vsel %vm310, %v1586, %v1592
      %v1624 = vsel %vm310, %v1588, %v1594
      %v1625 = vsel %vm310, %v1608, %v1584
      %v1626 = vsel %vm310, %v1610, %v1586
      %v1627 = vsel %vm310, %v1612, %v1588
      %1628 = vrot.lane.b32.xlu0 %v1523, 7
      %v1629 = vpop.permute.xlu0 %1628
      %1630 = vrot.lane.b32.xlu0 %v1528, 7
      %v1631 = vpop.permute.xlu0 %1630
      %1632 = vrot.lane.b32.xlu0 %v1533, 7
      %v1633 = vpop.permute.xlu0 %1632
      %1634 = vrot.lane.b32.xlu0 %v1524, 7
      %v1635 = vpop.permute.xlu0 %1634
      %1636 = vrot.lane.b32.xlu0 %v1529, 7
      %v1637 = vpop.permute.xlu0 %1636
      %1638 = vrot.lane.b32.xlu0 %v1534, 7
      %v1639 = vpop.permute.xlu0 %1638
      %1640 = vrot.lane.b32.xlu0 %v1525, 7
      %v1641 = vpop.permute.xlu0 %1640
      %1642 = vrot.lane.b32.xlu0 %v1530, 7
      %v1643 = vpop.permute.xlu0 %1642
      %1644 = vrot.lane.b32.xlu0 %v1535, 7
      %v1645 = vpop.permute.xlu0 %1644
      %1646 = vrot.lane.b32.xlu0 %v1526, 7
      %v1647 = vpop.permute.xlu0 %1646
      %1648 = vrot.lane.b32.xlu0 %v1531, 7
      %v1649 = vpop.permute.xlu0 %1648
      %1650 = vrot.lane.b32.xlu0 %v1536, 7
      %v1651 = vpop.permute.xlu0 %1650
      %1652 = vrot.lane.b32.xlu0 %v1527, 7
      %v1653 = vpop.permute.xlu0 %1652
      %1654 = vrot.lane.b32.xlu0 %v1532, 7
      %v1655 = vpop.permute.xlu0 %1654
      %1656 = vrot.lane.b32.xlu0 %v1537, 7
      %v1657 = vpop.permute.xlu0 %1656
      %v1658 = vsel %vm326, %v1647, %v1653
      %v1659 = vsel %vm326, %v1649, %v1655
      %v1660 = vsel %vm326, %v1651, %v1657
      %v1661 = vsel %vm326, %v1641, %v1647
      %v1662 = vsel %vm326, %v1643, %v1649
      %v1663 = vsel %vm326, %v1645, %v1651
      %v1664 = vsel %vm326, %v1635, %v1641
      %v1665 = vsel %vm326, %v1637, %v1643
      %v1666 = vsel %vm326, %v1639, %v1645
      %v1667 = vsel %vm326, %v1629, %v1635
      %v1668 = vsel %vm326, %v1631, %v1637
      %v1669 = vsel %vm326, %v1633, %v1639
      %v1670 = vsel %vm326, %v1653, %v1629
      %v1671 = vsel %vm326, %v1655, %v1631
      %v1672 = vsel %vm326, %v1657, %v1633
      %1673 = vrot.lane.b32.xlu0 %v1523, 6
      %v1674 = vpop.permute.xlu0 %1673
      %1675 = vrot.lane.b32.xlu0 %v1528, 6
      %v1676 = vpop.permute.xlu0 %1675
      %1677 = vrot.lane.b32.xlu0 %v1533, 6
      %v1678 = vpop.permute.xlu0 %1677
      %1679 = vrot.lane.b32.xlu0 %v1524, 6
      %v1680 = vpop.permute.xlu0 %1679
      %1681 = vrot.lane.b32.xlu0 %v1529, 6
      %v1682 = vpop.permute.xlu0 %1681
      %1683 = vrot.lane.b32.xlu0 %v1534, 6
      %v1684 = vpop.permute.xlu0 %1683
      %1685 = vrot.lane.b32.xlu0 %v1525, 6
      %v1686 = vpop.permute.xlu0 %1685
      %1687 = vrot.lane.b32.xlu0 %v1530, 6
      %v1688 = vpop.permute.xlu0 %1687
      %1689 = vrot.lane.b32.xlu0 %v1535, 6
      %v1690 = vpop.permute.xlu0 %1689
      %1691 = vrot.lane.b32.xlu0 %v1526, 6
      %v1692 = vpop.permute.xlu0 %1691
      %1693 = vrot.lane.b32.xlu0 %v1531, 6
      %v1694 = vpop.permute.xlu0 %1693
      %1695 = vrot.lane.b32.xlu0 %v1536, 6
      %v1696 = vpop.permute.xlu0 %1695
      %1697 = vrot.lane.b32.xlu0 %v1527, 6
      %v1698 = vpop.permute.xlu0 %1697
      %1699 = vrot.lane.b32.xlu0 %v1532, 6
      %v1700 = vpop.permute.xlu0 %1699
      %1701 = vrot.lane.b32.xlu0 %v1537, 6
      %v1702 = vpop.permute.xlu0 %1701
      %v1703 = vsel %vm342, %v1692, %v1698
      %v1704 = vsel %vm342, %v1694, %v1700
      %v1705 = vsel %vm342, %v1696, %v1702
      %v1706 = vsel %vm342, %v1686, %v1692
      %v1707 = vsel %vm342, %v1688, %v1694
      %v1708 = vsel %vm342, %v1690, %v1696
      %v1709 = vsel %vm342, %v1680, %v1686
      %v1710 = vsel %vm342, %v1682, %v1688
      %v1711 = vsel %vm342, %v1684, %v1690
      %v1712 = vsel %vm342, %v1674, %v1680
      %v1713 = vsel %vm342, %v1676, %v1682
      %v1714 = vsel %vm342, %v1678, %v1684
      %v1715 = vsel %vm342, %v1698, %v1674
      %v1716 = vsel %vm342, %v1700, %v1676
      %v1717 = vsel %vm342, %v1702, %v1678
      %1718 = vrot.lane.b32.xlu0 %v1523, 5
      %v1719 = vpop.permute.xlu0 %1718
      %1720 = vrot.lane.b32.xlu0 %v1528, 5
      %v1721 = vpop.permute.xlu0 %1720
      %1722 = vrot.lane.b32.xlu0 %v1533, 5
      %v1723 = vpop.permute.xlu0 %1722
      %1724 = vrot.lane.b32.xlu0 %v1524, 5
      %v1725 = vpop.permute.xlu0 %1724
      %1726 = vrot.lane.b32.xlu0 %v1529, 5
      %v1727 = vpop.permute.xlu0 %1726
      %1728 = vrot.lane.b32.xlu0 %v1534, 5
      %v1729 = vpop.permute.xlu0 %1728
      %1730 = vrot.lane.b32.xlu0 %v1525, 5
      %v1731 = vpop.permute.xlu0 %1730
      %1732 = vrot.lane.b32.xlu0 %v1530, 5
      %v1733 = vpop.permute.xlu0 %1732
      %1734 = vrot.lane.b32.xlu0 %v1535, 5
      %v1735 = vpop.permute.xlu0 %1734
      %1736 = vrot.lane.b32.xlu0 %v1526, 5
      %v1737 = vpop.permute.xlu0 %1736
      %1738 = vrot.lane.b32.xlu0 %v1531, 5
      %v1739 = vpop.permute.xlu0 %1738
      %1740 = vrot.lane.b32.xlu0 %v1536, 5
      %v1741 = vpop.permute.xlu0 %1740
      %1742 = vrot.lane.b32.xlu0 %v1527, 5
      %v1743 = vpop.permute.xlu0 %1742
      %1744 = vrot.lane.b32.xlu0 %v1532, 5
      %v1745 = vpop.permute.xlu0 %1744
      %1746 = vrot.lane.b32.xlu0 %v1537, 5
      %v1747 = vpop.permute.xlu0 %1746
      %v1748 = vsel %vm358, %v1737, %v1743
      %v1749 = vsel %vm358, %v1739, %v1745
      %v1750 = vsel %vm358, %v1741, %v1747
      %v1751 = vsel %vm358, %v1731, %v1737
      %v1752 = vsel %vm358, %v1733, %v1739
      %v1753 = vsel %vm358, %v1735, %v1741
      %v1754 = vsel %vm358, %v1725, %v1731
      %v1755 = vsel %vm358, %v1727, %v1733
      %v1756 = vsel %vm358, %v1729, %v1735
      %v1757 = vsel %vm358, %v1719, %v1725
      %v1758 = vsel %vm358, %v1721, %v1727
      %v1759 = vsel %vm358, %v1723, %v1729
      %v1760 = vsel %vm358, %v1743, %v1719
      %v1761 = vsel %vm358, %v1745, %v1721
      %v1762 = vsel %vm358, %v1747, %v1723
      %1763 = vrot.lane.b32.xlu0 %v1523, 4
      %v1764 = vpop.permute.xlu0 %1763
      %1765 = vrot.lane.b32.xlu0 %v1528, 4
      %v1766 = vpop.permute.xlu0 %1765
      %1767 = vrot.lane.b32.xlu0 %v1533, 4
      %v1768 = vpop.permute.xlu0 %1767
      %1769 = vrot.lane.b32.xlu0 %v1524, 4
      %v1770 = vpop.permute.xlu0 %1769
      %1771 = vrot.lane.b32.xlu0 %v1529, 4
      %v1772 = vpop.permute.xlu0 %1771
      %1773 = vrot.lane.b32.xlu0 %v1534, 4
      %v1774 = vpop.permute.xlu0 %1773
      %1775 = vrot.lane.b32.xlu0 %v1525, 4
      %v1776 = vpop.permute.xlu0 %1775
      %1777 = vrot.lane.b32.xlu0 %v1530, 4
      %v1778 = vpop.permute.xlu0 %1777
      %1779 = vrot.lane.b32.xlu0 %v1535, 4
      %v1780 = vpop.permute.xlu0 %1779
      %1781 = vrot.lane.b32.xlu0 %v1526, 4
      %v1782 = vpop.permute.xlu0 %1781
      %1783 = vrot.lane.b32.xlu0 %v1531, 4
      %v1784 = vpop.permute.xlu0 %1783
      %1785 = vrot.lane.b32.xlu0 %v1536, 4
      %v1786 = vpop.permute.xlu0 %1785
      %1787 = vrot.lane.b32.xlu0 %v1527, 4
      %v1788 = vpop.permute.xlu0 %1787
      %1789 = vrot.lane.b32.xlu0 %v1532, 4
      %v1790 = vpop.permute.xlu0 %1789
      %1791 = vrot.lane.b32.xlu0 %v1537, 4
      %v1792 = vpop.permute.xlu0 %1791
      %v1793 = vsel %vm374, %v1782, %v1788
      %v1794 = vsel %vm374, %v1784, %v1790
      %v1795 = vsel %vm374, %v1786, %v1792
      %v1796 = vsel %vm374, %v1776, %v1782
      %v1797 = vsel %vm374, %v1778, %v1784
      %v1798 = vsel %vm374, %v1780, %v1786
      %v1799 = vsel %vm374, %v1770, %v1776
      %v1800 = vsel %vm374, %v1772, %v1778
      %v1801 = vsel %vm374, %v1774, %v1780
      %v1802 = vsel %vm374, %v1764, %v1770
      %v1803 = vsel %vm374, %v1766, %v1772
      %v1804 = vsel %vm374, %v1768, %v1774
      %v1805 = vsel %vm374, %v1788, %v1764
      %v1806 = vsel %vm374, %v1790, %v1766
      %v1807 = vsel %vm374, %v1792, %v1768
      %1808 = vrot.lane.b32.xlu0 %v1523, 3
      %v1809 = vpop.permute.xlu0 %1808
      %1810 = vrot.lane.b32.xlu0 %v1528, 3
      %v1811 = vpop.permute.xlu0 %1810
      %1812 = vrot.lane.b32.xlu0 %v1533, 3
      %v1813 = vpop.permute.xlu0 %1812
      %1814 = vrot.lane.b32.xlu0 %v1524, 3
      %v1815 = vpop.permute.xlu0 %1814
      %1816 = vrot.lane.b32.xlu0 %v1529, 3
      %v1817 = vpop.permute.xlu0 %1816
      %1818 = vrot.lane.b32.xlu0 %v1534, 3
      %v1819 = vpop.permute.xlu0 %1818
      %1820 = vrot.lane.b32.xlu0 %v1525, 3
      %v1821 = vpop.permute.xlu0 %1820
      %1822 = vrot.lane.b32.xlu0 %v1530, 3
      %v1823 = vpop.permute.xlu0 %1822
      %1824 = vrot.lane.b32.xlu0 %v1535, 3
      %v1825 = vpop.permute.xlu0 %1824
      %1826 = vrot.lane.b32.xlu0 %v1526, 3
      %v1827 = vpop.permute.xlu0 %1826
      %1828 = vrot.lane.b32.xlu0 %v1531, 3
      %v1829 = vpop.permute.xlu0 %1828
      %1830 = vrot.lane.b32.xlu0 %v1536, 3
      %v1831 = vpop.permute.xlu0 %1830
      %1832 = vrot.lane.b32.xlu0 %v1527, 3
      %v1833 = vpop.permute.xlu0 %1832
      %1834 = vrot.lane.b32.xlu0 %v1532, 3
      %v1835 = vpop.permute.xlu0 %1834
      %1836 = vrot.lane.b32.xlu0 %v1537, 3
      %v1837 = vpop.permute.xlu0 %1836
      %v1838 = vsel %vm390, %v1827, %v1833
      %v1839 = vsel %vm390, %v1829, %v1835
      %v1840 = vsel %vm390, %v1831, %v1837
      %v1841 = vsel %vm390, %v1821, %v1827
      %v1842 = vsel %vm390, %v1823, %v1829
      %v1843 = vsel %vm390, %v1825, %v1831
      %v1844 = vsel %vm390, %v1815, %v1821
      %v1845 = vsel %vm390, %v1817, %v1823
      %v1846 = vsel %vm390, %v1819, %v1825
      %v1847 = vsel %vm390, %v1809, %v1815
      %v1848 = vsel %vm390, %v1811, %v1817
      %v1849 = vsel %vm390, %v1813, %v1819
      %v1850 = vsel %vm390, %v1833, %v1809
      %v1851 = vsel %vm390, %v1835, %v1811
      %v1852 = vsel %vm390, %v1837, %v1813
      %1853 = vrot.lane.b32.xlu0 %v1523, 2
      %v1854 = vpop.permute.xlu0 %1853
      %1855 = vrot.lane.b32.xlu0 %v1528, 2
      %v1856 = vpop.permute.xlu0 %1855
      %1857 = vrot.lane.b32.xlu0 %v1533, 2
      %v1858 = vpop.permute.xlu0 %1857
      %1859 = vrot.lane.b32.xlu0 %v1524, 2
      %v1860 = vpop.permute.xlu0 %1859
      %1861 = vrot.lane.b32.xlu0 %v1529, 2
      %v1862 = vpop.permute.xlu0 %1861
      %1863 = vrot.lane.b32.xlu0 %v1534, 2
      %v1864 = vpop.permute.xlu0 %1863
      %1865 = vrot.lane.b32.xlu0 %v1525, 2
      %v1866 = vpop.permute.xlu0 %1865
      %1867 = vrot.lane.b32.xlu0 %v1530, 2
      %v1868 = vpop.permute.xlu0 %1867
      %1869 = vrot.lane.b32.xlu0 %v1535, 2
      %v1870 = vpop.permute.xlu0 %1869
      %1871 = vrot.lane.b32.xlu0 %v1526, 2
      %v1872 = vpop.permute.xlu0 %1871
      %1873 = vrot.lane.b32.xlu0 %v1531, 2
      %v1874 = vpop.permute.xlu0 %1873
      %1875 = vrot.lane.b32.xlu0 %v1536, 2
      %v1876 = vpop.permute.xlu0 %1875
      %1877 = vrot.lane.b32.xlu0 %v1527, 2
      %v1878 = vpop.permute.xlu0 %1877
      %1879 = vrot.lane.b32.xlu0 %v1532, 2
      %v1880 = vpop.permute.xlu0 %1879
      %1881 = vrot.lane.b32.xlu0 %v1537, 2
      %v1882 = vpop.permute.xlu0 %1881
      %v1883 = vsel %vm406, %v1872, %v1878
      %v1884 = vsel %vm406, %v1874, %v1880
      %v1885 = vsel %vm406, %v1876, %v1882
      %v1886 = vsel %vm406, %v1866, %v1872
      %v1887 = vsel %vm406, %v1868, %v1874
      %v1888 = vsel %vm406, %v1870, %v1876
      %v1889 = vsel %vm406, %v1860, %v1866
      %v1890 = vsel %vm406, %v1862, %v1868
      %v1891 = vsel %vm406, %v1864, %v1870
      %v1892 = vsel %vm406, %v1854, %v1860
      %v1893 = vsel %vm406, %v1856, %v1862
      %v1894 = vsel %vm406, %v1858, %v1864
      %v1895 = vsel %vm406, %v1878, %v1854
      %v1896 = vsel %vm406, %v1880, %v1856
      %v1897 = vsel %vm406, %v1882, %v1858
      %1898 = vrot.lane.b32.xlu0 %v1523, 1
      %v1899 = vpop.permute.xlu0 %1898
      %1900 = vrot.lane.b32.xlu0 %v1528, 1
      %v1901 = vpop.permute.xlu0 %1900
      %1902 = vrot.lane.b32.xlu0 %v1533, 1
      %v1903 = vpop.permute.xlu0 %1902
      %1904 = vrot.lane.b32.xlu0 %v1524, 1
      %v1905 = vpop.permute.xlu0 %1904
      %1906 = vrot.lane.b32.xlu0 %v1529, 1
      %v1907 = vpop.permute.xlu0 %1906
      %1908 = vrot.lane.b32.xlu0 %v1534, 1
      %v1909 = vpop.permute.xlu0 %1908
      %1910 = vrot.lane.b32.xlu0 %v1525, 1
      %v1911 = vpop.permute.xlu0 %1910
      %1912 = vrot.lane.b32.xlu0 %v1530, 1
      %v1913 = vpop.permute.xlu0 %1912
      %1914 = vrot.lane.b32.xlu0 %v1535, 1
      %v1915 = vpop.permute.xlu0 %1914
      %1916 = vrot.lane.b32.xlu0 %v1526, 1
      %v1917 = vpop.permute.xlu0 %1916
      %1918 = vrot.lane.b32.xlu0 %v1531, 1
      %v1919 = vpop.permute.xlu0 %1918
      %1920 = vrot.lane.b32.xlu0 %v1536, 1
      %v1921 = vpop.permute.xlu0 %1920
      %1922 = vrot.lane.b32.xlu0 %v1527, 1
      %v1923 = vpop.permute.xlu0 %1922
      %1924 = vrot.lane.b32.xlu0 %v1532, 1
      %v1925 = vpop.permute.xlu0 %1924
      %1926 = vrot.lane.b32.xlu0 %v1537, 1
      %v1927 = vpop.permute.xlu0 %1926
      %v1928 = vsel %vm422, %v1917, %v1923
      %v1929 = vsel %vm422, %v1919, %v1925
      %v1930 = vsel %vm422, %v1921, %v1927
      %v1931 = vsel %vm422, %v1911, %v1917
      %v1932 = vsel %vm422, %v1913, %v1919
      %v1933 = vsel %vm422, %v1915, %v1921
      %v1934 = vsel %vm422, %v1905, %v1911
      %v1935 = vsel %vm422, %v1907, %v1913
      %v1936 = vsel %vm422, %v1909, %v1915
      %v1937 = vsel %vm422, %v1899, %v1905
      %v1938 = vsel %vm422, %v1901, %v1907
      %v1939 = vsel %vm422, %v1903, %v1909
      %v1940 = vsel %vm422, %v1923, %v1899
      %v1941 = vsel %vm422, %v1925, %v1901
      %v1942 = vsel %vm422, %v1927, %v1903
      %s1943 = scalar_lea.vmem %s3, 48
      %v1944 = vld [vmem:[%s1943] sm:$0xff]
      %v1945 = vld [vmem:[%s1943 + $0x8] sm:$0xff]
      %v1946 = vld [vmem:[%s1943 + $0x10] sm:$0xff]
      %1948 = vset.pattern.permute.xlu0 0
      %1949 = vperm.xlu0 %1948, %v1944
      %v1950 = vpop.permute.xlu0 %1949
      %1953 = vset.pattern.permute.xlu0 0
      %1954 = vperm.xlu0 %1953, %v1945
      %v1955 = vpop.permute.xlu0 %1954
      %1958 = vset.pattern.permute.xlu0 0
      %1959 = vperm.xlu0 %1958, %v1946
      %v1960 = vpop.permute.xlu0 %1959
      %v1963 = vsel %vm1215, %v1518, 0
      %v1966 = vsel %vm1215, %v1520, 0
      %v1969 = vsel %vm1215, %v1522, 0
      %1971 = vmatprep.subr.mxu0 %v1577
      %1972 = vmatpush1.msra.mxu0 %v1580
      %1973 = vmatprep.subr.mxu0 %v1578
      %1974 = vmatpush1.msra.mxu0 %v1581
      %1975 = vmatprep.subr.mxu0 %v1579
      %1976 = vmatpush1.msra.mxu0 %v1582
      %1977 = vmatprep.subr.mxu0 %v1622
      %1978 = vmatpush1.msra.mxu0 %v1625
      %1979 = vmatprep.subr.mxu0 %v1623
      %1980 = vmatpush1.msra.mxu0 %v1626
      %1981 = vmatprep.subr.mxu0 %v1624
      %1982 = vmatpush1.msra.mxu0 %v1627
      %1983 = vmatprep.subr.mxu0 %v1667
      %1984 = vmatpush1.msra.mxu0 %v1670
      %1985 = vmatprep.subr.mxu0 %v1668
      %1986 = vmatpush1.msra.mxu0 %v1671
      %1987 = vmatprep.subr.mxu0 %v1669
      %1988 = vmatpush1.msra.mxu0 %v1672
      %1989 = vmatprep.subr.mxu0 %v1712
      %1990 = vmatpush1.msra.mxu0 %v1715
      %1991 = vmatprep.subr.mxu0 %v1713
      %1992 = vmatpush1.msra.mxu0 %v1716
      %1993 = vmatprep.subr.mxu0 %v1714
      %1994 = vmatpush1.msra.mxu0 %v1717
      %1995 = vmatprep.subr.mxu0 %v1757
      %1996 = vmatpush1.msra.mxu0 %v1760
      %1997 = vmatprep.subr.mxu0 %v1758
      %1998 = vmatpush1.msra.mxu0 %v1761
      %1999 = vmatprep.subr.mxu0 %v1759
      %2000 = vmatpush1.msra.mxu0 %v1762
      %2001 = vmatprep.subr.mxu0 %v1802
      %2002 = vmatpush1.msra.mxu0 %v1805
      %2003 = vmatprep.subr.mxu0 %v1803
      %2004 = vmatpush1.msra.mxu0 %v1806
      %2005 = vmatprep.subr.mxu0 %v1804
      %2006 = vmatpush1.msra.mxu0 %v1807
      %2007 = vmatprep.subr.mxu0 %v1847
      %2008 = vmatpush1.msra.mxu0 %v1850
      %2009 = vmatprep.subr.mxu0 %v1848
      %2010 = vmatpush1.msra.mxu0 %v1851
      %2011 = vmatprep.subr.mxu0 %v1849
      %2012 = vmatpush1.msra.mxu0 %v1852
      %2013 = vmatprep.subr.mxu0 %v1892
      %2014 = vmatpush1.msra.mxu0 %v1895
      %2015 = vmatprep.subr.mxu0 %v1893
      %2016 = vmatpush1.msra.mxu0 %v1896
      %2017 = vmatprep.subr.mxu0 %v1894
      %2018 = vmatpush1.msra.mxu0 %v1897
      %2019 = vmatprep.subr.mxu0 %v1937
      %2020 = vmatpush1.msra.mxu0 %v1940
      %2021 = vmatprep.subr.mxu0 %v1938
      %2022 = vmatpush1.msra.mxu0 %v1941
      %2023 = vmatprep.subr.mxu0 %v1939
      %2024 = vmatpush1.msra.mxu0 %v1942
      %2025 = vmatprep.subr.mxu0 0.0
      %2026 = vmatpush1.msra.mxu0 0.0
      %2027 = vmatprep.subr.mxu0 0.0
      %2028 = vmatpush1.msra.mxu0 0.0
      %2029 = vmatprep.subr.mxu0 0.0
      %2030 = vmatpush1.msra.mxu0 0.0
      %2031 = vmatprep.subr.mxu0 0.0
      %2032 = vmatpush1.msra.mxu0 0.0
      %2033 = vmatprep.subr.mxu0 0.0
      %2034 = vmatpush1.msra.mxu0 0.0
      %2035 = vmatprep.mubr.f32.mxu0 %v1963
      %2036 = vmatmul.mubr.f32.gmra.mrb[0].mxu0 %v1517
      %v2037 = vpop.f32.mrb[0].mxu0
      %v2038 = vadd.f32 %v1950, %v2037
      %v2039 = vpop.f32.mrb[0].mxu0
      %v2040 = vadd.f32 %v1950, %v2039
      %2041 = vmatprep.mubr.f32.mxu0 %v1966
      %2042 = vmatmul.mubr.f32.gmra.mrb[0].mxu0 %v1519
      %v2043 = vpop.f32.mrb[0].mxu0
      %v2044 = vadd.f32 %v1955, %v2043
      %v2045 = vpop.f32.mrb[0].mxu0
      %v2046 = vadd.f32 %v1955, %v2045
      %2047 = vmatprep.mubr.f32.mxu0 %v1969
      %2048 = vmatmul.mubr.f32.gmra.mrb[0].mxu0 %v1521
      %v2049 = vpop.f32.mrb[0].mxu0
      %v2050 = vadd.f32 %v1960, %v2049
      %v2051 = vpop.f32.mrb[0].mxu0
      %v2052 = vadd.f32 %v1960, %v2051
      %2053 = vdwg.mxu0
      %2054 = vmatprep.subr.mxu0 %v1571
      %2055 = vmatpush1.msra.mxu0 %v1574
      %2056 = vmatprep.subr.mxu0 %v1572
      %2057 = vmatpush1.msra.mxu0 %v1575
      %2058 = vmatprep.subr.mxu0 %v1573
      %2059 = vmatpush1.msra.mxu0 %v1576
      %2060 = vmatprep.subr.mxu0 %v1616
      %2061 = vmatpush1.msra.mxu0 %v1619
      %2062 = vmatprep.subr.mxu0 %v1617
      %2063 = vmatpush1.msra.mxu0 %v1620
      %2064 = vmatprep.subr.mxu0 %v1618
      %2065 = vmatpush1.msra.mxu0 %v1621
      %2066 = vmatprep.subr.mxu0 %v1661
      %2067 = vmatpush1.msra.mxu0 %v1664
      %2068 = vmatprep.subr.mxu0 %v1662
      %2069 = vmatpush1.msra.mxu0 %v1665
      %2070 = vmatprep.subr.mxu0 %v1663
      %2071 = vmatpush1.msra.mxu0 %v1666
      %2072 = vmatprep.subr.mxu0 %v1706
      %2073 = vmatpush1.msra.mxu0 %v1709
      %2074 = vmatprep.subr.mxu0 %v1707
      %2075 = vmatpush1.msra.mxu0 %v1710
      %2076 = vmatprep.subr.mxu0 %v1708
      %2077 = vmatpush1.msra.mxu0 %v1711
      %2078 = vmatprep.subr.mxu0 %v1751
      %2079 = vmatpush1.msra.mxu0 %v1754
      %2080 = vmatprep.subr.mxu0 %v1752
      %2081 = vmatpush1.msra.mxu0 %v1755
      %2082 = vmatprep.subr.mxu0 %v1753
      %2083 = vmatpush1.msra.mxu0 %v1756
      %2084 = vmatprep.subr.mxu0 %v1796
      %2085 = vmatpush1.msra.mxu0 %v1799
      %2086 = vmatprep.subr.mxu0 %v1797
      %2087 = vmatpush1.msra.mxu0 %v1800
      %2088 = vmatprep.subr.mxu0 %v1798
      %2089 = vmatpush1.msra.mxu0 %v1801
      %2090 = vmatprep.subr.mxu0 %v1841
      %2091 = vmatpush1.msra.mxu0 %v1844
      %2092 = vmatprep.subr.mxu0 %v1842
      %2093 = vmatpush1.msra.mxu0 %v1845
      %2094 = vmatprep.subr.mxu0 %v1843
      %2095 = vmatpush1.msra.mxu0 %v1846
      %2096 = vmatprep.subr.mxu0 %v1886
      %2097 = vmatpush1.msra.mxu0 %v1889
      %2098 = vmatprep.subr.mxu0 %v1887
      %2099 = vmatpush1.msra.mxu0 %v1890
      %2100 = vmatprep.subr.mxu0 %v1888
      %2101 = vmatpush1.msra.mxu0 %v1891
      %2102 = vmatprep.subr.mxu0 %v1931
      %2103 = vmatpush1.msra.mxu0 %v1934
      %2104 = vmatprep.subr.mxu0 %v1932
      %2105 = vmatpush1.msra.mxu0 %v1935
      %2106 = vmatprep.subr.mxu0 %v1933
      %2107 = vmatpush1.msra.mxu0 %v1936
      %2108 = vmatprep.subr.mxu0 0.0
      %2109 = vmatpush1.msra.mxu0 0.0
      %2110 = vmatprep.subr.mxu0 0.0
      %2111 = vmatpush1.msra.mxu0 0.0
      %2112 = vmatprep.subr.mxu0 0.0
      %2113 = vmatpush1.msra.mxu0 0.0
      %2114 = vmatprep.subr.mxu0 0.0
      %2115 = vmatpush1.msra.mxu0 0.0
      %2116 = vmatprep.subr.mxu0 0.0
      %2117 = vmatpush1.msra.mxu0 0.0
      %2118 = vmatprep.mubr.f32.mxu0 %v1963
      %2119 = vmatmul.mubr.f32.gmra.mrb[0].mxu0 %v1517
      %v2120 = vpop.f32.mrb[0].mxu0
      %v2121 = vadd.f32 %v1950, %v2120
      %v2122 = vpop.f32.mrb[0].mxu0
      %v2123 = vadd.f32 %v1950, %v2122
      %2124 = vmatprep.mubr.f32.mxu0 %v1966
      %2125 = vmatmul.mubr.f32.gmra.mrb[0].mxu0 %v1519
      %v2126 = vpop.f32.mrb[0].mxu0
      %v2127 = vadd.f32 %v1955, %v2126
      %v2128 = vpop.f32.mrb[0].mxu0
      %v2129 = vadd.f32 %v1955, %v2128
      %2130 = vmatprep.mubr.f32.mxu0 %v1969
      %2131 = vmatmul.mubr.f32.gmra.mrb[0].mxu0 %v1521
      %v2132 = vpop.f32.mrb[0].mxu0
      %v2133 = vadd.f32 %v1960, %v2132
      %v2134 = vpop.f32.mrb[0].mxu0
      %v2135 = vadd.f32 %v1960, %v2134
      %2136 = vdwg.mxu0
      %2137 = vmatprep.subr.mxu0 0.0
      %2138 = vmatpush1.msra.mxu0 %v1568
      %2139 = vmatprep.subr.mxu0 0.0
      %2140 = vmatpush1.msra.mxu0 %v1569
      %2141 = vmatprep.subr.mxu0 0.0
      %2142 = vmatpush1.msra.mxu0 %v1570
      %2143 = vmatprep.subr.mxu0 0.0
      %2144 = vmatpush1.msra.mxu0 %v1613
      %2145 = vmatprep.subr.mxu0 0.0
      %2146 = vmatpush1.msra.mxu0 %v1614
      %2147 = vmatprep.subr.mxu0 0.0
      %2148 = vmatpush1.msra.mxu0 %v1615
      %2149 = vmatprep.subr.mxu0 0.0
      %2150 = vmatpush1.msra.mxu0 %v1658
      %2151 = vmatprep.subr.mxu0 0.0
      %2152 = vmatpush1.msra.mxu0 %v1659
      %2153 = vmatprep.subr.mxu0 0.0
      %2154 = vmatpush1.msra.mxu0 %v1660
      %2155 = vmatprep.subr.mxu0 0.0
      %2156 = vmatpush1.msra.mxu0 %v1703
      %2157 = vmatprep.subr.mxu0 0.0
      %2158 = vmatpush1.msra.mxu0 %v1704
      %2159 = vmatprep.subr.mxu0 0.0
      %2160 = vmatpush1.msra.mxu0 %v1705
      %2161 = vmatprep.subr.mxu0 0.0
      %2162 = vmatpush1.msra.mxu0 %v1748
      %2163 = vmatprep.subr.mxu0 0.0
      %2164 = vmatpush1.msra.mxu0 %v1749
      %2165 = vmatprep.subr.mxu0 0.0
      %2166 = vmatpush1.msra.mxu0 %v1750
      %2167 = vmatprep.subr.mxu0 0.0
      %2168 = vmatpush1.msra.mxu0 %v1793
      %2169 = vmatprep.subr.mxu0 0.0
      %2170 = vmatpush1.msra.mxu0 %v1794
      %2171 = vmatprep.subr.mxu0 0.0
      %2172 = vmatpush1.msra.mxu0 %v1795
      %2173 = vmatprep.subr.mxu0 0.0
      %2174 = vmatpush1.msra.mxu0 %v1838
      %2175 = vmatprep.subr.mxu0 0.0
      %2176 = vmatpush1.msra.mxu0 %v1839
      %2177 = vmatprep.subr.mxu0 0.0
      %2178 = vmatpush1.msra.mxu0 %v1840
      %2179 = vmatprep.subr.mxu0 0.0
      %2180 = vmatpush1.msra.mxu0 %v1883
      %2181 = vmatprep.subr.mxu0 0.0
      %2182 = vmatpush1.msra.mxu0 %v1884
      %2183 = vmatprep.subr.mxu0 0.0
      %2184 = vmatpush1.msra.mxu0 %v1885
      %2185 = vmatprep.subr.mxu0 0.0
      %2186 = vmatpush1.msra.mxu0 %v1928
      %2187 = vmatprep.subr.mxu0 0.0
      %2188 = vmatpush1.msra.mxu0 %v1929
      %2189 = vmatprep.subr.mxu0 0.0
      %2190 = vmatpush1.msra.mxu0 %v1930
      %2191 = vmatprep.subr.mxu0 0.0
      %2192 = vmatpush1.msra.mxu0 0.0
      %2193 = vmatprep.subr.mxu0 0.0
      %2194 = vmatpush1.msra.mxu0 0.0
      %2195 = vmatprep.subr.mxu0 0.0
      %2196 = vmatpush1.msra.mxu0 0.0
      %2197 = vmatprep.subr.mxu0 0.0
      %2198 = vmatpush1.msra.mxu0 0.0
      %2199 = vmatprep.subr.mxu0 0.0
      %2200 = vmatpush1.msra.mxu0 0.0
      %2201 = vmatprep.mubr.f32.mxu0 %v1963
      %2202 = vmatmul.mubr.f32.gmra.mrb[0].mxu0 %v1517
      %v2203 = vpop.f32.mrb[0].mxu0
      %v2204 = vadd.f32 %v1950, %v2203
      %v2205 = vpop.f32.mrb[0].mxu0
      %2206 = vmatprep.mubr.f32.mxu0 %v1966
      %2207 = vmatmul.mubr.f32.gmra.mrb[0].mxu0 %v1519
      %v2208 = vpop.f32.mrb[0].mxu0
      %v2209 = vadd.f32 %v1955, %v2208
      %v2210 = vpop.f32.mrb[0].mxu0
      %2211 = vmatprep.mubr.f32.mxu0 %v1969
      %2212 = vmatmul.mubr.f32.gmra.mrb[0].mxu0 %v1521
      %v2213 = vpop.f32.mrb[0].mxu0
      %v2214 = vadd.f32 %v1960, %v2213
      %v2215 = vpop.f32.mrb[0].mxu0
      %2216 = vdwg.mxu0
      %v2217 = vadd.f32 %v523, %v2038
      %v2218 = vadd.f32 %v525, %v2040
      %v2219 = vadd.f32 %v606, %v2121
      %v2220 = vadd.f32 %v608, %v2123
      %v2221 = vadd.f32 %v689, %v2204
      %v2222 = vadd.f32 %v529, %v2044
      %v2223 = vadd.f32 %v531, %v2046
      %v2224 = vadd.f32 %v612, %v2127
      %v2225 = vadd.f32 %v614, %v2129
      %v2226 = vadd.f32 %v694, %v2209
      %v2227 = vadd.f32 %v535, %v2050
      %v2228 = vadd.f32 %v537, %v2052
      %v2229 = vadd.f32 %v618, %v2133
      %v2230 = vadd.f32 %v620, %v2135
      %v2231 = vadd.f32 %v699, %v2214
      %s2232 = scalar_lea.vmem %s3, 192
      %v2233 = vld [vmem:[%s2232] sm:$0xff]
      %v2234 = vld [vmem:[%s2232 + $0x8] sm:$0xff]
      %v2235 = vld [vmem:[%s2232 + $0x10] sm:$0xff]
      %2237 = vset.pattern.permute.xlu0 0
      %2238 = vperm.xlu0 %2237, %v2233
      %v2239 = vpop.permute.xlu0 %2238
      %2242 = vset.pattern.permute.xlu0 0
      %2243 = vperm.xlu0 %2242, %v2234
      %v2244 = vpop.permute.xlu0 %2243
      %2247 = vset.pattern.permute.xlu0 0
      %2248 = vperm.xlu0 %2247, %v2235
      %v2249 = vpop.permute.xlu0 %2248
      %v2251 = vmul.f32 %v2217, %v2239
      %v2252 = vmul.f32 %v2218, %v2239
      %v2253 = vmul.f32 %v2219, %v2239
      %v2254 = vmul.f32 %v2220, %v2239
      %v2255 = vmul.f32 %v2221, %v2239
      %v2256 = vmul.f32 %v2222, %v2244
      %v2257 = vmul.f32 %v2223, %v2244
      %v2258 = vmul.f32 %v2224, %v2244
      %v2259 = vmul.f32 %v2225, %v2244
      %v2260 = vmul.f32 %v2226, %v2244
      %v2261 = vmul.f32 %v2227, %v2249
      %v2262 = vmul.f32 %v2228, %v2249
      %v2263 = vmul.f32 %v2229, %v2249
      %v2264 = vmul.f32 %v2230, %v2249
      %v2265 = vmul.f32 %v2231, %v2249
      %s2266 = scalar_lea.vmem %s3, 216
      %v2267 = vld [vmem:[%s2266] sm:$0xff]
      %v2268 = vld [vmem:[%s2266 + $0x8] sm:$0xff]
      %v2269 = vld [vmem:[%s2266 + $0x10] sm:$0xff]
      %2271 = vset.pattern.permute.xlu0 0
      %2272 = vperm.xlu0 %2271, %v2267
      %v2273 = vpop.permute.xlu0 %2272
      %2276 = vset.pattern.permute.xlu0 0
      %2277 = vperm.xlu0 %2276, %v2268
      %v2278 = vpop.permute.xlu0 %2277
      %2281 = vset.pattern.permute.xlu0 0
      %2282 = vperm.xlu0 %2281, %v2269
      %v2283 = vpop.permute.xlu0 %2282
      %v2285 = vadd.f32 %v2251, %v2273
      %v2286 = vadd.f32 %v2252, %v2273
      %v2287 = vadd.f32 %v2253, %v2273
      %v2288 = vadd.f32 %v2254, %v2273
      %v2289 = vadd.f32 %v2255, %v2273
      %v2290 = vadd.f32 %v2256, %v2278
      %v2291 = vadd.f32 %v2257, %v2278
      %v2292 = vadd.f32 %v2258, %v2278
      %v2293 = vadd.f32 %v2259, %v2278
      %v2294 = vadd.f32 %v2260, %v2278
      %v2295 = vadd.f32 %v2261, %v2283
      %v2296 = vadd.f32 %v2262, %v2283
      %v2297 = vadd.f32 %v2263, %v2283
      %v2298 = vadd.f32 %v2264, %v2283
      %v2299 = vadd.f32 %v2265, %v2283
      %s2300 = scalar_lea.vmem %s2, 96
      %v2301 = vld [vmem:[%s2300] sm:$0xff]
      %v2302 = vld [vmem:[%s2300 + $0x8] sm:$0xff]
      %v2303 = vld [vmem:[%s2300 + $0x10] sm:$0xff]
      %v2304 = vld [vmem:[%s2300 + $0x18] sm:$0xff]
      %v2305 = vld [vmem:[%s2300 + $0x20] sm:$0xff]
      %v2306 = vld [vmem:[%s2300 + $0x28] sm:$0xff]
      %v2307 = vmul.f32 %v2285, %v252
      %v2308 = vmul.f32 %v2286, %v256
      %v2309 = vmul.f32 %v2287, %v260
      %v2310 = vmul.f32 %v2288, %v264
      %v2311 = vmul.f32 %v2289, %v268
      %v2312 = vmul.f32 %v2290, %v252
      %v2313 = vmul.f32 %v2291, %v256
      %v2314 = vmul.f32 %v2292, %v260
      %v2315 = vmul.f32 %v2293, %v264
      %v2316 = vmul.f32 %v2294, %v268
      %v2317 = vmul.f32 %v2295, %v252
      %v2318 = vmul.f32 %v2296, %v256
      %v2319 = vmul.f32 %v2297, %v260
      %v2320 = vmul.f32 %v2298, %v264
      %v2321 = vmul.f32 %v2299, %v268
      %2322 = vrot.lane.b32.xlu0 %v2307, 9
      %v2323 = vpop.permute.xlu0 %2322
      %2324 = vrot.lane.b32.xlu0 %v2312, 9
      %v2325 = vpop.permute.xlu0 %2324
      %2326 = vrot.lane.b32.xlu0 %v2317, 9
      %v2327 = vpop.permute.xlu0 %2326
      %2328 = vrot.lane.b32.xlu0 %v2308, 9
      %v2329 = vpop.permute.xlu0 %2328
      %2330 = vrot.lane.b32.xlu0 %v2313, 9
      %v2331 = vpop.permute.xlu0 %2330
      %2332 = vrot.lane.b32.xlu0 %v2318, 9
      %v2333 = vpop.permute.xlu0 %2332
      %2334 = vrot.lane.b32.xlu0 %v2309, 9
      %v2335 = vpop.permute.xlu0 %2334
      %2336 = vrot.lane.b32.xlu0 %v2314, 9
      %v2337 = vpop.permute.xlu0 %2336
      %2338 = vrot.lane.b32.xlu0 %v2319, 9
      %v2339 = vpop.permute.xlu0 %2338
      %2340 = vrot.lane.b32.xlu0 %v2310, 9
      %v2341 = vpop.permute.xlu0 %2340
      %2342 = vrot.lane.b32.xlu0 %v2315, 9
      %v2343 = vpop.permute.xlu0 %2342
      %2344 = vrot.lane.b32.xlu0 %v2320, 9
      %v2345 = vpop.permute.xlu0 %2344
      %2346 = vrot.lane.b32.xlu0 %v2311, 9
      %v2347 = vpop.permute.xlu0 %2346
      %2348 = vrot.lane.b32.xlu0 %v2316, 9
      %v2349 = vpop.permute.xlu0 %2348
      %2350 = vrot.lane.b32.xlu0 %v2321, 9
      %v2351 = vpop.permute.xlu0 %2350
      %v2352 = vsel %vm294, %v2341, %v2347
      %v2353 = vsel %vm294, %v2343, %v2349
      %v2354 = vsel %vm294, %v2345, %v2351
      %v2355 = vsel %vm294, %v2335, %v2341
      %v2356 = vsel %vm294, %v2337, %v2343
      %v2357 = vsel %vm294, %v2339, %v2345
      %v2358 = vsel %vm294, %v2329, %v2335
      %v2359 = vsel %vm294, %v2331, %v2337
      %v2360 = vsel %vm294, %v2333, %v2339
      %v2361 = vsel %vm294, %v2323, %v2329
      %v2362 = vsel %vm294, %v2325, %v2331
      %v2363 = vsel %vm294, %v2327, %v2333
      %v2364 = vsel %vm294, %v2347, %v2323
      %v2365 = vsel %vm294, %v2349, %v2325
      %v2366 = vsel %vm294, %v2351, %v2327
      %2367 = vrot.lane.b32.xlu0 %v2307, 8
      %v2368 = vpop.permute.xlu0 %2367
      %2369 = vrot.lane.b32.xlu0 %v2312, 8
      %v2370 = vpop.permute.xlu0 %2369
      %2371 = vrot.lane.b32.xlu0 %v2317, 8
      %v2372 = vpop.permute.xlu0 %2371
      %2373 = vrot.lane.b32.xlu0 %v2308, 8
      %v2374 = vpop.permute.xlu0 %2373
      %2375 = vrot.lane.b32.xlu0 %v2313, 8
      %v2376 = vpop.permute.xlu0 %2375
      %2377 = vrot.lane.b32.xlu0 %v2318, 8
      %v2378 = vpop.permute.xlu0 %2377
      %2379 = vrot.lane.b32.xlu0 %v2309, 8
      %v2380 = vpop.permute.xlu0 %2379
      %2381 = vrot.lane.b32.xlu0 %v2314, 8
      %v2382 = vpop.permute.xlu0 %2381
      %2383 = vrot.lane.b32.xlu0 %v2319, 8
      %v2384 = vpop.permute.xlu0 %2383
      %2385 = vrot.lane.b32.xlu0 %v2310, 8
      %v2386 = vpop.permute.xlu0 %2385
      %2387 = vrot.lane.b32.xlu0 %v2315, 8
      %v2388 = vpop.permute.xlu0 %2387
      %2389 = vrot.lane.b32.xlu0 %v2320, 8
      %v2390 = vpop.permute.xlu0 %2389
      %2391 = vrot.lane.b32.xlu0 %v2311, 8
      %v2392 = vpop.permute.xlu0 %2391
      %2393 = vrot.lane.b32.xlu0 %v2316, 8
      %v2394 = vpop.permute.xlu0 %2393
      %2395 = vrot.lane.b32.xlu0 %v2321, 8
      %v2396 = vpop.permute.xlu0 %2395
      %v2397 = vsel %vm310, %v2386, %v2392
      %v2398 = vsel %vm310, %v2388, %v2394
      %v2399 = vsel %vm310, %v2390, %v2396
      %v2400 = vsel %vm310, %v2380, %v2386
      %v2401 = vsel %vm310, %v2382, %v2388
      %v2402 = vsel %vm310, %v2384, %v2390
      %v2403 = vsel %vm310, %v2374, %v2380
      %v2404 = vsel %vm310, %v2376, %v2382
      %v2405 = vsel %vm310, %v2378, %v2384
      %v2406 = vsel %vm310, %v2368, %v2374
      %v2407 = vsel %vm310, %v2370, %v2376
      %v2408 = vsel %vm310, %v2372, %v2378
      %v2409 = vsel %vm310, %v2392, %v2368
      %v2410 = vsel %vm310, %v2394, %v2370
      %v2411 = vsel %vm310, %v2396, %v2372
      %2412 = vrot.lane.b32.xlu0 %v2307, 7
      %v2413 = vpop.permute.xlu0 %2412
      %2414 = vrot.lane.b32.xlu0 %v2312, 7
      %v2415 = vpop.permute.xlu0 %2414
      %2416 = vrot.lane.b32.xlu0 %v2317, 7
      %v2417 = vpop.permute.xlu0 %2416
      %2418 = vrot.lane.b32.xlu0 %v2308, 7
      %v2419 = vpop.permute.xlu0 %2418
      %2420 = vrot.lane.b32.xlu0 %v2313, 7
      %v2421 = vpop.permute.xlu0 %2420
      %2422 = vrot.lane.b32.xlu0 %v2318, 7
      %v2423 = vpop.permute.xlu0 %2422
      %2424 = vrot.lane.b32.xlu0 %v2309, 7
      %v2425 = vpop.permute.xlu0 %2424
      %2426 = vrot.lane.b32.xlu0 %v2314, 7
      %v2427 = vpop.permute.xlu0 %2426
      %2428 = vrot.lane.b32.xlu0 %v2319, 7
      %v2429 = vpop.permute.xlu0 %2428
      %2430 = vrot.lane.b32.xlu0 %v2310, 7
      %v2431 = vpop.permute.xlu0 %2430
      %2432 = vrot.lane.b32.xlu0 %v2315, 7
      %v2433 = vpop.permute.xlu0 %2432
      %2434 = vrot.lane.b32.xlu0 %v2320, 7
      %v2435 = vpop.permute.xlu0 %2434
      %2436 = vrot.lane.b32.xlu0 %v2311, 7
      %v2437 = vpop.permute.xlu0 %2436
      %2438 = vrot.lane.b32.xlu0 %v2316, 7
      %v2439 = vpop.permute.xlu0 %2438
      %2440 = vrot.lane.b32.xlu0 %v2321, 7
      %v2441 = vpop.permute.xlu0 %2440
      %v2442 = vsel %vm326, %v2431, %v2437
      %v2443 = vsel %vm326, %v2433, %v2439
      %v2444 = vsel %vm326, %v2435, %v2441
      %v2445 = vsel %vm326, %v2425, %v2431
      %v2446 = vsel %vm326, %v2427, %v2433
      %v2447 = vsel %vm326, %v2429, %v2435
      %v2448 = vsel %vm326, %v2419, %v2425
      %v2449 = vsel %vm326, %v2421, %v2427
      %v2450 = vsel %vm326, %v2423, %v2429
      %v2451 = vsel %vm326, %v2413, %v2419
      %v2452 = vsel %vm326, %v2415, %v2421
      %v2453 = vsel %vm326, %v2417, %v2423
      %v2454 = vsel %vm326, %v2437, %v2413
      %v2455 = vsel %vm326, %v2439, %v2415
      %v2456 = vsel %vm326, %v2441, %v2417
      %2457 = vrot.lane.b32.xlu0 %v2307, 6
      %v2458 = vpop.permute.xlu0 %2457
      %2459 = vrot.lane.b32.xlu0 %v2312, 6
      %v2460 = vpop.permute.xlu0 %2459
      %2461 = vrot.lane.b32.xlu0 %v2317, 6
      %v2462 = vpop.permute.xlu0 %2461
      %2463 = vrot.lane.b32.xlu0 %v2308, 6
      %v2464 = vpop.permute.xlu0 %2463
      %2465 = vrot.lane.b32.xlu0 %v2313, 6
      %v2466 = vpop.permute.xlu0 %2465
      %2467 = vrot.lane.b32.xlu0 %v2318, 6
      %v2468 = vpop.permute.xlu0 %2467
      %2469 = vrot.lane.b32.xlu0 %v2309, 6
      %v2470 = vpop.permute.xlu0 %2469
      %2471 = vrot.lane.b32.xlu0 %v2314, 6
      %v2472 = vpop.permute.xlu0 %2471
      %2473 = vrot.lane.b32.xlu0 %v2319, 6
      %v2474 = vpop.permute.xlu0 %2473
      %2475 = vrot.lane.b32.xlu0 %v2310, 6
      %v2476 = vpop.permute.xlu0 %2475
      %2477 = vrot.lane.b32.xlu0 %v2315, 6
      %v2478 = vpop.permute.xlu0 %2477
      %2479 = vrot.lane.b32.xlu0 %v2320, 6
      %v2480 = vpop.permute.xlu0 %2479
      %2481 = vrot.lane.b32.xlu0 %v2311, 6
      %v2482 = vpop.permute.xlu0 %2481
      %2483 = vrot.lane.b32.xlu0 %v2316, 6
      %v2484 = vpop.permute.xlu0 %2483
      %2485 = vrot.lane.b32.xlu0 %v2321, 6
      %v2486 = vpop.permute.xlu0 %2485
      %v2487 = vsel %vm342, %v2476, %v2482
      %v2488 = vsel %vm342, %v2478, %v2484
      %v2489 = vsel %vm342, %v2480, %v2486
      %v2490 = vsel %vm342, %v2470, %v2476
      %v2491 = vsel %vm342, %v2472, %v2478
      %v2492 = vsel %vm342, %v2474, %v2480
      %v2493 = vsel %vm342, %v2464, %v2470
      %v2494 = vsel %vm342, %v2466, %v2472
      %v2495 = vsel %vm342, %v2468, %v2474
      %v2496 = vsel %vm342, %v2458, %v2464
      %v2497 = vsel %vm342, %v2460, %v2466
      %v2498 = vsel %vm342, %v2462, %v2468
      %v2499 = vsel %vm342, %v2482, %v2458
      %v2500 = vsel %vm342, %v2484, %v2460
      %v2501 = vsel %vm342, %v2486, %v2462
      %2502 = vrot.lane.b32.xlu0 %v2307, 5
      %v2503 = vpop.permute.xlu0 %2502
      %2504 = vrot.lane.b32.xlu0 %v2312, 5
      %v2505 = vpop.permute.xlu0 %2504
      %2506 = vrot.lane.b32.xlu0 %v2317, 5
      %v2507 = vpop.permute.xlu0 %2506
      %2508 = vrot.lane.b32.xlu0 %v2308, 5
      %v2509 = vpop.permute.xlu0 %2508
      %2510 = vrot.lane.b32.xlu0 %v2313, 5
      %v2511 = vpop.permute.xlu0 %2510
      %2512 = vrot.lane.b32.xlu0 %v2318, 5
      %v2513 = vpop.permute.xlu0 %2512
      %2514 = vrot.lane.b32.xlu0 %v2309, 5
      %v2515 = vpop.permute.xlu0 %2514
      %2516 = vrot.lane.b32.xlu0 %v2314, 5
      %v2517 = vpop.permute.xlu0 %2516
      %2518 = vrot.lane.b32.xlu0 %v2319, 5
      %v2519 = vpop.permute.xlu0 %2518
      %2520 = vrot.lane.b32.xlu0 %v2310, 5
      %v2521 = vpop.permute.xlu0 %2520
      %2522 = vrot.lane.b32.xlu0 %v2315, 5
      %v2523 = vpop.permute.xlu0 %2522
      %2524 = vrot.lane.b32.xlu0 %v2320, 5
      %v2525 = vpop.permute.xlu0 %2524
      %2526 = vrot.lane.b32.xlu0 %v2311, 5
      %v2527 = vpop.permute.xlu0 %2526
      %2528 = vrot.lane.b32.xlu0 %v2316, 5
      %v2529 = vpop.permute.xlu0 %2528
      %2530 = vrot.lane.b32.xlu0 %v2321, 5
      %v2531 = vpop.permute.xlu0 %2530
      %v2532 = vsel %vm358, %v2521, %v2527
      %v2533 = vsel %vm358, %v2523, %v2529
      %v2534 = vsel %vm358, %v2525, %v2531
      %v2535 = vsel %vm358, %v2515, %v2521
      %v2536 = vsel %vm358, %v2517, %v2523
      %v2537 = vsel %vm358, %v2519, %v2525
      %v2538 = vsel %vm358, %v2509, %v2515
      %v2539 = vsel %vm358, %v2511, %v2517
      %v2540 = vsel %vm358, %v2513, %v2519
      %v2541 = vsel %vm358, %v2503, %v2509
      %v2542 = vsel %vm358, %v2505, %v2511
      %v2543 = vsel %vm358, %v2507, %v2513
      %v2544 = vsel %vm358, %v2527, %v2503
      %v2545 = vsel %vm358, %v2529, %v2505
      %v2546 = vsel %vm358, %v2531, %v2507
      %2547 = vrot.lane.b32.xlu0 %v2307, 4
      %v2548 = vpop.permute.xlu0 %2547
      %2549 = vrot.lane.b32.xlu0 %v2312, 4
      %v2550 = vpop.permute.xlu0 %2549
      %2551 = vrot.lane.b32.xlu0 %v2317, 4
      %v2552 = vpop.permute.xlu0 %2551
      %2553 = vrot.lane.b32.xlu0 %v2308, 4
      %v2554 = vpop.permute.xlu0 %2553
      %2555 = vrot.lane.b32.xlu0 %v2313, 4
      %v2556 = vpop.permute.xlu0 %2555
      %2557 = vrot.lane.b32.xlu0 %v2318, 4
      %v2558 = vpop.permute.xlu0 %2557
      %2559 = vrot.lane.b32.xlu0 %v2309, 4
      %v2560 = vpop.permute.xlu0 %2559
      %2561 = vrot.lane.b32.xlu0 %v2314, 4
      %v2562 = vpop.permute.xlu0 %2561
      %2563 = vrot.lane.b32.xlu0 %v2319, 4
      %v2564 = vpop.permute.xlu0 %2563
      %2565 = vrot.lane.b32.xlu0 %v2310, 4
      %v2566 = vpop.permute.xlu0 %2565
      %2567 = vrot.lane.b32.xlu0 %v2315, 4
      %v2568 = vpop.permute.xlu0 %2567
      %2569 = vrot.lane.b32.xlu0 %v2320, 4
      %v2570 = vpop.permute.xlu0 %2569
      %2571 = vrot.lane.b32.xlu0 %v2311, 4
      %v2572 = vpop.permute.xlu0 %2571
      %2573 = vrot.lane.b32.xlu0 %v2316, 4
      %v2574 = vpop.permute.xlu0 %2573
      %2575 = vrot.lane.b32.xlu0 %v2321, 4
      %v2576 = vpop.permute.xlu0 %2575
      %v2577 = vsel %vm374, %v2566, %v2572
      %v2578 = vsel %vm374, %v2568, %v2574
      %v2579 = vsel %vm374, %v2570, %v2576
      %v2580 = vsel %vm374, %v2560, %v2566
      %v2581 = vsel %vm374, %v2562, %v2568
      %v2582 = vsel %vm374, %v2564, %v2570
      %v2583 = vsel %vm374, %v2554, %v2560
      %v2584 = vsel %vm374, %v2556, %v2562
      %v2585 = vsel %vm374, %v2558, %v2564
      %v2586 = vsel %vm374, %v2548, %v2554
      %v2587 = vsel %vm374, %v2550, %v2556
      %v2588 = vsel %vm374, %v2552, %v2558
      %v2589 = vsel %vm374, %v2572, %v2548
      %v2590 = vsel %vm374, %v2574, %v2550
      %v2591 = vsel %vm374, %v2576, %v2552
      %2592 = vrot.lane.b32.xlu0 %v2307, 3
      %v2593 = vpop.permute.xlu0 %2592
      %2594 = vrot.lane.b32.xlu0 %v2312, 3
      %v2595 = vpop.permute.xlu0 %2594
      %2596 = vrot.lane.b32.xlu0 %v2317, 3
      %v2597 = vpop.permute.xlu0 %2596
      %2598 = vrot.lane.b32.xlu0 %v2308, 3
      %v2599 = vpop.permute.xlu0 %2598
      %2600 = vrot.lane.b32.xlu0 %v2313, 3
      %v2601 = vpop.permute.xlu0 %2600
      %2602 = vrot.lane.b32.xlu0 %v2318, 3
      %v2603 = vpop.permute.xlu0 %2602
      %2604 = vrot.lane.b32.xlu0 %v2309, 3
      %v2605 = vpop.permute.xlu0 %2604
      %2606 = vrot.lane.b32.xlu0 %v2314, 3
      %v2607 = vpop.permute.xlu0 %2606
      %2608 = vrot.lane.b32.xlu0 %v2319, 3
      %v2609 = vpop.permute.xlu0 %2608
      %2610 = vrot.lane.b32.xlu0 %v2310, 3
      %v2611 = vpop.permute.xlu0 %2610
      %2612 = vrot.lane.b32.xlu0 %v2315, 3
      %v2613 = vpop.permute.xlu0 %2612
      %2614 = vrot.lane.b32.xlu0 %v2320, 3
      %v2615 = vpop.permute.xlu0 %2614
      %2616 = vrot.lane.b32.xlu0 %v2311, 3
      %v2617 = vpop.permute.xlu0 %2616
      %2618 = vrot.lane.b32.xlu0 %v2316, 3
      %v2619 = vpop.permute.xlu0 %2618
      %2620 = vrot.lane.b32.xlu0 %v2321, 3
      %v2621 = vpop.permute.xlu0 %2620
      %v2622 = vsel %vm390, %v2611, %v2617
      %v2623 = vsel %vm390, %v2613, %v2619
      %v2624 = vsel %vm390, %v2615, %v2621
      %v2625 = vsel %vm390, %v2605, %v2611
      %v2626 = vsel %vm390, %v2607, %v2613
      %v2627 = vsel %vm390, %v2609, %v2615
      %v2628 = vsel %vm390, %v2599, %v2605
      %v2629 = vsel %vm390, %v2601, %v2607
      %v2630 = vsel %vm390, %v2603, %v2609
      %v2631 = vsel %vm390, %v2593, %v2599
      %v2632 = vsel %vm390, %v2595, %v2601
      %v2633 = vsel %vm390, %v2597, %v2603
      %v2634 = vsel %vm390, %v2617, %v2593
      %v2635 = vsel %vm390, %v2619, %v2595
      %v2636 = vsel %vm390, %v2621, %v2597
      %2637 = vrot.lane.b32.xlu0 %v2307, 2
      %v2638 = vpop.permute.xlu0 %2637
      %2639 = vrot.lane.b32.xlu0 %v2312, 2
      %v2640 = vpop.permute.xlu0 %2639
      %2641 = vrot.lane.b32.xlu0 %v2317, 2
      %v2642 = vpop.permute.xlu0 %2641
      %2643 = vrot.lane.b32.xlu0 %v2308, 2
      %v2644 = vpop.permute.xlu0 %2643
      %2645 = vrot.lane.b32.xlu0 %v2313, 2
      %v2646 = vpop.permute.xlu0 %2645
      %2647 = vrot.lane.b32.xlu0 %v2318, 2
      %v2648 = vpop.permute.xlu0 %2647
      %2649 = vrot.lane.b32.xlu0 %v2309, 2
      %v2650 = vpop.permute.xlu0 %2649
      %2651 = vrot.lane.b32.xlu0 %v2314, 2
      %v2652 = vpop.permute.xlu0 %2651
      %2653 = vrot.lane.b32.xlu0 %v2319, 2
      %v2654 = vpop.permute.xlu0 %2653
      %2655 = vrot.lane.b32.xlu0 %v2310, 2
      %v2656 = vpop.permute.xlu0 %2655
      %2657 = vrot.lane.b32.xlu0 %v2315, 2
      %v2658 = vpop.permute.xlu0 %2657
      %2659 = vrot.lane.b32.xlu0 %v2320, 2
      %v2660 = vpop.permute.xlu0 %2659
      %2661 = vrot.lane.b32.xlu0 %v2311, 2
      %v2662 = vpop.permute.xlu0 %2661
      %2663 = vrot.lane.b32.xlu0 %v2316, 2
      %v2664 = vpop.permute.xlu0 %2663
      %2665 = vrot.lane.b32.xlu0 %v2321, 2
      %v2666 = vpop.permute.xlu0 %2665
      %v2667 = vsel %vm406, %v2656, %v2662
      %v2668 = vsel %vm406, %v2658, %v2664
      %v2669 = vsel %vm406, %v2660, %v2666
      %v2670 = vsel %vm406, %v2650, %v2656
      %v2671 = vsel %vm406, %v2652, %v2658
      %v2672 = vsel %vm406, %v2654, %v2660
      %v2673 = vsel %vm406, %v2644, %v2650
      %v2674 = vsel %vm406, %v2646, %v2652
      %v2675 = vsel %vm406, %v2648, %v2654
      %v2676 = vsel %vm406, %v2638, %v2644
      %v2677 = vsel %vm406, %v2640, %v2646
      %v2678 = vsel %vm406, %v2642, %v2648
      %v2679 = vsel %vm406, %v2662, %v2638
      %v2680 = vsel %vm406, %v2664, %v2640
      %v2681 = vsel %vm406, %v2666, %v2642
      %2682 = vrot.lane.b32.xlu0 %v2307, 1
      %v2683 = vpop.permute.xlu0 %2682
      %2684 = vrot.lane.b32.xlu0 %v2312, 1
      %v2685 = vpop.permute.xlu0 %2684
      %2686 = vrot.lane.b32.xlu0 %v2317, 1
      %v2687 = vpop.permute.xlu0 %2686
      %2688 = vrot.lane.b32.xlu0 %v2308, 1
      %v2689 = vpop.permute.xlu0 %2688
      %2690 = vrot.lane.b32.xlu0 %v2313, 1
      %v2691 = vpop.permute.xlu0 %2690
      %2692 = vrot.lane.b32.xlu0 %v2318, 1
      %v2693 = vpop.permute.xlu0 %2692
      %2694 = vrot.lane.b32.xlu0 %v2309, 1
      %v2695 = vpop.permute.xlu0 %2694
      %2696 = vrot.lane.b32.xlu0 %v2314, 1
      %v2697 = vpop.permute.xlu0 %2696
      %2698 = vrot.lane.b32.xlu0 %v2319, 1
      %v2699 = vpop.permute.xlu0 %2698
      %2700 = vrot.lane.b32.xlu0 %v2310, 1
      %v2701 = vpop.permute.xlu0 %2700
      %2702 = vrot.lane.b32.xlu0 %v2315, 1
      %v2703 = vpop.permute.xlu0 %2702
      %2704 = vrot.lane.b32.xlu0 %v2320, 1
      %v2705 = vpop.permute.xlu0 %2704
      %2706 = vrot.lane.b32.xlu0 %v2311, 1
      %v2707 = vpop.permute.xlu0 %2706
      %2708 = vrot.lane.b32.xlu0 %v2316, 1
      %v2709 = vpop.permute.xlu0 %2708
      %2710 = vrot.lane.b32.xlu0 %v2321, 1
      %v2711 = vpop.permute.xlu0 %2710
      %v2712 = vsel %vm422, %v2701, %v2707
      %v2713 = vsel %vm422, %v2703, %v2709
      %v2714 = vsel %vm422, %v2705, %v2711
      %v2715 = vsel %vm422, %v2695, %v2701
      %v2716 = vsel %vm422, %v2697, %v2703
      %v2717 = vsel %vm422, %v2699, %v2705
      %v2718 = vsel %vm422, %v2689, %v2695
      %v2719 = vsel %vm422, %v2691, %v2697
      %v2720 = vsel %vm422, %v2693, %v2699
      %v2721 = vsel %vm422, %v2683, %v2689
      %v2722 = vsel %vm422, %v2685, %v2691
      %v2723 = vsel %vm422, %v2687, %v2693
      %v2724 = vsel %vm422, %v2707, %v2683
      %v2725 = vsel %vm422, %v2709, %v2685
      %v2726 = vsel %vm422, %v2711, %v2687
      %s2727 = scalar_lea.vmem %s3, 72
      %v2728 = vld [vmem:[%s2727] sm:$0xff]
      %v2729 = vld [vmem:[%s2727 + $0x8] sm:$0xff]
      %v2730 = vld [vmem:[%s2727 + $0x10] sm:$0xff]
      %2732 = vset.pattern.permute.xlu0 0
      %2733 = vperm.xlu0 %2732, %v2728
      %v2734 = vpop.permute.xlu0 %2733
      %2737 = vset.pattern.permute.xlu0 0
      %2738 = vperm.xlu0 %2737, %v2729
      %v2739 = vpop.permute.xlu0 %2738
      %2742 = vset.pattern.permute.xlu0 0
      %2743 = vperm.xlu0 %2742, %v2730
      %v2744 = vpop.permute.xlu0 %2743
      %v2747 = vsel %vm1215, %v2302, 0
      %v2750 = vsel %vm1215, %v2304, 0
      %v2753 = vsel %vm1215, %v2306, 0
      %2755 = vmatprep.subr.mxu0 %v2361
      %2756 = vmatpush1.msra.mxu0 %v2364
      %2757 = vmatprep.subr.mxu0 %v2362
      %2758 = vmatpush1.msra.mxu0 %v2365
      %2759 = vmatprep.subr.mxu0 %v2363
      %2760 = vmatpush1.msra.mxu0 %v2366
      %2761 = vmatprep.subr.mxu0 %v2406
      %2762 = vmatpush1.msra.mxu0 %v2409
      %2763 = vmatprep.subr.mxu0 %v2407
      %2764 = vmatpush1.msra.mxu0 %v2410
      %2765 = vmatprep.subr.mxu0 %v2408
      %2766 = vmatpush1.msra.mxu0 %v2411
      %2767 = vmatprep.subr.mxu0 %v2451
      %2768 = vmatpush1.msra.mxu0 %v2454
      %2769 = vmatprep.subr.mxu0 %v2452
      %2770 = vmatpush1.msra.mxu0 %v2455
      %2771 = vmatprep.subr.mxu0 %v2453
      %2772 = vmatpush1.msra.mxu0 %v2456
      %2773 = vmatprep.subr.mxu0 %v2496
      %2774 = vmatpush1.msra.mxu0 %v2499
      %2775 = vmatprep.subr.mxu0 %v2497
      %2776 = vmatpush1.msra.mxu0 %v2500
      %2777 = vmatprep.subr.mxu0 %v2498
      %2778 = vmatpush1.msra.mxu0 %v2501
      %2779 = vmatprep.subr.mxu0 %v2541
      %2780 = vmatpush1.msra.mxu0 %v2544
      %2781 = vmatprep.subr.mxu0 %v2542
      %2782 = vmatpush1.msra.mxu0 %v2545
      %2783 = vmatprep.subr.mxu0 %v2543
      %2784 = vmatpush1.msra.mxu0 %v2546
      %2785 = vmatprep.subr.mxu0 %v2586
      %2786 = vmatpush1.msra.mxu0 %v2589
      %2787 = vmatprep.subr.mxu0 %v2587
      %2788 = vmatpush1.msra.mxu0 %v2590
      %2789 = vmatprep.subr.mxu0 %v2588
      %2790 = vmatpush1.msra.mxu0 %v2591
      %2791 = vmatprep.subr.mxu0 %v2631
      %2792 = vmatpush1.msra.mxu0 %v2634
      %2793 = vmatprep.subr.mxu0 %v2632
      %2794 = vmatpush1.msra.mxu0 %v2635
      %2795 = vmatprep.subr.mxu0 %v2633
      %2796 = vmatpush1.msra.mxu0 %v2636
      %2797 = vmatprep.subr.mxu0 %v2676
      %2798 = vmatpush1.msra.mxu0 %v2679
      %2799 = vmatprep.subr.mxu0 %v2677
      %2800 = vmatpush1.msra.mxu0 %v2680
      %2801 = vmatprep.subr.mxu0 %v2678
      %2802 = vmatpush1.msra.mxu0 %v2681
      %2803 = vmatprep.subr.mxu0 %v2721
      %2804 = vmatpush1.msra.mxu0 %v2724
      %2805 = vmatprep.subr.mxu0 %v2722
      %2806 = vmatpush1.msra.mxu0 %v2725
      %2807 = vmatprep.subr.mxu0 %v2723
      %2808 = vmatpush1.msra.mxu0 %v2726
      %2809 = vmatprep.subr.mxu0 0.0
      %2810 = vmatpush1.msra.mxu0 0.0
      %2811 = vmatprep.subr.mxu0 0.0
      %2812 = vmatpush1.msra.mxu0 0.0
      %2813 = vmatprep.subr.mxu0 0.0
      %2814 = vmatpush1.msra.mxu0 0.0
      %2815 = vmatprep.subr.mxu0 0.0
      %2816 = vmatpush1.msra.mxu0 0.0
      %2817 = vmatprep.subr.mxu0 0.0
      %2818 = vmatpush1.msra.mxu0 0.0
      %2819 = vmatprep.mubr.f32.mxu0 %v2747
      %2820 = vmatmul.mubr.f32.gmra.mrb[0].mxu0 %v2301
      %v2821 = vpop.f32.mrb[0].mxu0
      %v2822 = vadd.f32 %v2734, %v2821
      %v2823 = vpop.f32.mrb[0].mxu0
      %v2824 = vadd.f32 %v2734, %v2823
      %2825 = vmatprep.mubr.f32.mxu0 %v2750
      %2826 = vmatmul.mubr.f32.gmra.mrb[0].mxu0 %v2303
      %v2827 = vpop.f32.mrb[0].mxu0
      %v2828 = vadd.f32 %v2739, %v2827
      %v2829 = vpop.f32.mrb[0].mxu0
      %v2830 = vadd.f32 %v2739, %v2829
      %2831 = vmatprep.mubr.f32.mxu0 %v2753
      %2832 = vmatmul.mubr.f32.gmra.mrb[0].mxu0 %v2305
      %v2833 = vpop.f32.mrb[0].mxu0
      %v2834 = vadd.f32 %v2744, %v2833
      %v2835 = vpop.f32.mrb[0].mxu0
      %v2836 = vadd.f32 %v2744, %v2835
      %2837 = vdwg.mxu0
      %2838 = vmatprep.subr.mxu0 %v2355
      %2839 = vmatpush1.msra.mxu0 %v2358
      %2840 = vmatprep.subr.mxu0 %v2356
      %2841 = vmatpush1.msra.mxu0 %v2359
      %2842 = vmatprep.subr.mxu0 %v2357
      %2843 = vmatpush1.msra.mxu0 %v2360
      %2844 = vmatprep.subr.mxu0 %v2400
      %2845 = vmatpush1.msra.mxu0 %v2403
      %2846 = vmatprep.subr.mxu0 %v2401
      %2847 = vmatpush1.msra.mxu0 %v2404
      %2848 = vmatprep.subr.mxu0 %v2402
      %2849 = vmatpush1.msra.mxu0 %v2405
      %2850 = vmatprep.subr.mxu0 %v2445
      %2851 = vmatpush1.msra.mxu0 %v2448
      %2852 = vmatprep.subr.mxu0 %v2446
      %2853 = vmatpush1.msra.mxu0 %v2449
      %2854 = vmatprep.subr.mxu0 %v2447
      %2855 = vmatpush1.msra.mxu0 %v2450
      %2856 = vmatprep.subr.mxu0 %v2490
      %2857 = vmatpush1.msra.mxu0 %v2493
      %2858 = vmatprep.subr.mxu0 %v2491
      %2859 = vmatpush1.msra.mxu0 %v2494
      %2860 = vmatprep.subr.mxu0 %v2492
      %2861 = vmatpush1.msra.mxu0 %v2495
      %2862 = vmatprep.subr.mxu0 %v2535
      %2863 = vmatpush1.msra.mxu0 %v2538
      %2864 = vmatprep.subr.mxu0 %v2536
      %2865 = vmatpush1.msra.mxu0 %v2539
      %2866 = vmatprep.subr.mxu0 %v2537
      %2867 = vmatpush1.msra.mxu0 %v2540
      %2868 = vmatprep.subr.mxu0 %v2580
      %2869 = vmatpush1.msra.mxu0 %v2583
      %2870 = vmatprep.subr.mxu0 %v2581
      %2871 = vmatpush1.msra.mxu0 %v2584
      %2872 = vmatprep.subr.mxu0 %v2582
      %2873 = vmatpush1.msra.mxu0 %v2585
      %2874 = vmatprep.subr.mxu0 %v2625
      %2875 = vmatpush1.msra.mxu0 %v2628
      %2876 = vmatprep.subr.mxu0 %v2626
      %2877 = vmatpush1.msra.mxu0 %v2629
      %2878 = vmatprep.subr.mxu0 %v2627
      %2879 = vmatpush1.msra.mxu0 %v2630
      %2880 = vmatprep.subr.mxu0 %v2670
      %2881 = vmatpush1.msra.mxu0 %v2673
      %2882 = vmatprep.subr.mxu0 %v2671
      %2883 = vmatpush1.msra.mxu0 %v2674
      %2884 = vmatprep.subr.mxu0 %v2672
      %2885 = vmatpush1.msra.mxu0 %v2675
      %2886 = vmatprep.subr.mxu0 %v2715
      %2887 = vmatpush1.msra.mxu0 %v2718
      %2888 = vmatprep.subr.mxu0 %v2716
      %2889 = vmatpush1.msra.mxu0 %v2719
      %2890 = vmatprep.subr.mxu0 %v2717
      %2891 = vmatpush1.msra.mxu0 %v2720
      %2892 = vmatprep.subr.mxu0 0.0
      %2893 = vmatpush1.msra.mxu0 0.0
      %2894 = vmatprep.subr.mxu0 0.0
      %2895 = vmatpush1.msra.mxu0 0.0
      %2896 = vmatprep.subr.mxu0 0.0
      %2897 = vmatpush1.msra.mxu0 0.0
      %2898 = vmatprep.subr.mxu0 0.0
      %2899 = vmatpush1.msra.mxu0 0.0
      %2900 = vmatprep.subr.mxu0 0.0
      %2901 = vmatpush1.msra.mxu0 0.0
      %2902 = vmatprep.mubr.f32.mxu0 %v2747
      %2903 = vmatmul.mubr.f32.gmra.mrb[0].mxu0 %v2301
      %v2904 = vpop.f32.mrb[0].mxu0
      %v2905 = vadd.f32 %v2734, %v2904
      %v2906 = vpop.f32.mrb[0].mxu0
      %v2907 = vadd.f32 %v2734, %v2906
      %2908 = vmatprep.mubr.f32.mxu0 %v2750
      %2909 = vmatmul.mubr.f32.gmra.mrb[0].mxu0 %v2303
      %v2910 = vpop.f32.mrb[0].mxu0
      %v2911 = vadd.f32 %v2739, %v2910
      %v2912 = vpop.f32.mrb[0].mxu0
      %v2913 = vadd.f32 %v2739, %v2912
      %2914 = vmatprep.mubr.f32.mxu0 %v2753
      %2915 = vmatmul.mubr.f32.gmra.mrb[0].mxu0 %v2305
      %v2916 = vpop.f32.mrb[0].mxu0
      %v2917 = vadd.f32 %v2744, %v2916
      %v2918 = vpop.f32.mrb[0].mxu0
      %v2919 = vadd.f32 %v2744, %v2918
      %2920 = vdwg.mxu0
      %2921 = vmatprep.subr.mxu0 0.0
      %2922 = vmatpush1.msra.mxu0 %v2352
      %2923 = vmatprep.subr.mxu0 0.0
      %2924 = vmatpush1.msra.mxu0 %v2353
      %2925 = vmatprep.subr.mxu0 0.0
      %2926 = vmatpush1.msra.mxu0 %v2354
      %2927 = vmatprep.subr.mxu0 0.0
      %2928 = vmatpush1.msra.mxu0 %v2397
      %2929 = vmatprep.subr.mxu0 0.0
      %2930 = vmatpush1.msra.mxu0 %v2398
      %2931 = vmatprep.subr.mxu0 0.0
      %2932 = vmatpush1.msra.mxu0 %v2399
      %2933 = vmatprep.subr.mxu0 0.0
      %2934 = vmatpush1.msra.mxu0 %v2442
      %2935 = vmatprep.subr.mxu0 0.0
      %2936 = vmatpush1.msra.mxu0 %v2443
      %2937 = vmatprep.subr.mxu0 0.0
      %2938 = vmatpush1.msra.mxu0 %v2444
      %2939 = vmatprep.subr.mxu0 0.0
      %2940 = vmatpush1.msra.mxu0 %v2487
      %2941 = vmatprep.subr.mxu0 0.0
      %2942 = vmatpush1.msra.mxu0 %v2488
      %2943 = vmatprep.subr.mxu0 0.0
      %2944 = vmatpush1.msra.mxu0 %v2489
      %2945 = vmatprep.subr.mxu0 0.0
      %2946 = vmatpush1.msra.mxu0 %v2532
      %2947 = vmatprep.subr.mxu0 0.0
      %2948 = vmatpush1.msra.mxu0 %v2533
      %2949 = vmatprep.subr.mxu0 0.0
      %2950 = vmatpush1.msra.mxu0 %v2534
      %2951 = vmatprep.subr.mxu0 0.0
      %2952 = vmatpush1.msra.mxu0 %v2577
      %2953 = vmatprep.subr.mxu0 0.0
      %2954 = vmatpush1.msra.mxu0 %v2578
      %2955 = vmatprep.subr.mxu0 0.0
      %2956 = vmatpush1.msra.mxu0 %v2579
      %2957 = vmatprep.subr.mxu0 0.0
      %2958 = vmatpush1.msra.mxu0 %v2622
      %2959 = vmatprep.subr.mxu0 0.0
      %2960 = vmatpush1.msra.mxu0 %v2623
      %2961 = vmatprep.subr.mxu0 0.0
      %2962 = vmatpush1.msra.mxu0 %v2624
      %2963 = vmatprep.subr.mxu0 0.0
      %2964 = vmatpush1.msra.mxu0 %v2667
      %2965 = vmatprep.subr.mxu0 0.0
      %2966 = vmatpush1.msra.mxu0 %v2668
      %2967 = vmatprep.subr.mxu0 0.0
      %2968 = vmatpush1.msra.mxu0 %v2669
      %2969 = vmatprep.subr.mxu0 0.0
      %2970 = vmatpush1.msra.mxu0 %v2712
      %2971 = vmatprep.subr.mxu0 0.0
      %2972 = vmatpush1.msra.mxu0 %v2713
      %2973 = vmatprep.subr.mxu0 0.0
      %2974 = vmatpush1.msra.mxu0 %v2714
      %2975 = vmatprep.subr.mxu0 0.0
      %2976 = vmatpush1.msra.mxu0 0.0
      %2977 = vmatprep.subr.mxu0 0.0
      %2978 = vmatpush1.msra.mxu0 0.0
      %2979 = vmatprep.subr.mxu0 0.0
      %2980 = vmatpush1.msra.mxu0 0.0
      %2981 = vmatprep.subr.mxu0 0.0
      %2982 = vmatpush1.msra.mxu0 0.0
      %2983 = vmatprep.subr.mxu0 0.0
      %2984 = vmatpush1.msra.mxu0 0.0
      %2985 = vmatprep.mubr.f32.mxu0 %v2747
      %2986 = vmatmul.mubr.f32.gmra.mrb[0].mxu0 %v2301
      %v2987 = vpop.f32.mrb[0].mxu0
      %v2988 = vadd.f32 %v2734, %v2987
      %v2989 = vpop.f32.mrb[0].mxu0
      %2990 = vmatprep.mubr.f32.mxu0 %v2750
      %2991 = vmatmul.mubr.f32.gmra.mrb[0].mxu0 %v2303
      %v2992 = vpop.f32.mrb[0].mxu0
      %v2993 = vadd.f32 %v2739, %v2992
      %v2994 = vpop.f32.mrb[0].mxu0
      %2995 = vmatprep.mubr.f32.mxu0 %v2753
      %2996 = vmatmul.mubr.f32.gmra.mrb[0].mxu0 %v2305
      %v2997 = vpop.f32.mrb[0].mxu0
      %v2998 = vadd.f32 %v2744, %v2997
      %v2999 = vpop.f32.mrb[0].mxu0
      %3000 = vdwg.mxu0
      %vm3001 = vcmp.ge.f32.partialorder %v2822, 0.0
      %vm3002 = vcmp.ge.f32.partialorder %v2824, 0.0
      %vm3003 = vcmp.ge.f32.partialorder %v2905, 0.0
      %vm3004 = vcmp.ge.f32.partialorder %v2907, 0.0
      %vm3005 = vcmp.ge.f32.partialorder %v2988, 0.0
      %vm3006 = vcmp.ge.f32.partialorder %v2828, 0.0
      %vm3007 = vcmp.ge.f32.partialorder %v2830, 0.0
      %vm3008 = vcmp.ge.f32.partialorder %v2911, 0.0
      %vm3009 = vcmp.ge.f32.partialorder %v2913, 0.0
      %vm3010 = vcmp.ge.f32.partialorder %v2993, 0.0
      %vm3011 = vcmp.ge.f32.partialorder %v2834, 0.0
      %vm3012 = vcmp.ge.f32.partialorder %v2836, 0.0
      %vm3013 = vcmp.ge.f32.partialorder %v2917, 0.0
      %vm3014 = vcmp.ge.f32.partialorder %v2919, 0.0
      %vm3015 = vcmp.ge.f32.partialorder %v2998, 0.0
      %v3016 = vmul.f32 %v2822, 0.01
      %v3017 = vmul.f32 %v2824, 0.01
      %v3018 = vmul.f32 %v2905, 0.01
      %v3019 = vmul.f32 %v2907, 0.01
      %v3020 = vmul.f32 %v2988, 0.01
      %v3021 = vmul.f32 %v2828, 0.01
      %v3022 = vmul.f32 %v2830, 0.01
      %v3023 = vmul.f32 %v2911, 0.01
      %v3024 = vmul.f32 %v2913, 0.01
      %v3025 = vmul.f32 %v2993, 0.01
      %v3026 = vmul.f32 %v2834, 0.01
      %v3027 = vmul.f32 %v2836, 0.01
      %v3028 = vmul.f32 %v2917, 0.01
      %v3029 = vmul.f32 %v2919, 0.01
      %v3030 = vmul.f32 %v2998, 0.01
      %v3031 = vsel %vm3001, %v2822, %v3016
      %v3032 = vsel %vm3002, %v2824, %v3017
      %v3033 = vsel %vm3003, %v2905, %v3018
      %v3034 = vsel %vm3004, %v2907, %v3019
      %v3035 = vsel %vm3005, %v2988, %v3020
      %v3036 = vsel %vm3006, %v2828, %v3021
      %v3037 = vsel %vm3007, %v2830, %v3022
      %v3038 = vsel %vm3008, %v2911, %v3023
      %v3039 = vsel %vm3009, %v2913, %v3024
      %v3040 = vsel %vm3010, %v2993, %v3025
      %v3041 = vsel %vm3011, %v2834, %v3026
      %v3042 = vsel %vm3012, %v2836, %v3027
      %v3043 = vsel %vm3013, %v2917, %v3028
      %v3044 = vsel %vm3014, %v2919, %v3029
      %v3045 = vsel %vm3015, %v2998, %v3030
      %s3046 = scalar_lea.vmem %s2, 144
      %v3047 = vld [vmem:[%s3046] sm:$0xff]
      %v3048 = vld [vmem:[%s3046 + $0x8] sm:$0xff]
      %v3049 = vld [vmem:[%s3046 + $0x10] sm:$0xff]
      %v3050 = vld [vmem:[%s3046 + $0x18] sm:$0xff]
      %v3051 = vld [vmem:[%s3046 + $0x20] sm:$0xff]
      %v3052 = vld [vmem:[%s3046 + $0x28] sm:$0xff]
      %v3053 = vmul.f32 %v3031, %v252
      %v3054 = vmul.f32 %v3032, %v256
      %v3055 = vmul.f32 %v3033, %v260
      %v3056 = vmul.f32 %v3034, %v264
      %v3057 = vmul.f32 %v3035, %v268
      %v3058 = vmul.f32 %v3036, %v252
      %v3059 = vmul.f32 %v3037, %v256
      %v3060 = vmul.f32 %v3038, %v260
      %v3061 = vmul.f32 %v3039, %v264
      %v3062 = vmul.f32 %v3040, %v268
      %v3063 = vmul.f32 %v3041, %v252
      %v3064 = vmul.f32 %v3042, %v256
      %v3065 = vmul.f32 %v3043, %v260
      %v3066 = vmul.f32 %v3044, %v264
      %v3067 = vmul.f32 %v3045, %v268
      %3068 = vrot.lane.b32.xlu0 %v3053, 9
      %v3069 = vpop.permute.xlu0 %3068
      %3070 = vrot.lane.b32.xlu0 %v3058, 9
      %v3071 = vpop.permute.xlu0 %3070
      %3072 = vrot.lane.b32.xlu0 %v3063, 9
      %v3073 = vpop.permute.xlu0 %3072
      %3074 = vrot.lane.b32.xlu0 %v3054, 9
      %v3075 = vpop.permute.xlu0 %3074
      %3076 = vrot.lane.b32.xlu0 %v3059, 9
      %v3077 = vpop.permute.xlu0 %3076
      %3078 = vrot.lane.b32.xlu0 %v3064, 9
      %v3079 = vpop.permute.xlu0 %3078
      %3080 = vrot.lane.b32.xlu0 %v3055, 9
      %v3081 = vpop.permute.xlu0 %3080
      %3082 = vrot.lane.b32.xlu0 %v3060, 9
      %v3083 = vpop.permute.xlu0 %3082
      %3084 = vrot.lane.b32.xlu0 %v3065, 9
      %v3085 = vpop.permute.xlu0 %3084
      %3086 = vrot.lane.b32.xlu0 %v3056, 9
      %v3087 = vpop.permute.xlu0 %3086
      %3088 = vrot.lane.b32.xlu0 %v3061, 9
      %v3089 = vpop.permute.xlu0 %3088
      %3090 = vrot.lane.b32.xlu0 %v3066, 9
      %v3091 = vpop.permute.xlu0 %3090
      %3092 = vrot.lane.b32.xlu0 %v3057, 9
      %v3093 = vpop.permute.xlu0 %3092
      %3094 = vrot.lane.b32.xlu0 %v3062, 9
      %v3095 = vpop.permute.xlu0 %3094
      %3096 = vrot.lane.b32.xlu0 %v3067, 9
      %v3097 = vpop.permute.xlu0 %3096
      %v3098 = vsel %vm294, %v3087, %v3093
      %v3099 = vsel %vm294, %v3089, %v3095
      %v3100 = vsel %vm294, %v3091, %v3097
      %v3101 = vsel %vm294, %v3081, %v3087
      %v3102 = vsel %vm294, %v3083, %v3089
      %v3103 = vsel %vm294, %v3085, %v3091
      %v3104 = vsel %vm294, %v3075, %v3081
      %v3105 = vsel %vm294, %v3077, %v3083
      %v3106 = vsel %vm294, %v3079, %v3085
      %v3107 = vsel %vm294, %v3069, %v3075
      %v3108 = vsel %vm294, %v3071, %v3077
      %v3109 = vsel %vm294, %v3073, %v3079
      %v3110 = vsel %vm294, %v3093, %v3069
      %v3111 = vsel %vm294, %v3095, %v3071
      %v3112 = vsel %vm294, %v3097, %v3073
      %3113 = vrot.lane.b32.xlu0 %v3053, 8
      %v3114 = vpop.permute.xlu0 %3113
      %3115 = vrot.lane.b32.xlu0 %v3058, 8
      %v3116 = vpop.permute.xlu0 %3115
      %3117 = vrot.lane.b32.xlu0 %v3063, 8
      %v3118 = vpop.permute.xlu0 %3117
      %3119 = vrot.lane.b32.xlu0 %v3054, 8
      %v3120 = vpop.permute.xlu0 %3119
      %3121 = vrot.lane.b32.xlu0 %v3059, 8
      %v3122 = vpop.permute.xlu0 %3121
      %3123 = vrot.lane.b32.xlu0 %v3064, 8
      %v3124 = vpop.permute.xlu0 %3123
      %3125 = vrot.lane.b32.xlu0 %v3055, 8
      %v3126 = vpop.permute.xlu0 %3125
      %3127 = vrot.lane.b32.xlu0 %v3060, 8
      %v3128 = vpop.permute.xlu0 %3127
      %3129 = vrot.lane.b32.xlu0 %v3065, 8
      %v3130 = vpop.permute.xlu0 %3129
      %3131 = vrot.lane.b32.xlu0 %v3056, 8
      %v3132 = vpop.permute.xlu0 %3131
      %3133 = vrot.lane.b32.xlu0 %v3061, 8
      %v3134 = vpop.permute.xlu0 %3133
      %3135 = vrot.lane.b32.xlu0 %v3066, 8
      %v3136 = vpop.permute.xlu0 %3135
      %3137 = vrot.lane.b32.xlu0 %v3057, 8
      %v3138 = vpop.permute.xlu0 %3137
      %3139 = vrot.lane.b32.xlu0 %v3062, 8
      %v3140 = vpop.permute.xlu0 %3139
      %3141 = vrot.lane.b32.xlu0 %v3067, 8
      %v3142 = vpop.permute.xlu0 %3141
      %v3143 = vsel %vm310, %v3132, %v3138
      %v3144 = vsel %vm310, %v3134, %v3140
      %v3145 = vsel %vm310, %v3136, %v3142
      %v3146 = vsel %vm310, %v3126, %v3132
      %v3147 = vsel %vm310, %v3128, %v3134
      %v3148 = vsel %vm310, %v3130, %v3136
      %v3149 = vsel %vm310, %v3120, %v3126
      %v3150 = vsel %vm310, %v3122, %v3128
      %v3151 = vsel %vm310, %v3124, %v3130
      %v3152 = vsel %vm310, %v3114, %v3120
      %v3153 = vsel %vm310, %v3116, %v3122
      %v3154 = vsel %vm310, %v3118, %v3124
      %v3155 = vsel %vm310, %v3138, %v3114
      %v3156 = vsel %vm310, %v3140, %v3116
      %v3157 = vsel %vm310, %v3142, %v3118
      %3158 = vrot.lane.b32.xlu0 %v3053, 7
      %v3159 = vpop.permute.xlu0 %3158
      %3160 = vrot.lane.b32.xlu0 %v3058, 7
      %v3161 = vpop.permute.xlu0 %3160
      %3162 = vrot.lane.b32.xlu0 %v3063, 7
      %v3163 = vpop.permute.xlu0 %3162
      %3164 = vrot.lane.b32.xlu0 %v3054, 7
      %v3165 = vpop.permute.xlu0 %3164
      %3166 = vrot.lane.b32.xlu0 %v3059, 7
      %v3167 = vpop.permute.xlu0 %3166
      %3168 = vrot.lane.b32.xlu0 %v3064, 7
      %v3169 = vpop.permute.xlu0 %3168
      %3170 = vrot.lane.b32.xlu0 %v3055, 7
      %v3171 = vpop.permute.xlu0 %3170
      %3172 = vrot.lane.b32.xlu0 %v3060, 7
      %v3173 = vpop.permute.xlu0 %3172
      %3174 = vrot.lane.b32.xlu0 %v3065, 7
      %v3175 = vpop.permute.xlu0 %3174
      %3176 = vrot.lane.b32.xlu0 %v3056, 7
      %v3177 = vpop.permute.xlu0 %3176
      %3178 = vrot.lane.b32.xlu0 %v3061, 7
      %v3179 = vpop.permute.xlu0 %3178
      %3180 = vrot.lane.b32.xlu0 %v3066, 7
      %v3181 = vpop.permute.xlu0 %3180
      %3182 = vrot.lane.b32.xlu0 %v3057, 7
      %v3183 = vpop.permute.xlu0 %3182
      %3184 = vrot.lane.b32.xlu0 %v3062, 7
      %v3185 = vpop.permute.xlu0 %3184
      %3186 = vrot.lane.b32.xlu0 %v3067, 7
      %v3187 = vpop.permute.xlu0 %3186
      %v3188 = vsel %vm326, %v3177, %v3183
      %v3189 = vsel %vm326, %v3179, %v3185
      %v3190 = vsel %vm326, %v3181, %v3187
      %v3191 = vsel %vm326, %v3171, %v3177
      %v3192 = vsel %vm326, %v3173, %v3179
      %v3193 = vsel %vm326, %v3175, %v3181
      %v3194 = vsel %vm326, %v3165, %v3171
      %v3195 = vsel %vm326, %v3167, %v3173
      %v3196 = vsel %vm326, %v3169, %v3175
      %v3197 = vsel %vm326, %v3159, %v3165
      %v3198 = vsel %vm326, %v3161, %v3167
      %v3199 = vsel %vm326, %v3163, %v3169
      %v3200 = vsel %vm326, %v3183, %v3159
      %v3201 = vsel %vm326, %v3185, %v3161
      %v3202 = vsel %vm326, %v3187, %v3163
      %3203 = vrot.lane.b32.xlu0 %v3053, 6
      %v3204 = vpop.permute.xlu0 %3203
      %3205 = vrot.lane.b32.xlu0 %v3058, 6
      %v3206 = vpop.permute.xlu0 %3205
      %3207 = vrot.lane.b32.xlu0 %v3063, 6
      %v3208 = vpop.permute.xlu0 %3207
      %3209 = vrot.lane.b32.xlu0 %v3054, 6
      %v3210 = vpop.permute.xlu0 %3209
      %3211 = vrot.lane.b32.xlu0 %v3059, 6
      %v3212 = vpop.permute.xlu0 %3211
      %3213 = vrot.lane.b32.xlu0 %v3064, 6
      %v3214 = vpop.permute.xlu0 %3213
      %3215 = vrot.lane.b32.xlu0 %v3055, 6
      %v3216 = vpop.permute.xlu0 %3215
      %3217 = vrot.lane.b32.xlu0 %v3060, 6
      %v3218 = vpop.permute.xlu0 %3217
      %3219 = vrot.lane.b32.xlu0 %v3065, 6
      %v3220 = vpop.permute.xlu0 %3219
      %3221 = vrot.lane.b32.xlu0 %v3056, 6
      %v3222 = vpop.permute.xlu0 %3221
      %3223 = vrot.lane.b32.xlu0 %v3061, 6
      %v3224 = vpop.permute.xlu0 %3223
      %3225 = vrot.lane.b32.xlu0 %v3066, 6
      %v3226 = vpop.permute.xlu0 %3225
      %3227 = vrot.lane.b32.xlu0 %v3057, 6
      %v3228 = vpop.permute.xlu0 %3227
      %3229 = vrot.lane.b32.xlu0 %v3062, 6
      %v3230 = vpop.permute.xlu0 %3229
      %3231 = vrot.lane.b32.xlu0 %v3067, 6
      %v3232 = vpop.permute.xlu0 %3231
      %v3233 = vsel %vm342, %v3222, %v3228
      %v3234 = vsel %vm342, %v3224, %v3230
      %v3235 = vsel %vm342, %v3226, %v3232
      %v3236 = vsel %vm342, %v3216, %v3222
      %v3237 = vsel %vm342, %v3218, %v3224
      %v3238 = vsel %vm342, %v3220, %v3226
      %v3239 = vsel %vm342, %v3210, %v3216
      %v3240 = vsel %vm342, %v3212, %v3218
      %v3241 = vsel %vm342, %v3214, %v3220
      %v3242 = vsel %vm342, %v3204, %v3210
      %v3243 = vsel %vm342, %v3206, %v3212
      %v3244 = vsel %vm342, %v3208, %v3214
      %v3245 = vsel %vm342, %v3228, %v3204
      %v3246 = vsel %vm342, %v3230, %v3206
      %v3247 = vsel %vm342, %v3232, %v3208
      %3248 = vrot.lane.b32.xlu0 %v3053, 5
      %v3249 = vpop.permute.xlu0 %3248
      %3250 = vrot.lane.b32.xlu0 %v3058, 5
      %v3251 = vpop.permute.xlu0 %3250
      %3252 = vrot.lane.b32.xlu0 %v3063, 5
      %v3253 = vpop.permute.xlu0 %3252
      %3254 = vrot.lane.b32.xlu0 %v3054, 5
      %v3255 = vpop.permute.xlu0 %3254
      %3256 = vrot.lane.b32.xlu0 %v3059, 5
      %v3257 = vpop.permute.xlu0 %3256
      %3258 = vrot.lane.b32.xlu0 %v3064, 5
      %v3259 = vpop.permute.xlu0 %3258
      %3260 = vrot.lane.b32.xlu0 %v3055, 5
      %v3261 = vpop.permute.xlu0 %3260
      %3262 = vrot.lane.b32.xlu0 %v3060, 5
      %v3263 = vpop.permute.xlu0 %3262
      %3264 = vrot.lane.b32.xlu0 %v3065, 5
      %v3265 = vpop.permute.xlu0 %3264
      %3266 = vrot.lane.b32.xlu0 %v3056, 5
      %v3267 = vpop.permute.xlu0 %3266
      %3268 = vrot.lane.b32.xlu0 %v3061, 5
      %v3269 = vpop.permute.xlu0 %3268
      %3270 = vrot.lane.b32.xlu0 %v3066, 5
      %v3271 = vpop.permute.xlu0 %3270
      %3272 = vrot.lane.b32.xlu0 %v3057, 5
      %v3273 = vpop.permute.xlu0 %3272
      %3274 = vrot.lane.b32.xlu0 %v3062, 5
      %v3275 = vpop.permute.xlu0 %3274
      %3276 = vrot.lane.b32.xlu0 %v3067, 5
      %v3277 = vpop.permute.xlu0 %3276
      %v3278 = vsel %vm358, %v3267, %v3273
      %v3279 = vsel %vm358, %v3269, %v3275
      %v3280 = vsel %vm358, %v3271, %v3277
      %v3281 = vsel %vm358, %v3261, %v3267
      %v3282 = vsel %vm358, %v3263, %v3269
      %v3283 = vsel %vm358, %v3265, %v3271
      %v3284 = vsel %vm358, %v3255, %v3261
      %v3285 = vsel %vm358, %v3257, %v3263
      %v3286 = vsel %vm358, %v3259, %v3265
      %v3287 = vsel %vm358, %v3249, %v3255
      %v3288 = vsel %vm358, %v3251, %v3257
      %v3289 = vsel %vm358, %v3253, %v3259
      %v3290 = vsel %vm358, %v3273, %v3249
      %v3291 = vsel %vm358, %v3275, %v3251
      %v3292 = vsel %vm358, %v3277, %v3253
      %3293 = vrot.lane.b32.xlu0 %v3053, 4
      %v3294 = vpop.permute.xlu0 %3293
      %3295 = vrot.lane.b32.xlu0 %v3058, 4
      %v3296 = vpop.permute.xlu0 %3295
      %3297 = vrot.lane.b32.xlu0 %v3063, 4
      %v3298 = vpop.permute.xlu0 %3297
      %3299 = vrot.lane.b32.xlu0 %v3054, 4
      %v3300 = vpop.permute.xlu0 %3299
      %3301 = vrot.lane.b32.xlu0 %v3059, 4
      %v3302 = vpop.permute.xlu0 %3301
      %3303 = vrot.lane.b32.xlu0 %v3064, 4
      %v3304 = vpop.permute.xlu0 %3303
      %3305 = vrot.lane.b32.xlu0 %v3055, 4
      %v3306 = vpop.permute.xlu0 %3305
      %3307 = vrot.lane.b32.xlu0 %v3060, 4
      %v3308 = vpop.permute.xlu0 %3307
      %3309 = vrot.lane.b32.xlu0 %v3065, 4
      %v3310 = vpop.permute.xlu0 %3309
      %3311 = vrot.lane.b32.xlu0 %v3056, 4
      %v3312 = vpop.permute.xlu0 %3311
      %3313 = vrot.lane.b32.xlu0 %v3061, 4
      %v3314 = vpop.permute.xlu0 %3313
      %3315 = vrot.lane.b32.xlu0 %v3066, 4
      %v3316 = vpop.permute.xlu0 %3315
      %3317 = vrot.lane.b32.xlu0 %v3057, 4
      %v3318 = vpop.permute.xlu0 %3317
      %3319 = vrot.lane.b32.xlu0 %v3062, 4
      %v3320 = vpop.permute.xlu0 %3319
      %3321 = vrot.lane.b32.xlu0 %v3067, 4
      %v3322 = vpop.permute.xlu0 %3321
      %v3323 = vsel %vm374, %v3312, %v3318
      %v3324 = vsel %vm374, %v3314, %v3320
      %v3325 = vsel %vm374, %v3316, %v3322
      %v3326 = vsel %vm374, %v3306, %v3312
      %v3327 = vsel %vm374, %v3308, %v3314
      %v3328 = vsel %vm374, %v3310, %v3316
      %v3329 = vsel %vm374, %v3300, %v3306
      %v3330 = vsel %vm374, %v3302, %v3308
      %v3331 = vsel %vm374, %v3304, %v3310
      %v3332 = vsel %vm374, %v3294, %v3300
      %v3333 = vsel %vm374, %v3296, %v3302
      %v3334 = vsel %vm374, %v3298, %v3304
      %v3335 = vsel %vm374, %v3318, %v3294
      %v3336 = vsel %vm374, %v3320, %v3296
      %v3337 = vsel %vm374, %v3322, %v3298
      %3338 = vrot.lane.b32.xlu0 %v3053, 3
      %v3339 = vpop.permute.xlu0 %3338
      %3340 = vrot.lane.b32.xlu0 %v3058, 3
      %v3341 = vpop.permute.xlu0 %3340
      %3342 = vrot.lane.b32.xlu0 %v3063, 3
      %v3343 = vpop.permute.xlu0 %3342
      %3344 = vrot.lane.b32.xlu0 %v3054, 3
      %v3345 = vpop.permute.xlu0 %3344
      %3346 = vrot.lane.b32.xlu0 %v3059, 3
      %v3347 = vpop.permute.xlu0 %3346
      %3348 = vrot.lane.b32.xlu0 %v3064, 3
      %v3349 = vpop.permute.xlu0 %3348
      %3350 = vrot.lane.b32.xlu0 %v3055, 3
      %v3351 = vpop.permute.xlu0 %3350
      %3352 = vrot.lane.b32.xlu0 %v3060, 3
      %v3353 = vpop.permute.xlu0 %3352
      %3354 = vrot.lane.b32.xlu0 %v3065, 3
      %v3355 = vpop.permute.xlu0 %3354
      %3356 = vrot.lane.b32.xlu0 %v3056, 3
      %v3357 = vpop.permute.xlu0 %3356
      %3358 = vrot.lane.b32.xlu0 %v3061, 3
      %v3359 = vpop.permute.xlu0 %3358
      %3360 = vrot.lane.b32.xlu0 %v3066, 3
      %v3361 = vpop.permute.xlu0 %3360
      %3362 = vrot.lane.b32.xlu0 %v3057, 3
      %v3363 = vpop.permute.xlu0 %3362
      %3364 = vrot.lane.b32.xlu0 %v3062, 3
      %v3365 = vpop.permute.xlu0 %3364
      %3366 = vrot.lane.b32.xlu0 %v3067, 3
      %v3367 = vpop.permute.xlu0 %3366
      %v3368 = vsel %vm390, %v3357, %v3363
      %v3369 = vsel %vm390, %v3359, %v3365
      %v3370 = vsel %vm390, %v3361, %v3367
      %v3371 = vsel %vm390, %v3351, %v3357
      %v3372 = vsel %vm390, %v3353, %v3359
      %v3373 = vsel %vm390, %v3355, %v3361
      %v3374 = vsel %vm390, %v3345, %v3351
      %v3375 = vsel %vm390, %v3347, %v3353
      %v3376 = vsel %vm390, %v3349, %v3355
      %v3377 = vsel %vm390, %v3339, %v3345
      %v3378 = vsel %vm390, %v3341, %v3347
      %v3379 = vsel %vm390, %v3343, %v3349
      %v3380 = vsel %vm390, %v3363, %v3339
      %v3381 = vsel %vm390, %v3365, %v3341
      %v3382 = vsel %vm390, %v3367, %v3343
      %3383 = vrot.lane.b32.xlu0 %v3053, 2
      %v3384 = vpop.permute.xlu0 %3383
      %3385 = vrot.lane.b32.xlu0 %v3058, 2
      %v3386 = vpop.permute.xlu0 %3385
      %3387 = vrot.lane.b32.xlu0 %v3063, 2
      %v3388 = vpop.permute.xlu0 %3387
      %3389 = vrot.lane.b32.xlu0 %v3054, 2
      %v3390 = vpop.permute.xlu0 %3389
      %3391 = vrot.lane.b32.xlu0 %v3059, 2
      %v3392 = vpop.permute.xlu0 %3391
      %3393 = vrot.lane.b32.xlu0 %v3064, 2
      %v3394 = vpop.permute.xlu0 %3393
      %3395 = vrot.lane.b32.xlu0 %v3055, 2
      %v3396 = vpop.permute.xlu0 %3395
      %3397 = vrot.lane.b32.xlu0 %v3060, 2
      %v3398 = vpop.permute.xlu0 %3397
      %3399 = vrot.lane.b32.xlu0 %v3065, 2
      %v3400 = vpop.permute.xlu0 %3399
      %3401 = vrot.lane.b32.xlu0 %v3056, 2
      %v3402 = vpop.permute.xlu0 %3401
      %3403 = vrot.lane.b32.xlu0 %v3061, 2
      %v3404 = vpop.permute.xlu0 %3403
      %3405 = vrot.lane.b32.xlu0 %v3066, 2
      %v3406 = vpop.permute.xlu0 %3405
      %3407 = vrot.lane.b32.xlu0 %v3057, 2
      %v3408 = vpop.permute.xlu0 %3407
      %3409 = vrot.lane.b32.xlu0 %v3062, 2
      %v3410 = vpop.permute.xlu0 %3409
      %3411 = vrot.lane.b32.xlu0 %v3067, 2
      %v3412 = vpop.permute.xlu0 %3411
      %v3413 = vsel %vm406, %v3402, %v3408
      %v3414 = vsel %vm406, %v3404, %v3410
      %v3415 = vsel %vm406, %v3406, %v3412
      %v3416 = vsel %vm406, %v3396, %v3402
      %v3417 = vsel %vm406, %v3398, %v3404
      %v3418 = vsel %vm406, %v3400, %v3406
      %v3419 = vsel %vm406, %v3390, %v3396
      %v3420 = vsel %vm406, %v3392, %v3398
      %v3421 = vsel %vm406, %v3394, %v3400
      %v3422 = vsel %vm406, %v3384, %v3390
      %v3423 = vsel %vm406, %v3386, %v3392
      %v3424 = vsel %vm406, %v3388, %v3394
      %v3425 = vsel %vm406, %v3408, %v3384
      %v3426 = vsel %vm406, %v3410, %v3386
      %v3427 = vsel %vm406, %v3412, %v3388
      %3428 = vrot.lane.b32.xlu0 %v3053, 1
      %v3429 = vpop.permute.xlu0 %3428
      %3430 = vrot.lane.b32.xlu0 %v3058, 1
      %v3431 = vpop.permute.xlu0 %3430
      %3432 = vrot.lane.b32.xlu0 %v3063, 1
      %v3433 = vpop.permute.xlu0 %3432
      %3434 = vrot.lane.b32.xlu0 %v3054, 1
      %v3435 = vpop.permute.xlu0 %3434
      %3436 = vrot.lane.b32.xlu0 %v3059, 1
      %v3437 = vpop.permute.xlu0 %3436
      %3438 = vrot.lane.b32.xlu0 %v3064, 1
      %v3439 = vpop.permute.xlu0 %3438
      %3440 = vrot.lane.b32.xlu0 %v3055, 1
      %v3441 = vpop.permute.xlu0 %3440
      %3442 = vrot.lane.b32.xlu0 %v3060, 1
      %v3443 = vpop.permute.xlu0 %3442
      %3444 = vrot.lane.b32.xlu0 %v3065, 1
      %v3445 = vpop.permute.xlu0 %3444
      %3446 = vrot.lane.b32.xlu0 %v3056, 1
      %v3447 = vpop.permute.xlu0 %3446
      %3448 = vrot.lane.b32.xlu0 %v3061, 1
      %v3449 = vpop.permute.xlu0 %3448
      %3450 = vrot.lane.b32.xlu0 %v3066, 1
      %v3451 = vpop.permute.xlu0 %3450
      %3452 = vrot.lane.b32.xlu0 %v3057, 1
      %v3453 = vpop.permute.xlu0 %3452
      %3454 = vrot.lane.b32.xlu0 %v3062, 1
      %v3455 = vpop.permute.xlu0 %3454
      %3456 = vrot.lane.b32.xlu0 %v3067, 1
      %v3457 = vpop.permute.xlu0 %3456
      %v3458 = vsel %vm422, %v3447, %v3453
      %v3459 = vsel %vm422, %v3449, %v3455
      %v3460 = vsel %vm422, %v3451, %v3457
      %v3461 = vsel %vm422, %v3441, %v3447
      %v3462 = vsel %vm422, %v3443, %v3449
      %v3463 = vsel %vm422, %v3445, %v3451
      %v3464 = vsel %vm422, %v3435, %v3441
      %v3465 = vsel %vm422, %v3437, %v3443
      %v3466 = vsel %vm422, %v3439, %v3445
      %v3467 = vsel %vm422, %v3429, %v3435
      %v3468 = vsel %vm422, %v3431, %v3437
      %v3469 = vsel %vm422, %v3433, %v3439
      %v3470 = vsel %vm422, %v3453, %v3429
      %v3471 = vsel %vm422, %v3455, %v3431
      %v3472 = vsel %vm422, %v3457, %v3433
      %s3473 = scalar_lea.vmem %s3, 96
      %v3474 = vld [vmem:[%s3473] sm:$0xff]
      %v3475 = vld [vmem:[%s3473 + $0x8] sm:$0xff]
      %v3476 = vld [vmem:[%s3473 + $0x10] sm:$0xff]
      %3478 = vset.pattern.permute.xlu0 0
      %3479 = vperm.xlu0 %3478, %v3474
      %v3480 = vpop.permute.xlu0 %3479
      %3483 = vset.pattern.permute.xlu0 0
      %3484 = vperm.xlu0 %3483, %v3475
      %v3485 = vpop.permute.xlu0 %3484
      %3488 = vset.pattern.permute.xlu0 0
      %3489 = vperm.xlu0 %3488, %v3476
      %v3490 = vpop.permute.xlu0 %3489
      %v3493 = vsel %vm1215, %v3048, 0
      %v3496 = vsel %vm1215, %v3050, 0
      %v3499 = vsel %vm1215, %v3052, 0
      %3501 = vmatprep.subr.mxu0 %v3107
      %3502 = vmatpush1.msra.mxu0 %v3110
      %3503 = vmatprep.subr.mxu0 %v3108
      %3504 = vmatpush1.msra.mxu0 %v3111
      %3505 = vmatprep.subr.mxu0 %v3109
      %3506 = vmatpush1.msra.mxu0 %v3112
      %3507 = vmatprep.subr.mxu0 %v3152
      %3508 = vmatpush1.msra.mxu0 %v3155
      %3509 = vmatprep.subr.mxu0 %v3153
      %3510 = vmatpush1.msra.mxu0 %v3156
      %3511 = vmatprep.subr.mxu0 %v3154
      %3512 = vmatpush1.msra.mxu0 %v3157
      %3513 = vmatprep.subr.mxu0 %v3197
      %3514 = vmatpush1.msra.mxu0 %v3200
      %3515 = vmatprep.subr.mxu0 %v3198
      %3516 = vmatpush1.msra.mxu0 %v3201
      %3517 = vmatprep.subr.mxu0 %v3199
      %3518 = vmatpush1.msra.mxu0 %v3202
      %3519 = vmatprep.subr.mxu0 %v3242
      %3520 = vmatpush1.msra.mxu0 %v3245
      %3521 = vmatprep.subr.mxu0 %v3243
      %3522 = vmatpush1.msra.mxu0 %v3246
      %3523 = vmatprep.subr.mxu0 %v3244
      %3524 = vmatpush1.msra.mxu0 %v3247
      %3525 = vmatprep.subr.mxu0 %v3287
      %3526 = vmatpush1.msra.mxu0 %v3290
      %3527 = vmatprep.subr.mxu0 %v3288
      %3528 = vmatpush1.msra.mxu0 %v3291
      %3529 = vmatprep.subr.mxu0 %v3289
      %3530 = vmatpush1.msra.mxu0 %v3292
      %3531 = vmatprep.subr.mxu0 %v3332
      %3532 = vmatpush1.msra.mxu0 %v3335
      %3533 = vmatprep.subr.mxu0 %v3333
      %3534 = vmatpush1.msra.mxu0 %v3336
      %3535 = vmatprep.subr.mxu0 %v3334
      %3536 = vmatpush1.msra.mxu0 %v3337
      %3537 = vmatprep.subr.mxu0 %v3377
      %3538 = vmatpush1.msra.mxu0 %v3380
      %3539 = vmatprep.subr.mxu0 %v3378
      %3540 = vmatpush1.msra.mxu0 %v3381
      %3541 = vmatprep.subr.mxu0 %v3379
      %3542 = vmatpush1.msra.mxu0 %v3382
      %3543 = vmatprep.subr.mxu0 %v3422
      %3544 = vmatpush1.msra.mxu0 %v3425
      %3545 = vmatprep.subr.mxu0 %v3423
      %3546 = vmatpush1.msra.mxu0 %v3426
      %3547 = vmatprep.subr.mxu0 %v3424
      %3548 = vmatpush1.msra.mxu0 %v3427
      %3549 = vmatprep.subr.mxu0 %v3467
      %3550 = vmatpush1.msra.mxu0 %v3470
      %3551 = vmatprep.subr.mxu0 %v3468
      %3552 = vmatpush1.msra.mxu0 %v3471
      %3553 = vmatprep.subr.mxu0 %v3469
      %3554 = vmatpush1.msra.mxu0 %v3472
      %3555 = vmatprep.subr.mxu0 0.0
      %3556 = vmatpush1.msra.mxu0 0.0
      %3557 = vmatprep.subr.mxu0 0.0
      %3558 = vmatpush1.msra.mxu0 0.0
      %3559 = vmatprep.subr.mxu0 0.0
      %3560 = vmatpush1.msra.mxu0 0.0
      %3561 = vmatprep.subr.mxu0 0.0
      %3562 = vmatpush1.msra.mxu0 0.0
      %3563 = vmatprep.subr.mxu0 0.0
      %3564 = vmatpush1.msra.mxu0 0.0
      %3565 = vmatprep.mubr.f32.mxu0 %v3493
      %3566 = vmatmul.mubr.f32.gmra.mrb[0].mxu0 %v3047
      %v3567 = vpop.f32.mrb[0].mxu0
      %v3568 = vadd.f32 %v3480, %v3567
      %v3569 = vpop.f32.mrb[0].mxu0
      %v3570 = vadd.f32 %v3480, %v3569
      %3571 = vmatprep.mubr.f32.mxu0 %v3496
      %3572 = vmatmul.mubr.f32.gmra.mrb[0].mxu0 %v3049
      %v3573 = vpop.f32.mrb[0].mxu0
      %v3574 = vadd.f32 %v3485, %v3573
      %v3575 = vpop.f32.mrb[0].mxu0
      %v3576 = vadd.f32 %v3485, %v3575
      %3577 = vmatprep.mubr.f32.mxu0 %v3499
      %3578 = vmatmul.mubr.f32.gmra.mrb[0].mxu0 %v3051
      %v3579 = vpop.f32.mrb[0].mxu0
      %v3580 = vadd.f32 %v3490, %v3579
      %v3581 = vpop.f32.mrb[0].mxu0
      %v3582 = vadd.f32 %v3490, %v3581
      %3583 = vdwg.mxu0
      %3584 = vmatprep.subr.mxu0 %v3101
      %3585 = vmatpush1.msra.mxu0 %v3104
      %3586 = vmatprep.subr.mxu0 %v3102
      %3587 = vmatpush1.msra.mxu0 %v3105
      %3588 = vmatprep.subr.mxu0 %v3103
      %3589 = vmatpush1.msra.mxu0 %v3106
      %3590 = vmatprep.subr.mxu0 %v3146
      %3591 = vmatpush1.msra.mxu0 %v3149
      %3592 = vmatprep.subr.mxu0 %v3147
      %3593 = vmatpush1.msra.mxu0 %v3150
      %3594 = vmatprep.subr.mxu0 %v3148
      %3595 = vmatpush1.msra.mxu0 %v3151
      %3596 = vmatprep.subr.mxu0 %v3191
      %3597 = vmatpush1.msra.mxu0 %v3194
      %3598 = vmatprep.subr.mxu0 %v3192
      %3599 = vmatpush1.msra.mxu0 %v3195
      %3600 = vmatprep.subr.mxu0 %v3193
      %3601 = vmatpush1.msra.mxu0 %v3196
      %3602 = vmatprep.subr.mxu0 %v3236
      %3603 = vmatpush1.msra.mxu0 %v3239
      %3604 = vmatprep.subr.mxu0 %v3237
      %3605 = vmatpush1.msra.mxu0 %v3240
      %3606 = vmatprep.subr.mxu0 %v3238
      %3607 = vmatpush1.msra.mxu0 %v3241
      %3608 = vmatprep.subr.mxu0 %v3281
      %3609 = vmatpush1.msra.mxu0 %v3284
      %3610 = vmatprep.subr.mxu0 %v3282
      %3611 = vmatpush1.msra.mxu0 %v3285
      %3612 = vmatprep.subr.mxu0 %v3283
      %3613 = vmatpush1.msra.mxu0 %v3286
      %3614 = vmatprep.subr.mxu0 %v3326
      %3615 = vmatpush1.msra.mxu0 %v3329
      %3616 = vmatprep.subr.mxu0 %v3327
      %3617 = vmatpush1.msra.mxu0 %v3330
      %3618 = vmatprep.subr.mxu0 %v3328
      %3619 = vmatpush1.msra.mxu0 %v3331
      %3620 = vmatprep.subr.mxu0 %v3371
      %3621 = vmatpush1.msra.mxu0 %v3374
      %3622 = vmatprep.subr.mxu0 %v3372
      %3623 = vmatpush1.msra.mxu0 %v3375
      %3624 = vmatprep.subr.mxu0 %v3373
      %3625 = vmatpush1.msra.mxu0 %v3376
      %3626 = vmatprep.subr.mxu0 %v3416
      %3627 = vmatpush1.msra.mxu0 %v3419
      %3628 = vmatprep.subr.mxu0 %v3417
      %3629 = vmatpush1.msra.mxu0 %v3420
      %3630 = vmatprep.subr.mxu0 %v3418
      %3631 = vmatpush1.msra.mxu0 %v3421
      %3632 = vmatprep.subr.mxu0 %v3461
      %3633 = vmatpush1.msra.mxu0 %v3464
      %3634 = vmatprep.subr.mxu0 %v3462
      %3635 = vmatpush1.msra.mxu0 %v3465
      %3636 = vmatprep.subr.mxu0 %v3463
      %3637 = vmatpush1.msra.mxu0 %v3466
      %3638 = vmatprep.subr.mxu0 0.0
      %3639 = vmatpush1.msra.mxu0 0.0
      %3640 = vmatprep.subr.mxu0 0.0
      %3641 = vmatpush1.msra.mxu0 0.0
      %3642 = vmatprep.subr.mxu0 0.0
      %3643 = vmatpush1.msra.mxu0 0.0
      %3644 = vmatprep.subr.mxu0 0.0
      %3645 = vmatpush1.msra.mxu0 0.0
      %3646 = vmatprep.subr.mxu0 0.0
      %3647 = vmatpush1.msra.mxu0 0.0
      %3648 = vmatprep.mubr.f32.mxu0 %v3493
      %3649 = vmatmul.mubr.f32.gmra.mrb[0].mxu0 %v3047
      %v3650 = vpop.f32.mrb[0].mxu0
      %v3651 = vadd.f32 %v3480, %v3650
      %v3652 = vpop.f32.mrb[0].mxu0
      %v3653 = vadd.f32 %v3480, %v3652
      %3654 = vmatprep.mubr.f32.mxu0 %v3496
      %3655 = vmatmul.mubr.f32.gmra.mrb[0].mxu0 %v3049
      %v3656 = vpop.f32.mrb[0].mxu0
      %v3657 = vadd.f32 %v3485, %v3656
      %v3658 = vpop.f32.mrb[0].mxu0
      %v3659 = vadd.f32 %v3485, %v3658
      %3660 = vmatprep.mubr.f32.mxu0 %v3499
      %3661 = vmatmul.mubr.f32.gmra.mrb[0].mxu0 %v3051
      %v3662 = vpop.f32.mrb[0].mxu0
      %v3663 = vadd.f32 %v3490, %v3662
      %v3664 = vpop.f32.mrb[0].mxu0
      %v3665 = vadd.f32 %v3490, %v3664
      %3666 = vdwg.mxu0
      %3667 = vmatprep.subr.mxu0 0.0
      %3668 = vmatpush1.msra.mxu0 %v3098
      %3669 = vmatprep.subr.mxu0 0.0
      %3670 = vmatpush1.msra.mxu0 %v3099
      %3671 = vmatprep.subr.mxu0 0.0
      %3672 = vmatpush1.msra.mxu0 %v3100
      %3673 = vmatprep.subr.mxu0 0.0
      %3674 = vmatpush1.msra.mxu0 %v3143
      %3675 = vmatprep.subr.mxu0 0.0
      %3676 = vmatpush1.msra.mxu0 %v3144
      %3677 = vmatprep.subr.mxu0 0.0
      %3678 = vmatpush1.msra.mxu0 %v3145
      %3679 = vmatprep.subr.mxu0 0.0
      %3680 = vmatpush1.msra.mxu0 %v3188
      %3681 = vmatprep.subr.mxu0 0.0
      %3682 = vmatpush1.msra.mxu0 %v3189
      %3683 = vmatprep.subr.mxu0 0.0
      %3684 = vmatpush1.msra.mxu0 %v3190
      %3685 = vmatprep.subr.mxu0 0.0
      %3686 = vmatpush1.msra.mxu0 %v3233
      %3687 = vmatprep.subr.mxu0 0.0
      %3688 = vmatpush1.msra.mxu0 %v3234
      %3689 = vmatprep.subr.mxu0 0.0
      %3690 = vmatpush1.msra.mxu0 %v3235
      %3691 = vmatprep.subr.mxu0 0.0
      %3692 = vmatpush1.msra.mxu0 %v3278
      %3693 = vmatprep.subr.mxu0 0.0
      %3694 = vmatpush1.msra.mxu0 %v3279
      %3695 = vmatprep.subr.mxu0 0.0
      %3696 = vmatpush1.msra.mxu0 %v3280
      %3697 = vmatprep.subr.mxu0 0.0
      %3698 = vmatpush1.msra.mxu0 %v3323
      %3699 = vmatprep.subr.mxu0 0.0
      %3700 = vmatpush1.msra.mxu0 %v3324
      %3701 = vmatprep.subr.mxu0 0.0
      %3702 = vmatpush1.msra.mxu0 %v3325
      %3703 = vmatprep.subr.mxu0 0.0
      %3704 = vmatpush1.msra.mxu0 %v3368
      %3705 = vmatprep.subr.mxu0 0.0
      %3706 = vmatpush1.msra.mxu0 %v3369
      %3707 = vmatprep.subr.mxu0 0.0
      %3708 = vmatpush1.msra.mxu0 %v3370
      %3709 = vmatprep.subr.mxu0 0.0
      %3710 = vmatpush1.msra.mxu0 %v3413
      %3711 = vmatprep.subr.mxu0 0.0
      %3712 = vmatpush1.msra.mxu0 %v3414
      %3713 = vmatprep.subr.mxu0 0.0
      %3714 = vmatpush1.msra.mxu0 %v3415
      %3715 = vmatprep.subr.mxu0 0.0
      %3716 = vmatpush1.msra.mxu0 %v3458
      %3717 = vmatprep.subr.mxu0 0.0
      %3718 = vmatpush1.msra.mxu0 %v3459
      %3719 = vmatprep.subr.mxu0 0.0
      %3720 = vmatpush1.msra.mxu0 %v3460
      %3721 = vmatprep.subr.mxu0 0.0
      %3722 = vmatpush1.msra.mxu0 0.0
      %3723 = vmatprep.subr.mxu0 0.0
      %3724 = vmatpush1.msra.mxu0 0.0
      %3725 = vmatprep.subr.mxu0 0.0
      %3726 = vmatpush1.msra.mxu0 0.0
      %3727 = vmatprep.subr.mxu0 0.0
      %3728 = vmatpush1.msra.mxu0 0.0
      %3729 = vmatprep.subr.mxu0 0.0
      %3730 = vmatpush1.msra.mxu0 0.0
      %3731 = vmatprep.mubr.f32.mxu0 %v3493
      %3732 = vmatmul.mubr.f32.gmra.mrb[0].mxu0 %v3047
      %v3733 = vpop.f32.mrb[0].mxu0
      %v3734 = vadd.f32 %v3480, %v3733
      %v3735 = vpop.f32.mrb[0].mxu0
      %3736 = vmatprep.mubr.f32.mxu0 %v3496
      %3737 = vmatmul.mubr.f32.gmra.mrb[0].mxu0 %v3049
      %v3738 = vpop.f32.mrb[0].mxu0
      %v3739 = vadd.f32 %v3485, %v3738
      %v3740 = vpop.f32.mrb[0].mxu0
      %3741 = vmatprep.mubr.f32.mxu0 %v3499
      %3742 = vmatmul.mubr.f32.gmra.mrb[0].mxu0 %v3051
      %v3743 = vpop.f32.mrb[0].mxu0
      %v3744 = vadd.f32 %v3490, %v3743
      %v3745 = vpop.f32.mrb[0].mxu0
      %3746 = vdwg.mxu0
      %v3747 = vadd.f32 %v2217, %v3568
      %v3748 = vadd.f32 %v2218, %v3570
      %v3749 = vadd.f32 %v2219, %v3651
      %v3750 = vadd.f32 %v2220, %v3653
      %v3751 = vadd.f32 %v2221, %v3734
      %v3752 = vadd.f32 %v2222, %v3574
      %v3753 = vadd.f32 %v2223, %v3576
      %v3754 = vadd.f32 %v2224, %v3657
      %v3755 = vadd.f32 %v2225, %v3659
      %v3756 = vadd.f32 %v2226, %v3739
      %v3757 = vadd.f32 %v2227, %v3580
      %v3758 = vadd.f32 %v2228, %v3582
      %v3759 = vadd.f32 %v2229, %v3663
      %v3760 = vadd.f32 %v2230, %v3665
      %v3761 = vadd.f32 %v2231, %v3744
      %s3762 = scalar_lea.vmem %s2, 192
      %v3763 = vld [vmem:[%s3762] sm:$0xff]
      %v3764 = vld [vmem:[%s3762 + $0x8] sm:$0xff]
      %v3765 = vmul.f32 %v3747, %v252
      %v3766 = vmul.f32 %v3748, %v256
      %v3767 = vmul.f32 %v3749, %v260
      %v3768 = vmul.f32 %v3750, %v264
      %v3769 = vmul.f32 %v3751, %v268
      %v3770 = vmul.f32 %v3752, %v252
      %v3771 = vmul.f32 %v3753, %v256
      %v3772 = vmul.f32 %v3754, %v260
      %v3773 = vmul.f32 %v3755, %v264
      %v3774 = vmul.f32 %v3756, %v268
      %v3775 = vmul.f32 %v3757, %v252
      %v3776 = vmul.f32 %v3758, %v256
      %v3777 = vmul.f32 %v3759, %v260
      %v3778 = vmul.f32 %v3760, %v264
      %v3779 = vmul.f32 %v3761, %v268
      %3780 = vrot.lane.b32.xlu0 %v3765, 9
      %v3781 = vpop.permute.xlu0 %3780
      %3782 = vrot.lane.b32.xlu0 %v3770, 9
      %v3783 = vpop.permute.xlu0 %3782
      %3784 = vrot.lane.b32.xlu0 %v3775, 9
      %v3785 = vpop.permute.xlu0 %3784
      %3786 = vrot.lane.b32.xlu0 %v3766, 9
      %v3787 = vpop.permute.xlu0 %3786
      %3788 = vrot.lane.b32.xlu0 %v3771, 9
      %v3789 = vpop.permute.xlu0 %3788
      %3790 = vrot.lane.b32.xlu0 %v3776, 9
      %v3791 = vpop.permute.xlu0 %3790
      %3792 = vrot.lane.b32.xlu0 %v3767, 9
      %v3793 = vpop.permute.xlu0 %3792
      %3794 = vrot.lane.b32.xlu0 %v3772, 9
      %v3795 = vpop.permute.xlu0 %3794
      %3796 = vrot.lane.b32.xlu0 %v3777, 9
      %v3797 = vpop.permute.xlu0 %3796
      %3798 = vrot.lane.b32.xlu0 %v3768, 9
      %v3799 = vpop.permute.xlu0 %3798
      %3800 = vrot.lane.b32.xlu0 %v3773, 9
      %v3801 = vpop.permute.xlu0 %3800
      %3802 = vrot.lane.b32.xlu0 %v3778, 9
      %v3803 = vpop.permute.xlu0 %3802
      %3804 = vrot.lane.b32.xlu0 %v3769, 9
      %v3805 = vpop.permute.xlu0 %3804
      %3806 = vrot.lane.b32.xlu0 %v3774, 9
      %v3807 = vpop.permute.xlu0 %3806
      %3808 = vrot.lane.b32.xlu0 %v3779, 9
      %v3809 = vpop.permute.xlu0 %3808
      %v3810 = vsel %vm294, %v3799, %v3805
      %v3811 = vsel %vm294, %v3801, %v3807
      %v3812 = vsel %vm294, %v3803, %v3809
      %v3813 = vsel %vm294, %v3793, %v3799
      %v3814 = vsel %vm294, %v3795, %v3801
      %v3815 = vsel %vm294, %v3797, %v3803
      %v3816 = vsel %vm294, %v3787, %v3793
      %v3817 = vsel %vm294, %v3789, %v3795
      %v3818 = vsel %vm294, %v3791, %v3797
      %v3819 = vsel %vm294, %v3781, %v3787
      %v3820 = vsel %vm294, %v3783, %v3789
      %v3821 = vsel %vm294, %v3785, %v3791
      %v3822 = vsel %vm294, %v3805, %v3781
      %v3823 = vsel %vm294, %v3807, %v3783
      %v3824 = vsel %vm294, %v3809, %v3785
      %3825 = vrot.lane.b32.xlu0 %v3765, 8
      %v3826 = vpop.permute.xlu0 %3825
      %3827 = vrot.lane.b32.xlu0 %v3770, 8
      %v3828 = vpop.permute.xlu0 %3827
      %3829 = vrot.lane.b32.xlu0 %v3775, 8
      %v3830 = vpop.permute.xlu0 %3829
      %3831 = vrot.lane.b32.xlu0 %v3766, 8
      %v3832 = vpop.permute.xlu0 %3831
      %3833 = vrot.lane.b32.xlu0 %v3771, 8
      %v3834 = vpop.permute.xlu0 %3833
      %3835 = vrot.lane.b32.xlu0 %v3776, 8
      %v3836 = vpop.permute.xlu0 %3835
      %3837 = vrot.lane.b32.xlu0 %v3767, 8
      %v3838 = vpop.permute.xlu0 %3837
      %3839 = vrot.lane.b32.xlu0 %v3772, 8
      %v3840 = vpop.permute.xlu0 %3839
      %3841 = vrot.lane.b32.xlu0 %v3777, 8
      %v3842 = vpop.permute.xlu0 %3841
      %3843 = vrot.lane.b32.xlu0 %v3768, 8
      %v3844 = vpop.permute.xlu0 %3843
      %3845 = vrot.lane.b32.xlu0 %v3773, 8
      %v3846 = vpop.permute.xlu0 %3845
      %3847 = vrot.lane.b32.xlu0 %v3778, 8
      %v3848 = vpop.permute.xlu0 %3847
      %3849 = vrot.lane.b32.xlu0 %v3769, 8
      %v3850 = vpop.permute.xlu0 %3849
      %3851 = vrot.lane.b32.xlu0 %v3774, 8
      %v3852 = vpop.permute.xlu0 %3851
      %3853 = vrot.lane.b32.xlu0 %v3779, 8
      %v3854 = vpop.permute.xlu0 %3853
      %v3855 = vsel %vm310, %v3844, %v3850
      %v3856 = vsel %vm310, %v3846, %v3852
      %v3857 = vsel %vm310, %v3848, %v3854
      %v3858 = vsel %vm310, %v3838, %v3844
      %v3859 = vsel %vm310, %v3840, %v3846
      %v3860 = vsel %vm310, %v3842, %v3848
      %v3861 = vsel %vm310, %v3832, %v3838
      %v3862 = vsel %vm310, %v3834, %v3840
      %v3863 = vsel %vm310, %v3836, %v3842
      %v3864 = vsel %vm310, %v3826, %v3832
      %v3865 = vsel %vm310, %v3828, %v3834
      %v3866 = vsel %vm310, %v3830, %v3836
      %v3867 = vsel %vm310, %v3850, %v3826
      %v3868 = vsel %vm310, %v3852, %v3828
      %v3869 = vsel %vm310, %v3854, %v3830
      %3870 = vrot.lane.b32.xlu0 %v3765, 7
      %v3871 = vpop.permute.xlu0 %3870
      %3872 = vrot.lane.b32.xlu0 %v3770, 7
      %v3873 = vpop.permute.xlu0 %3872
      %3874 = vrot.lane.b32.xlu0 %v3775, 7
      %v3875 = vpop.permute.xlu0 %3874
      %3876 = vrot.lane.b32.xlu0 %v3766, 7
      %v3877 = vpop.permute.xlu0 %3876
      %3878 = vrot.lane.b32.xlu0 %v3771, 7
      %v3879 = vpop.permute.xlu0 %3878
      %3880 = vrot.lane.b32.xlu0 %v3776, 7
      %v3881 = vpop.permute.xlu0 %3880
      %3882 = vrot.lane.b32.xlu0 %v3767, 7
      %v3883 = vpop.permute.xlu0 %3882
      %3884 = vrot.lane.b32.xlu0 %v3772, 7
      %v3885 = vpop.permute.xlu0 %3884
      %3886 = vrot.lane.b32.xlu0 %v3777, 7
      %v3887 = vpop.permute.xlu0 %3886
      %3888 = vrot.lane.b32.xlu0 %v3768, 7
      %v3889 = vpop.permute.xlu0 %3888
      %3890 = vrot.lane.b32.xlu0 %v3773, 7
      %v3891 = vpop.permute.xlu0 %3890
      %3892 = vrot.lane.b32.xlu0 %v3778, 7
      %v3893 = vpop.permute.xlu0 %3892
      %3894 = vrot.lane.b32.xlu0 %v3769, 7
      %v3895 = vpop.permute.xlu0 %3894
      %3896 = vrot.lane.b32.xlu0 %v3774, 7
      %v3897 = vpop.permute.xlu0 %3896
      %3898 = vrot.lane.b32.xlu0 %v3779, 7
      %v3899 = vpop.permute.xlu0 %3898
      %v3900 = vsel %vm326, %v3889, %v3895
      %v3901 = vsel %vm326, %v3891, %v3897
      %v3902 = vsel %vm326, %v3893, %v3899
      %v3903 = vsel %vm326, %v3883, %v3889
      %v3904 = vsel %vm326, %v3885, %v3891
      %v3905 = vsel %vm326, %v3887, %v3893
      %v3906 = vsel %vm326, %v3877, %v3883
      %v3907 = vsel %vm326, %v3879, %v3885
      %v3908 = vsel %vm326, %v3881, %v3887
      %v3909 = vsel %vm326, %v3871, %v3877
      %v3910 = vsel %vm326, %v3873, %v3879
      %v3911 = vsel %vm326, %v3875, %v3881
      %v3912 = vsel %vm326, %v3895, %v3871
      %v3913 = vsel %vm326, %v3897, %v3873
      %v3914 = vsel %vm326, %v3899, %v3875
      %3915 = vrot.lane.b32.xlu0 %v3765, 6
      %v3916 = vpop.permute.xlu0 %3915
      %3917 = vrot.lane.b32.xlu0 %v3770, 6
      %v3918 = vpop.permute.xlu0 %3917
      %3919 = vrot.lane.b32.xlu0 %v3775, 6
      %v3920 = vpop.permute.xlu0 %3919
      %3921 = vrot.lane.b32.xlu0 %v3766, 6
      %v3922 = vpop.permute.xlu0 %3921
      %3923 = vrot.lane.b32.xlu0 %v3771, 6
      %v3924 = vpop.permute.xlu0 %3923
      %3925 = vrot.lane.b32.xlu0 %v3776, 6
      %v3926 = vpop.permute.xlu0 %3925
      %3927 = vrot.lane.b32.xlu0 %v3767, 6
      %v3928 = vpop.permute.xlu0 %3927
      %3929 = vrot.lane.b32.xlu0 %v3772, 6
      %v3930 = vpop.permute.xlu0 %3929
      %3931 = vrot.lane.b32.xlu0 %v3777, 6
      %v3932 = vpop.permute.xlu0 %3931
      %3933 = vrot.lane.b32.xlu0 %v3768, 6
      %v3934 = vpop.permute.xlu0 %3933
      %3935 = vrot.lane.b32.xlu0 %v3773, 6
      %v3936 = vpop.permute.xlu0 %3935
      %3937 = vrot.lane.b32.xlu0 %v3778, 6
      %v3938 = vpop.permute.xlu0 %3937
      %3939 = vrot.lane.b32.xlu0 %v3769, 6
      %v3940 = vpop.permute.xlu0 %3939
      %3941 = vrot.lane.b32.xlu0 %v3774, 6
      %v3942 = vpop.permute.xlu0 %3941
      %3943 = vrot.lane.b32.xlu0 %v3779, 6
      %v3944 = vpop.permute.xlu0 %3943
      %v3945 = vsel %vm342, %v3934, %v3940
      %v3946 = vsel %vm342, %v3936, %v3942
      %v3947 = vsel %vm342, %v3938, %v3944
      %v3948 = vsel %vm342, %v3928, %v3934
      %v3949 = vsel %vm342, %v3930, %v3936
      %v3950 = vsel %vm342, %v3932, %v3938
      %v3951 = vsel %vm342, %v3922, %v3928
      %v3952 = vsel %vm342, %v3924, %v3930
      %v3953 = vsel %vm342, %v3926, %v3932
      %v3954 = vsel %vm342, %v3916, %v3922
      %v3955 = vsel %vm342, %v3918, %v3924
      %v3956 = vsel %vm342, %v3920, %v3926
      %v3957 = vsel %vm342, %v3940, %v3916
      %v3958 = vsel %vm342, %v3942, %v3918
      %v3959 = vsel %vm342, %v3944, %v3920
      %3960 = vrot.lane.b32.xlu0 %v3765, 5
      %v3961 = vpop.permute.xlu0 %3960
      %3962 = vrot.lane.b32.xlu0 %v3770, 5
      %v3963 = vpop.permute.xlu0 %3962
      %3964 = vrot.lane.b32.xlu0 %v3775, 5
      %v3965 = vpop.permute.xlu0 %3964
      %3966 = vrot.lane.b32.xlu0 %v3766, 5
      %v3967 = vpop.permute.xlu0 %3966
      %3968 = vrot.lane.b32.xlu0 %v3771, 5
      %v3969 = vpop.permute.xlu0 %3968
      %3970 = vrot.lane.b32.xlu0 %v3776, 5
      %v3971 = vpop.permute.xlu0 %3970
      %3972 = vrot.lane.b32.xlu0 %v3767, 5
      %v3973 = vpop.permute.xlu0 %3972
      %3974 = vrot.lane.b32.xlu0 %v3772, 5
      %v3975 = vpop.permute.xlu0 %3974
      %3976 = vrot.lane.b32.xlu0 %v3777, 5
      %v3977 = vpop.permute.xlu0 %3976
      %3978 = vrot.lane.b32.xlu0 %v3768, 5
      %v3979 = vpop.permute.xlu0 %3978
      %3980 = vrot.lane.b32.xlu0 %v3773, 5
      %v3981 = vpop.permute.xlu0 %3980
      %3982 = vrot.lane.b32.xlu0 %v3778, 5
      %v3983 = vpop.permute.xlu0 %3982
      %3984 = vrot.lane.b32.xlu0 %v3769, 5
      %v3985 = vpop.permute.xlu0 %3984
      %3986 = vrot.lane.b32.xlu0 %v3774, 5
      %v3987 = vpop.permute.xlu0 %3986
      %3988 = vrot.lane.b32.xlu0 %v3779, 5
      %v3989 = vpop.permute.xlu0 %3988
      %v3990 = vsel %vm358, %v3979, %v3985
      %v3991 = vsel %vm358, %v3981, %v3987
      %v3992 = vsel %vm358, %v3983, %v3989
      %v3993 = vsel %vm358, %v3973, %v3979
      %v3994 = vsel %vm358, %v3975, %v3981
      %v3995 = vsel %vm358, %v3977, %v3983
      %v3996 = vsel %vm358, %v3967, %v3973
      %v3997 = vsel %vm358, %v3969, %v3975
      %v3998 = vsel %vm358, %v3971, %v3977
      %v3999 = vsel %vm358, %v3961, %v3967
      %v4000 = vsel %vm358, %v3963, %v3969
      %v4001 = vsel %vm358, %v3965, %v3971
      %v4002 = vsel %vm358, %v3985, %v3961
      %v4003 = vsel %vm358, %v3987, %v3963
      %v4004 = vsel %vm358, %v3989, %v3965
      %4005 = vrot.lane.b32.xlu0 %v3765, 4
      %v4006 = vpop.permute.xlu0 %4005
      %4007 = vrot.lane.b32.xlu0 %v3770, 4
      %v4008 = vpop.permute.xlu0 %4007
      %4009 = vrot.lane.b32.xlu0 %v3775, 4
      %v4010 = vpop.permute.xlu0 %4009
      %4011 = vrot.lane.b32.xlu0 %v3766, 4
      %v4012 = vpop.permute.xlu0 %4011
      %4013 = vrot.lane.b32.xlu0 %v3771, 4
      %v4014 = vpop.permute.xlu0 %4013
      %4015 = vrot.lane.b32.xlu0 %v3776, 4
      %v4016 = vpop.permute.xlu0 %4015
      %4017 = vrot.lane.b32.xlu0 %v3767, 4
      %v4018 = vpop.permute.xlu0 %4017
      %4019 = vrot.lane.b32.xlu0 %v3772, 4
      %v4020 = vpop.permute.xlu0 %4019
      %4021 = vrot.lane.b32.xlu0 %v3777, 4
      %v4022 = vpop.permute.xlu0 %4021
      %4023 = vrot.lane.b32.xlu0 %v3768, 4
      %v4024 = vpop.permute.xlu0 %4023
      %4025 = vrot.lane.b32.xlu0 %v3773, 4
      %v4026 = vpop.permute.xlu0 %4025
      %4027 = vrot.lane.b32.xlu0 %v3778, 4
      %v4028 = vpop.permute.xlu0 %4027
      %4029 = vrot.lane.b32.xlu0 %v3769, 4
      %v4030 = vpop.permute.xlu0 %4029
      %4031 = vrot.lane.b32.xlu0 %v3774, 4
      %v4032 = vpop.permute.xlu0 %4031
      %4033 = vrot.lane.b32.xlu0 %v3779, 4
      %v4034 = vpop.permute.xlu0 %4033
      %v4035 = vsel %vm374, %v4024, %v4030
      %v4036 = vsel %vm374, %v4026, %v4032
      %v4037 = vsel %vm374, %v4028, %v4034
      %v4038 = vsel %vm374, %v4018, %v4024
      %v4039 = vsel %vm374, %v4020, %v4026
      %v4040 = vsel %vm374, %v4022, %v4028
      %v4041 = vsel %vm374, %v4012, %v4018
      %v4042 = vsel %vm374, %v4014, %v4020
      %v4043 = vsel %vm374, %v4016, %v4022
      %v4044 = vsel %vm374, %v4006, %v4012
      %v4045 = vsel %vm374, %v4008, %v4014
      %v4046 = vsel %vm374, %v4010, %v4016
      %v4047 = vsel %vm374, %v4030, %v4006
      %v4048 = vsel %vm374, %v4032, %v4008
      %v4049 = vsel %vm374, %v4034, %v4010
      %4050 = vrot.lane.b32.xlu0 %v3765, 3
      %v4051 = vpop.permute.xlu0 %4050
      %4052 = vrot.lane.b32.xlu0 %v3770, 3
      %v4053 = vpop.permute.xlu0 %4052
      %4054 = vrot.lane.b32.xlu0 %v3775, 3
      %v4055 = vpop.permute.xlu0 %4054
      %4056 = vrot.lane.b32.xlu0 %v3766, 3
      %v4057 = vpop.permute.xlu0 %4056
      %4058 = vrot.lane.b32.xlu0 %v3771, 3
      %v4059 = vpop.permute.xlu0 %4058
      %4060 = vrot.lane.b32.xlu0 %v3776, 3
      %v4061 = vpop.permute.xlu0 %4060
      %4062 = vrot.lane.b32.xlu0 %v3767, 3
      %v4063 = vpop.permute.xlu0 %4062
      %4064 = vrot.lane.b32.xlu0 %v3772, 3
      %v4065 = vpop.permute.xlu0 %4064
      %4066 = vrot.lane.b32.xlu0 %v3777, 3
      %v4067 = vpop.permute.xlu0 %4066
      %4068 = vrot.lane.b32.xlu0 %v3768, 3
      %v4069 = vpop.permute.xlu0 %4068
      %4070 = vrot.lane.b32.xlu0 %v3773, 3
      %v4071 = vpop.permute.xlu0 %4070
      %4072 = vrot.lane.b32.xlu0 %v3778, 3
      %v4073 = vpop.permute.xlu0 %4072
      %4074 = vrot.lane.b32.xlu0 %v3769, 3
      %v4075 = vpop.permute.xlu0 %4074
      %4076 = vrot.lane.b32.xlu0 %v3774, 3
      %v4077 = vpop.permute.xlu0 %4076
      %4078 = vrot.lane.b32.xlu0 %v3779, 3
      %v4079 = vpop.permute.xlu0 %4078
      %v4080 = vsel %vm390, %v4069, %v4075
      %v4081 = vsel %vm390, %v4071, %v4077
      %v4082 = vsel %vm390, %v4073, %v4079
      %v4083 = vsel %vm390, %v4063, %v4069
      %v4084 = vsel %vm390, %v4065, %v4071
      %v4085 = vsel %vm390, %v4067, %v4073
      %v4086 = vsel %vm390, %v4057, %v4063
      %v4087 = vsel %vm390, %v4059, %v4065
      %v4088 = vsel %vm390, %v4061, %v4067
      %v4089 = vsel %vm390, %v4051, %v4057
      %v4090 = vsel %vm390, %v4053, %v4059
      %v4091 = vsel %vm390, %v4055, %v4061
      %v4092 = vsel %vm390, %v4075, %v4051
      %v4093 = vsel %vm390, %v4077, %v4053
      %v4094 = vsel %vm390, %v4079, %v4055
      %4095 = vrot.lane.b32.xlu0 %v3765, 2
      %v4096 = vpop.permute.xlu0 %4095
      %4097 = vrot.lane.b32.xlu0 %v3770, 2
      %v4098 = vpop.permute.xlu0 %4097
      %4099 = vrot.lane.b32.xlu0 %v3775, 2
      %v4100 = vpop.permute.xlu0 %4099
      %4101 = vrot.lane.b32.xlu0 %v3766, 2
      %v4102 = vpop.permute.xlu0 %4101
      %4103 = vrot.lane.b32.xlu0 %v3771, 2
      %v4104 = vpop.permute.xlu0 %4103
      %4105 = vrot.lane.b32.xlu0 %v3776, 2
      %v4106 = vpop.permute.xlu0 %4105
      %4107 = vrot.lane.b32.xlu0 %v3767, 2
      %v4108 = vpop.permute.xlu0 %4107
      %4109 = vrot.lane.b32.xlu0 %v3772, 2
      %v4110 = vpop.permute.xlu0 %4109
      %4111 = vrot.lane.b32.xlu0 %v3777, 2
      %v4112 = vpop.permute.xlu0 %4111
      %4113 = vrot.lane.b32.xlu0 %v3768, 2
      %v4114 = vpop.permute.xlu0 %4113
      %4115 = vrot.lane.b32.xlu0 %v3773, 2
      %v4116 = vpop.permute.xlu0 %4115
      %4117 = vrot.lane.b32.xlu0 %v3778, 2
      %v4118 = vpop.permute.xlu0 %4117
      %4119 = vrot.lane.b32.xlu0 %v3769, 2
      %v4120 = vpop.permute.xlu0 %4119
      %4121 = vrot.lane.b32.xlu0 %v3774, 2
      %v4122 = vpop.permute.xlu0 %4121
      %4123 = vrot.lane.b32.xlu0 %v3779, 2
      %v4124 = vpop.permute.xlu0 %4123
      %v4125 = vsel %vm406, %v4114, %v4120
      %v4126 = vsel %vm406, %v4116, %v4122
      %v4127 = vsel %vm406, %v4118, %v4124
      %v4128 = vsel %vm406, %v4108, %v4114
      %v4129 = vsel %vm406, %v4110, %v4116
      %v4130 = vsel %vm406, %v4112, %v4118
      %v4131 = vsel %vm406, %v4102, %v4108
      %v4132 = vsel %vm406, %v4104, %v4110
      %v4133 = vsel %vm406, %v4106, %v4112
      %v4134 = vsel %vm406, %v4096, %v4102
      %v4135 = vsel %vm406, %v4098, %v4104
      %v4136 = vsel %vm406, %v4100, %v4106
      %v4137 = vsel %vm406, %v4120, %v4096
      %v4138 = vsel %vm406, %v4122, %v4098
      %v4139 = vsel %vm406, %v4124, %v4100
      %4140 = vrot.lane.b32.xlu0 %v3765, 1
      %v4141 = vpop.permute.xlu0 %4140
      %4142 = vrot.lane.b32.xlu0 %v3770, 1
      %v4143 = vpop.permute.xlu0 %4142
      %4144 = vrot.lane.b32.xlu0 %v3775, 1
      %v4145 = vpop.permute.xlu0 %4144
      %4146 = vrot.lane.b32.xlu0 %v3766, 1
      %v4147 = vpop.permute.xlu0 %4146
      %4148 = vrot.lane.b32.xlu0 %v3771, 1
      %v4149 = vpop.permute.xlu0 %4148
      %4150 = vrot.lane.b32.xlu0 %v3776, 1
      %v4151 = vpop.permute.xlu0 %4150
      %4152 = vrot.lane.b32.xlu0 %v3767, 1
      %v4153 = vpop.permute.xlu0 %4152
      %4154 = vrot.lane.b32.xlu0 %v3772, 1
      %v4155 = vpop.permute.xlu0 %4154
      %4156 = vrot.lane.b32.xlu0 %v3777, 1
      %v4157 = vpop.permute.xlu0 %4156
      %4158 = vrot.lane.b32.xlu0 %v3768, 1
      %v4159 = vpop.permute.xlu0 %4158
      %4160 = vrot.lane.b32.xlu0 %v3773, 1
      %v4161 = vpop.permute.xlu0 %4160
      %4162 = vrot.lane.b32.xlu0 %v3778, 1
      %v4163 = vpop.permute.xlu0 %4162
      %4164 = vrot.lane.b32.xlu0 %v3769, 1
      %v4165 = vpop.permute.xlu0 %4164
      %4166 = vrot.lane.b32.xlu0 %v3774, 1
      %v4167 = vpop.permute.xlu0 %4166
      %4168 = vrot.lane.b32.xlu0 %v3779, 1
      %v4169 = vpop.permute.xlu0 %4168
      %v4170 = vsel %vm422, %v4159, %v4165
      %v4171 = vsel %vm422, %v4161, %v4167
      %v4172 = vsel %vm422, %v4163, %v4169
      %v4173 = vsel %vm422, %v4153, %v4159
      %v4174 = vsel %vm422, %v4155, %v4161
      %v4175 = vsel %vm422, %v4157, %v4163
      %v4176 = vsel %vm422, %v4147, %v4153
      %v4177 = vsel %vm422, %v4149, %v4155
      %v4178 = vsel %vm422, %v4151, %v4157
      %v4179 = vsel %vm422, %v4141, %v4147
      %v4180 = vsel %vm422, %v4143, %v4149
      %v4181 = vsel %vm422, %v4145, %v4151
      %v4182 = vsel %vm422, %v4165, %v4141
      %v4183 = vsel %vm422, %v4167, %v4143
      %v4184 = vsel %vm422, %v4169, %v4145
      %s4185 = scalar_lea.vmem %s3, 120
      %v4186 = vld [vmem:[%s4185] sm:$0xff]
      %4188 = vset.pattern.permute.xlu0 0
      %4189 = vperm.xlu0 %4188, %v4186
      %v4190 = vpop.permute.xlu0 %4189
      %v4193 = vsel %vm1215, %v3764, 0
      %4195 = vmatprep.subr.mxu0 %v3819
      %4196 = vmatpush1.msra.mxu0 %v3822
      %4197 = vmatprep.subr.mxu0 %v3820
      %4198 = vmatpush1.msra.mxu0 %v3823
      %4199 = vmatprep.subr.mxu0 %v3821
      %4200 = vmatpush1.msra.mxu0 %v3824
      %4201 = vmatprep.subr.mxu0 %v3864
      %4202 = vmatpush1.msra.mxu0 %v3867
      %4203 = vmatprep.subr.mxu0 %v3865
      %4204 = vmatpush1.msra.mxu0 %v3868
      %4205 = vmatprep.subr.mxu0 %v3866
      %4206 = vmatpush1.msra.mxu0 %v3869
      %4207 = vmatprep.subr.mxu0 %v3909
      %4208 = vmatpush1.msra.mxu0 %v3912
      %4209 = vmatprep.subr.mxu0 %v3910
      %4210 = vmatpush1.msra.mxu0 %v3913
      %4211 = vmatprep.subr.mxu0 %v3911
      %4212 = vmatpush1.msra.mxu0 %v3914
      %4213 = vmatprep.subr.mxu0 %v3954
      %4214 = vmatpush1.msra.mxu0 %v3957
      %4215 = vmatprep.subr.mxu0 %v3955
      %4216 = vmatpush1.msra.mxu0 %v3958
      %4217 = vmatprep.subr.mxu0 %v3956
      %4218 = vmatpush1.msra.mxu0 %v3959
      %4219 = vmatprep.subr.mxu0 %v3999
      %4220 = vmatpush1.msra.mxu0 %v4002
      %4221 = vmatprep.subr.mxu0 %v4000
      %4222 = vmatpush1.msra.mxu0 %v4003
      %4223 = vmatprep.subr.mxu0 %v4001
      %4224 = vmatpush1.msra.mxu0 %v4004
      %4225 = vmatprep.subr.mxu0 %v4044
      %4226 = vmatpush1.msra.mxu0 %v4047
      %4227 = vmatprep.subr.mxu0 %v4045
      %4228 = vmatpush1.msra.mxu0 %v4048
      %4229 = vmatprep.subr.mxu0 %v4046
      %4230 = vmatpush1.msra.mxu0 %v4049
      %4231 = vmatprep.subr.mxu0 %v4089
      %4232 = vmatpush1.msra.mxu0 %v4092
      %4233 = vmatprep.subr.mxu0 %v4090
      %4234 = vmatpush1.msra.mxu0 %v4093
      %4235 = vmatprep.subr.mxu0 %v4091
      %4236 = vmatpush1.msra.mxu0 %v4094
      %4237 = vmatprep.subr.mxu0 %v4134
      %4238 = vmatpush1.msra.mxu0 %v4137
      %4239 = vmatprep.subr.mxu0 %v4135
      %4240 = vmatpush1.msra.mxu0 %v4138
      %4241 = vmatprep.subr.mxu0 %v4136
      %4242 = vmatpush1.msra.mxu0 %v4139
      %4243 = vmatprep.subr.mxu0 %v4179
      %4244 = vmatpush1.msra.mxu0 %v4182
      %4245 = vmatprep.subr.mxu0 %v4180
      %4246 = vmatpush1.msra.mxu0 %v4183
      %4247 = vmatprep.subr.mxu0 %v4181
      %4248 = vmatpush1.msra.mxu0 %v4184
      %4249 = vmatprep.subr.mxu0 0.0
      %4250 = vmatpush1.msra.mxu0 0.0
      %4251 = vmatprep.subr.mxu0 0.0
      %4252 = vmatpush1.msra.mxu0 0.0
      %4253 = vmatprep.subr.mxu0 0.0
      %4254 = vmatpush1.msra.mxu0 0.0
      %4255 = vmatprep.subr.mxu0 0.0
      %4256 = vmatpush1.msra.mxu0 0.0
      %4257 = vmatprep.subr.mxu0 0.0
      %4258 = vmatpush1.msra.mxu0 0.0
      %4259 = vmatprep.mubr.f32.mxu0 %v4193
      %4260 = vmatmul.mubr.f32.gmra.mrb[0].mxu0 %v3763
      %v4261 = vpop.f32.mrb[0].mxu0
      %v4262 = vadd.f32 %v4190, %v4261
      %v4263 = vpop.f32.mrb[0].mxu0
      %v4264 = vadd.f32 %v4190, %v4263
      %4265 = vdwg.mxu0
      %4266 = vmatprep.subr.mxu0 %v3813
      %4267 = vmatpush1.msra.mxu0 %v3816
      %4268 = vmatprep.subr.mxu0 %v3814
      %4269 = vmatpush1.msra.mxu0 %v3817
      %4270 = vmatprep.subr.mxu0 %v3815
      %4271 = vmatpush1.msra.mxu0 %v3818
      %4272 = vmatprep.subr.mxu0 %v3858
      %4273 = vmatpush1.msra.mxu0 %v3861
      %4274 = vmatprep.subr.mxu0 %v3859
      %4275 = vmatpush1.msra.mxu0 %v3862
      %4276 = vmatprep.subr.mxu0 %v3860
      %4277 = vmatpush1.msra.mxu0 %v3863
      %4278 = vmatprep.subr.mxu0 %v3903
      %4279 = vmatpush1.msra.mxu0 %v3906
      %4280 = vmatprep.subr.mxu0 %v3904
      %4281 = vmatpush1.msra.mxu0 %v3907
      %4282 = vmatprep.subr.mxu0 %v3905
      %4283 = vmatpush1.msra.mxu0 %v3908
      %4284 = vmatprep.subr.mxu0 %v3948
      %4285 = vmatpush1.msra.mxu0 %v3951
      %4286 = vmatprep.subr.mxu0 %v3949
      %4287 = vmatpush1.msra.mxu0 %v3952
      %4288 = vmatprep.subr.mxu0 %v3950
      %4289 = vmatpush1.msra.mxu0 %v3953
      %4290 = vmatprep.subr.mxu0 %v3993
      %4291 = vmatpush1.msra.mxu0 %v3996
      %4292 = vmatprep.subr.mxu0 %v3994
      %4293 = vmatpush1.msra.mxu0 %v3997
      %4294 = vmatprep.subr.mxu0 %v3995
      %4295 = vmatpush1.msra.mxu0 %v3998
      %4296 = vmatprep.subr.mxu0 %v4038
      %4297 = vmatpush1.msra.mxu0 %v4041
      %4298 = vmatprep.subr.mxu0 %v4039
      %4299 = vmatpush1.msra.mxu0 %v4042
      %4300 = vmatprep.subr.mxu0 %v4040
      %4301 = vmatpush1.msra.mxu0 %v4043
      %4302 = vmatprep.subr.mxu0 %v4083
      %4303 = vmatpush1.msra.mxu0 %v4086
      %4304 = vmatprep.subr.mxu0 %v4084
      %4305 = vmatpush1.msra.mxu0 %v4087
      %4306 = vmatprep.subr.mxu0 %v4085
      %4307 = vmatpush1.msra.mxu0 %v4088
      %4308 = vmatprep.subr.mxu0 %v4128
      %4309 = vmatpush1.msra.mxu0 %v4131
      %4310 = vmatprep.subr.mxu0 %v4129
      %4311 = vmatpush1.msra.mxu0 %v4132
      %4312 = vmatprep.subr.mxu0 %v4130
      %4313 = vmatpush1.msra.mxu0 %v4133
      %4314 = vmatprep.subr.mxu0 %v4173
      %4315 = vmatpush1.msra.mxu0 %v4176
      %4316 = vmatprep.subr.mxu0 %v4174
      %4317 = vmatpush1.msra.mxu0 %v4177
      %4318 = vmatprep.subr.mxu0 %v4175
      %4319 = vmatpush1.msra.mxu0 %v4178
      %4320 = vmatprep.subr.mxu0 0.0
      %4321 = vmatpush1.msra.mxu0 0.0
      %4322 = vmatprep.subr.mxu0 0.0
      %4323 = vmatpush1.msra.mxu0 0.0
      %4324 = vmatprep.subr.mxu0 0.0
      %4325 = vmatpush1.msra.mxu0 0.0
      %4326 = vmatprep.subr.mxu0 0.0
      %4327 = vmatpush1.msra.mxu0 0.0
      %4328 = vmatprep.subr.mxu0 0.0
      %4329 = vmatpush1.msra.mxu0 0.0
      %4330 = vmatprep.mubr.f32.mxu0 %v4193
      %4331 = vmatmul.mubr.f32.gmra.mrb[0].mxu0 %v3763
      %v4332 = vpop.f32.mrb[0].mxu0
      %v4333 = vadd.f32 %v4190, %v4332
      %v4334 = vpop.f32.mrb[0].mxu0
      %v4335 = vadd.f32 %v4190, %v4334
      %4336 = vdwg.mxu0
      %4337 = vmatprep.subr.mxu0 0.0
      %4338 = vmatpush1.msra.mxu0 %v3810
      %4339 = vmatprep.subr.mxu0 0.0
      %4340 = vmatpush1.msra.mxu0 %v3811
      %4341 = vmatprep.subr.mxu0 0.0
      %4342 = vmatpush1.msra.mxu0 %v3812
      %4343 = vmatprep.subr.mxu0 0.0
      %4344 = vmatpush1.msra.mxu0 %v3855
      %4345 = vmatprep.subr.mxu0 0.0
      %4346 = vmatpush1.msra.mxu0 %v3856
      %4347 = vmatprep.subr.mxu0 0.0
      %4348 = vmatpush1.msra.mxu0 %v3857
      %4349 = vmatprep.subr.mxu0 0.0
      %4350 = vmatpush1.msra.mxu0 %v3900
      %4351 = vmatprep.subr.mxu0 0.0
      %4352 = vmatpush1.msra.mxu0 %v3901
      %4353 = vmatprep.subr.mxu0 0.0
      %4354 = vmatpush1.msra.mxu0 %v3902
      %4355 = vmatprep.subr.mxu0 0.0
      %4356 = vmatpush1.msra.mxu0 %v3945
      %4357 = vmatprep.subr.mxu0 0.0
      %4358 = vmatpush1.msra.mxu0 %v3946
      %4359 = vmatprep.subr.mxu0 0.0
      %4360 = vmatpush1.msra.mxu0 %v3947
      %4361 = vmatprep.subr.mxu0 0.0
      %4362 = vmatpush1.msra.mxu0 %v3990
      %4363 = vmatprep.subr.mxu0 0.0
      %4364 = vmatpush1.msra.mxu0 %v3991
      %4365 = vmatprep.subr.mxu0 0.0
      %4366 = vmatpush1.msra.mxu0 %v3992
      %4367 = vmatprep.subr.mxu0 0.0
      %4368 = vmatpush1.msra.mxu0 %v4035
      %4369 = vmatprep.subr.mxu0 0.0
      %4370 = vmatpush1.msra.mxu0 %v4036
      %4371 = vmatprep.subr.mxu0 0.0
      %4372 = vmatpush1.msra.mxu0 %v4037
      %4373 = vmatprep.subr.mxu0 0.0
      %4374 = vmatpush1.msra.mxu0 %v4080
      %4375 = vmatprep.subr.mxu0 0.0
      %4376 = vmatpush1.msra.mxu0 %v4081
      %4377 = vmatprep.subr.mxu0 0.0
      %4378 = vmatpush1.msra.mxu0 %v4082
      %4379 = vmatprep.subr.mxu0 0.0
      %4380 = vmatpush1.msra.mxu0 %v4125
      %4381 = vmatprep.subr.mxu0 0.0
      %4382 = vmatpush1.msra.mxu0 %v4126
      %4383 = vmatprep.subr.mxu0 0.0
      %4384 = vmatpush1.msra.mxu0 %v4127
      %4385 = vmatprep.subr.mxu0 0.0
      %4386 = vmatpush1.msra.mxu0 %v4170
      %4387 = vmatprep.subr.mxu0 0.0
      %4388 = vmatpush1.msra.mxu0 %v4171
      %4389 = vmatprep.subr.mxu0 0.0
      %4390 = vmatpush1.msra.mxu0 %v4172
      %4391 = vmatprep.subr.mxu0 0.0
      %4392 = vmatpush1.msra.mxu0 0.0
      %4393 = vmatprep.subr.mxu0 0.0
      %4394 = vmatpush1.msra.mxu0 0.0
      %4395 = vmatprep.subr.mxu0 0.0
      %4396 = vmatpush1.msra.mxu0 0.0
      %4397 = vmatprep.subr.mxu0 0.0
      %4398 = vmatpush1.msra.mxu0 0.0
      %4399 = vmatprep.subr.mxu0 0.0
      %4400 = vmatpush1.msra.mxu0 0.0
      %4401 = vmatprep.mubr.f32.mxu0 %v4193
      %4402 = vmatmul.mubr.f32.gmra.mrb[0].mxu0 %v3763
      %v4403 = vpop.f32.mrb[0].mxu0
      %v4404 = vadd.f32 %v4190, %v4403
      %v4405 = vpop.f32.mrb[0].mxu0
      %4406 = vdwg.mxu0
      %v4407 = vlaneseq
      %v4408 = vshrl.u32 %v4407, 7
      %vm4409 = vcmp.eq.s32.totalorder %v4408, 0
      %v4410 = vmax.f32 %v4262, -10.0
      %v4411 = vmax.f32 %v4264, -10.0
      %v4412 = vmax.f32 %v4333, -10.0
      %v4413 = vmax.f32 %v4335, -10.0
      %v4414 = vmax.f32 %v4404, -10.0
      %v4415 = vmin.f32 %v4410, 10.0
      %v4416 = vmin.f32 %v4411, 10.0
      %v4417 = vmin.f32 %v4412, 10.0
      %v4418 = vmin.f32 %v4413, 10.0
      %v4419 = vmin.f32 %v4414, 10.0
      %v4420 = vsel %vm4409, %v4262, %v4415
      %v4421 = vsel %vm4409, %v4264, %v4416
      %v4422 = vsel %vm4409, %v4333, %v4417
      %v4423 = vsel %vm4409, %v4335, %v4418
      %v4424 = vsel %vm4409, %v4404, %v4419
      %4425 = vst [vmem:[%s245] sm:$0xff] %v4420
      %4426 = vst [vmem:[%s245 + $0x8] sm:$0xff] %v4421
      %4427 = vst [vmem:[%s245 + $0x10] sm:$0xff] %v4422
      %4428 = vst [vmem:[%s245 + $0x18] sm:$0xff] %v4423
      %4429 = vst [vmem:[%s245 + $0x20] sm:$0xff] %v4424
      %s4430 = smul.u32 5, %s16
      %p4431 = scmp.lt.s32.totalorder %s4430, 9
      %s4432 = scalar_select %p4431, %s4430, 9
      %s4433 = smul.addr %s4432, 8
      %s4434 = scalar_lea.vmem %s5, %s4433
      // Predicated region
      $region41: #{cnn_forward.1} parent=39 // pred_check
        %p4435 = pneg %p149
      $region42: #{cnn_forward.1} parent=39 // pred_check_branch
        %4437 = sbr.rel (%p4435) target = $region44
      $region43: #{cnn_forward.1} parent=39 // pred_region
        %s4438 = smul.u32 5, %s16
      $region44: #{cnn_forward.1} parent=39 // pred_fallthru
        _
    $region40: #{cnn_forward.1} parent=5 // pred_fallthru
      _
    %p4439 = scmp.le.s32.totalorder 2, %s11
    // Predicated region
    $region45: #{cnn_forward.1} parent=5 // pred_check
      %p4440 = pneg %p4439
    $region46: #{cnn_forward.1} parent=5 // pred_check_branch
      %4442 = sbr.rel (%p4440) target = $region48
    $region47: #{cnn_forward.1} parent=5 // pred_region
      %s4443 = ssub.s32 %s11, 2
      // Predicated region
      $region49: #{cnn_forward.1} parent=47 // pred_check
        %p4444 = pneg %p155
      $region50: #{cnn_forward.1} parent=47 // pred_check_branch
        %4446 = sbr.rel (%p4444) target = $region52
      $region51: #{cnn_forward.1} parent=47 // pred_region
        %s4447 = smul.u32 5, %s17
        %p4448 = scmp.lt.s32.totalorder %s4447, 9
        %s4449 = scalar_select %p4448, %s4447, 9
        %s4450 = smul.addr %s4449, 8
        %s4451 = scalar_lea.vmem %s5, %s4450
      $region52: #{cnn_forward.1} parent=47 // pred_fallthru
        _
    $region48: #{cnn_forward.1} parent=5 // pred_fallthru
      _
  $region6: #{cnn_forward.1} parent=0 // loop_footer
    %s15 = sadd.s32 1, %s11
  $region7: #{cnn_forward.1} parent=0 // loop_footer_branch
    %10 = sbr.rel target = $region3
  $region8: #{cnn_forward.1} parent=0 // loop_exit
    _

</llo_original>
